<compile_context>
chip_gen: v5e
topology: v5e:2x2
jax: 0.10.0
libtpu: 0.0.40
codegen_flags: <defaults>
</compile_context>

<pallas_src>
import functools
import numpy as np
import jax
import jax.numpy as jnp
from jax.experimental import pallas as pl
from jax.experimental.pallas import tpu as pltpu


MXU_DTYPE = jnp.bfloat16   # MXU operand dtype for the big matmuls (f32 accumulation)


def _layernorm(x, g, b, eps=1e-5):
    mu = jnp.mean(x, axis=-1, keepdims=True)
    var = jnp.mean(jnp.square(x - mu), axis=-1, keepdims=True)
    return (x - mu) * jax.lax.rsqrt(var + eps) * g + b


# ----------------------------- fused kernel ---------------------------------

def _future_decoder_kernel(
        # per-group data (leading group axis squeezed) + resident pe
        cur_ref, zc_ref, mem_ref, pe_ref, smask_ref, cmask_ref,
        # input / output heads (f32, tiny, autoregressive path)
        w_in_y_ref, w_in_zc_ref, b_in_ref, w_out_ref, b_out_ref,
        # stacked per-layer weights (leading axis = layer); matmul weights bf16
        s_wqkv_ref, s_bqkv_ref, s_wo_ref, s_bo_ref,
        c_wq_ref, c_bq_ref, c_wkv_ref, c_bkv_ref, c_wo_ref, c_bo_ref,
        ff_w1_ref, ff_b1_ref, ff_w2_ref, ff_b2_ref,
        ln_g_ref, ln_b_ref,
        # outputs (whole (T, ...) blocks per group, VMEM resident)
        y_ref, attn_ref,
        # VMEM scratch (re-initialized every grid step / batch group)
        y_carry, zc_proj, kT_mem, v_mem,
        *, T, D, nhead, nlayer, scale):
    dh = D // nhead
    bf = MXU_DTYPE
    f32 = jnp.float32

    # ------------- per-group, frame-invariant precompute -------------
    y_carry[...] = cur_ref[...]                                   # frame 0 uses cur_motion
    zc_proj[...] = jnp.dot(zc_ref[...], w_in_zc_ref[...],
                           preferred_element_type=f32) + b_in_ref[...]
    mem_bf = mem_ref[...].astype(bf)
    for li in range(nlayer):                                      # cached memory K^T | V
        kv = jnp.dot(mem_bf, c_wkv_ref[li],
                     preferred_element_type=f32) + c_bkv_ref[li]  # (S_mem, 2D)
        kT_mem[li] = jnp.transpose(kv[:, :D]).astype(bf)          # (D, S_mem), once per group
        v_mem[li] = kv[:, D:].astype(bf)                          # (S_mem, D)

    smask = smask_ref[...]                                        # (R, R) additive
    cmask = cmask_ref[...]                                        # (R, S_mem) additive

    def attend(q_bf, k_bf, v_bf, mask, wo_bf, *, k_pre_transposed, want_probs):
        """Per-head scores/softmax; single fused output projection."""
        ctx = []
        psum = None
        for h in range(nhead):
            sl = slice(h * dh, (h + 1) * dh)
            if k_pre_transposed:
                s = jnp.dot(q_bf[:, sl], k_bf[sl, :], preferred_element_type=f32)
            else:
                s = jax.lax.dot_general(q_bf[:, sl], k_bf[:, sl],
                                        (((1,), (1,)), ((), ())),
                                        preferred_element_type=f32)
            s = s * scale + mask
            s = s - jnp.max(s, axis=-1, keepdims=True)
            e = jnp.exp(s)
            denom = jnp.sum(e, axis=-1, keepdims=True)
            if want_probs:
                p = e / denom                                  # exact: probs are an output
                psum = p if psum is None else psum + p
            else:
                p = e * pl.reciprocal(denom, approx=True)      # EUP slot
            ctx.append(jnp.dot(p.astype(bf), v_bf[:, sl],
                               preferred_element_type=f32))    # (R, dh)
        ctx = jnp.concatenate(ctx, axis=-1).astype(bf)         # (R, D)
        out = jnp.dot(ctx, wo_bf, preferred_element_type=f32)  # ONE Wo matmul (K = D)
        return out, psum

    # ------------- autoregressive frame loop (no per-frame grid overhead) -------------
    @pl.loop(0, T)
    def _frame(t):
        # input_fc (y part, f32) + cached (z|ctx) projection + positional encoding
        x = (jnp.dot(y_carry[...], w_in_y_ref[...], preferred_element_type=f32)
             + zc_proj[...] + pe_ref[t])                       # (R, D)

        # TODO(synk): switch to lax.fori_loop over layers if nlayer grows > 3
        for li in range(nlayer):
            is_last = li == nlayer - 1

            # ----- self-attention (fused QKV projection) -----
            qkv = jnp.dot(x.astype(bf), s_wqkv_ref[li],
                          preferred_element_type=f32) + s_bqkv_ref[li]
            qkv_bf = qkv.astype(bf)                            # cast once per attention
            sa, _ = attend(qkv_bf[:, 0:D], qkv_bf[:, D:2 * D], qkv_bf[:, 2 * D:3 * D],
                           smask, s_wo_ref[li],
                           k_pre_transposed=False, want_probs=False)
            x = _layernorm(x + sa + s_bo_ref[li], ln_g_ref[li, 0], ln_b_ref[li, 0])

            # ----- cross-attention (memory K^T / V cached per group) -----
            qc = jnp.dot(x.astype(bf), c_wq_ref[li],
                         preferred_element_type=f32) + c_bq_ref[li]
            ca, psum = attend(qc.astype(bf), kT_mem[li], v_mem[li],
                              cmask, c_wo_ref[li],
                              k_pre_transposed=True, want_probs=is_last)
            if is_last:
                attn_ref[t] = psum * (1.0 / nhead)             # lane-dense single store
            x = _layernorm(x + ca + c_bo_ref[li], ln_g_ref[li, 1], ln_b_ref[li, 1])

            # ----- feed-forward -----
            h1 = jax.nn.relu(jnp.dot(x.astype(bf), ff_w1_ref[li],
                                     preferred_element_type=f32) + ff_b1_ref[li])
            ff = jnp.dot(h1.astype(bf), ff_w2_ref[li],
                         preferred_element_type=f32) + ff_b2_ref[li]
            x = _layernorm(x + ff, ln_g_ref[li, 2], ln_b_ref[li, 2])

        # ----- output head (f32) + residual; carry to next frame -----
        y = (jnp.dot(x, w_out_ref[...], preferred_element_type=f32)
             + b_out_ref[...] + cur_ref[...])                  # (R, FD)
        y_carry[...] = y
        y_ref[t] = y


# ------------------------------- host wrapper --------------------------------

def _pick_group_size(B, A, MEM):
    """Batch-group size: prefer >=2 groups (v7x 2nd TensorCore) while keeping
    the block-diagonal trick bounded (G*A <= 128 rows, G*MEM <= 256 keys)."""
    divisors = [d for d in range(1, B + 1) if B % d == 0]
    ok = [d for d in divisors if d * A <= 128 and d * MEM <= 256] or [1]
    multi = [d for d in ok if B // d >= 2]
    return max(multi) if multi else max(ok)


def _group_block_diag(mask, G):
    """(B, L, S) additive mask -> (nG, G*L, G*S) per-group block-diagonal."""
    B, L, S = mask.shape
    nG = B // G
    m = mask.reshape(nG, G, L, S).astype(jnp.float32)
    keep = jnp.eye(G, dtype=jnp.float32)[None, :, None, :, None]      # (1,G,1,G,1)
    big = keep * m[:, :, :, None, :] + (1.0 - keep) * (-1e9)
    return big.reshape(nG, G * L, G * S)


def future_decoder_forward(params, pe, cur_motion, z, past_feature,
                           self_padding_mask, cross_padding_mask,
                           context_features, *, num_future_frames, nhead,
                           concat_input):
    if concat_input:
        # TODO(synk): concat_input=True (growing target length) not implemented.
        raise NotImplementedError("concat_input=True path is not fused")

    A, B, FD = cur_motion.shape
    MEM = past_feature.shape[0]
    D = params['w_out'].shape[0]
    nlayer = params['self_wqkv'].shape[0]
    T = num_future_frames
    scale = 1.0 / float(np.sqrt(D // nhead))
    f32 = jnp.float32
    bf = MXU_DTYPE

    G = _pick_group_size(B, A, MEM)
    nG = B // G
    GA, GM = G * A, G * MEM

    # Batch-major slabs split into nG independent batch groups of G batches.
    cur_g = cur_motion.transpose(1, 0, 2).reshape(nG, GA, FD).astype(f32)
    zc_g = jnp.concatenate([z, context_features], axis=-1) \
              .transpose(1, 0, 2).reshape(nG, GA, -1).astype(f32)
    mem_g = past_feature.transpose(1, 0, 2).reshape(nG, GM, D).astype(f32)
    pe_frames = pe[:T].astype(f32)                                    # (T, 1, D)
    smask_g = _group_block_diag(self_padding_mask[:, :A, :A], G)      # (nG, GA, GA)
    cmask_g = _group_block_diag(cross_padding_mask[:, :A, :], G)      # (nG, GA, GM)

    # Pre-cast the big matmul weights to bf16 once on the host; keep the tiny
    # input/output heads, all biases and LayerNorm params in f32.
    wb = lambda k: params[k].astype(bf)
    inputs = (
        cur_g, zc_g, mem_g, pe_frames, smask_g, cmask_g,
        params['w_in_y'].astype(f32), params['w_in_zc'].astype(f32),
        params['b_in'].astype(f32),
        params['w_out'].astype(f32), params['b_out'].astype(f32),
        wb('self_wqkv'), params['self_bqkv'].astype(f32),
        wb('self_wo'), params['self_bo'].astype(f32),
        wb('cross_wq'), params['cross_bq'].astype(f32),
        wb('cross_wkv'), params['cross_bkv'].astype(f32),
        wb('cross_wo'), params['cross_bo'].astype(f32),
        wb('ff_w1'), params['ff_b1'].astype(f32),
        wb('ff_w2'), params['ff_b2'].astype(f32),
        params['ln_g'].astype(f32), params['ln_b'].astype(f32),
    )

    def grouped(x):
        nd = x.ndim
        return pl.BlockSpec((None,) + x.shape[1:],
                            lambda g, _nd=nd: (g,) + (0,) * (_nd - 1))

    def resident(x):
        nd = x.ndim
        return pl.BlockSpec(x.shape, lambda g, _nd=nd: (0,) * _nd)

    in_specs = [grouped(cur_g), grouped(zc_g), grouped(mem_g),
                resident(pe_frames), grouped(smask_g), grouped(cmask_g)] \
             + [resident(w) for w in inputs[6:]]

    out_shape = (jax.ShapeDtypeStruct((nG, T, GA, FD), f32),
                 jax.ShapeDtypeStruct((nG, T, GA, GM), f32))
    out_specs = (pl.BlockSpec((None, T, GA, FD), lambda g: (g, 0, 0, 0)),
                 pl.BlockSpec((None, T, GA, GM), lambda g: (g, 0, 0, 0)))

    scratch = [
        pltpu.VMEM((GA, FD), f32),            # autoregressive carry (y_next_mu)
        pltpu.VMEM((GA, D), f32),             # cached (z|ctx) @ W_in + b_in
        pltpu.VMEM((nlayer, D, GM), bf),      # cached memory K^T per layer (bf16)
        pltpu.VMEM((nlayer, GM, D), bf),      # cached memory V per layer (bf16)
    ]

    kernel = functools.partial(_future_decoder_kernel, T=T, D=D, nhead=nhead,
                               nlayer=nlayer, scale=scale)

    y_out, attn_out = pl.pallas_call(
        kernel,
        out_shape=out_shape,
        grid=(nG,),
        in_specs=in_specs,
        out_specs=out_specs,
        scratch_shapes=scratch,
        compiler_params=pltpu.CompilerParams(
            dimension_semantics=("parallel",),       # independent batch groups
            vmem_limit_bytes=64 * 1024 * 1024),
    )(*inputs)

    # (nG, T, G, A, FD) -> (A, T, B, FD)
    y_mu = y_out.reshape(nG, T, G, A, FD).transpose(3, 1, 0, 2, 4).reshape(A, T, B, FD)

    # lane-dense slab -> per-batch (A, MEM) diagonal blocks, in plain XLA
    attn6 = attn_out.reshape(nG, T, G, A, G, MEM)
    attn = jnp.diagonal(attn6, axis1=2, axis2=4)          # (nG, T, A, MEM, G)
    attn = attn.transpose(1, 0, 4, 2, 3).reshape(T, B, A, MEM)
    attn_list = [attn[t] for t in range(T)]               # each (B, A, MEM)
    return y_mu, attn_list


# ----------------------------- parameter init -------------------------------

def init_params(key, forecast_dim, zc_dim, d_model, nlayer, ff_dim):
    def w(k, shape):
        return 0.02 * jax.random.normal(k, shape, jnp.float32)

    ks = iter(jax.random.split(key, 32))
    p = {}
    p['w_in_y'] = w(next(ks), (forecast_dim, d_model))
    p['w_in_zc'] = w(next(ks), (zc_dim, d_model))
    p['b_in'] = w(next(ks), (1, d_model))
    p['w_out'] = w(next(ks), (d_model, forecast_dim))
    p['b_out'] = w(next(ks), (1, forecast_dim))
    p['self_wqkv'] = w(next(ks), (nlayer, d_model, 3 * d_model))
    p['self_bqkv'] = w(next(ks), (nlayer, 1, 3 * d_model))
    p['self_wo'] = w(next(ks), (nlayer, d_model, d_model))
    p['self_bo'] = w(next(ks), (nlayer, 1, d_model))
    p['cross_wq'] = w(next(ks), (nlayer, d_model, d_model))
    p['cross_bq'] = w(next(ks), (nlayer, 1, d_model))
    p['cross_wkv'] = w(next(ks), (nlayer, d_model, 2 * d_model))
    p['cross_bkv'] = w(next(ks), (nlayer, 1, 2 * d_model))
    p['cross_wo'] = w(next(ks), (nlayer, d_model, d_model))
    p['cross_bo'] = w(next(ks), (nlayer, 1, d_model))
    p['ff_w1'] = w(next(ks), (nlayer, d_model, ff_dim))
    p['ff_b1'] = w(next(ks), (nlayer, 1, ff_dim))
    p['ff_w2'] = w(next(ks), (nlayer, ff_dim, d_model))
    p['ff_b2'] = w(next(ks), (nlayer, 1, d_model))
    p['ln_g'] = jnp.ones((nlayer, 3, 1, d_model), jnp.float32)
    p['ln_b'] = jnp.zeros((nlayer, 3, 1, d_model), jnp.float32)
    return p


def build_pos_enc(max_len, d_model):
    pe = np.zeros((max_len, d_model), dtype=np.float32)
    position = np.arange(0, max_len, dtype=np.float32)[:, None]
    div_term = np.exp(np.arange(0, d_model, 2).astype(np.float32)
                      * (-np.log(10000.0) / d_model))
    pe[:, 0::2] = np.sin(position * div_term)
    pe[:, 1::2] = np.cos(position * div_term)
    return jnp.asarray(pe)[:, None, :]       # (max_len, 1, d_model)


# --------------------------------- main --------------------------------------

if __name__ == "__main__":
    # small config consistent with FutureDecoder.__init__
    A, B = 4, 2                 # max_agents, batch
    D = 32                      # tf_model_dim
    NZ, CTX, FD = 8, 6, 2       # nz, context out_dim, forecast_dim
    T = 3                       # future_frames
    NLAYER, NHEAD, FF = 2, 2, 64
    MEM = 8                     # past_feature sequence length
    CONCAT_INPUT = False

    key = jax.random.PRNGKey(0)
    kp, k1, k2, k3, k4 = jax.random.split(key, 5)

    params = init_params(kp, FD, NZ + CTX, D, NLAYER, FF)
    pe = build_pos_enc(200, D)

    cur_motion = jax.random.normal(k1, (A, B, FD), jnp.float32)
    z = jax.random.normal(k2, (A, B, NZ), jnp.float32)
    context_features = jax.random.normal(k3, (A, B, CTX), jnp.float32)
    past_feature = jax.random.normal(k4, (MEM, B, D), jnp.float32)

    # additive float padding masks (0 = keep, -1e9 = masked)
    self_padding_mask = jnp.zeros((B, A, A), jnp.float32).at[:, :, A - 1].set(-1e9)
    cross_padding_mask = jnp.zeros((B, A, MEM), jnp.float32).at[:, :, MEM - 1].set(-1e9)

    fwd = jax.jit(functools.partial(
        future_decoder_forward,
        num_future_frames=T, nhead=NHEAD, concat_input=CONCAT_INPUT))

    y_mu, attn_list = fwd(params, pe, cur_motion, z, past_feature,
                          self_padding_mask, cross_padding_mask,
                          context_features)
    y_mu = jax.block_until_ready(y_mu)
    for a in attn_list:
        jax.block_until_ready(a)

    assert y_mu.shape == (A, T, B, FD)
    assert len(attn_list) == T and attn_list[0].shape == (B, A, MEM)
    assert bool(jnp.all(jnp.isfinite(y_mu)))
    for a in attn_list:
        assert bool(jnp.all(jnp.isfinite(a)))
        # attention rows are probability distributions over memory steps
        assert bool(jnp.all(jnp.abs(jnp.sum(a, axis=-1) - 1.0) < 1e-2))
    print("KERNEL_OK")
</pallas_src>

<mosaic_0001>
module attributes {stable_mosaic.version = 11 : i64} {
  func.func @_future_decoder_kernel(%arg0: i32, %arg1: memref<1x4x2xf32, #tpu.memory_space<vmem>>, %arg2: memref<1x4x14xf32, #tpu.memory_space<vmem>>, %arg3: memref<1x8x32xf32, #tpu.memory_space<vmem>>, %arg4: memref<3x1x32xf32, #tpu.memory_space<vmem>>, %arg5: memref<1x4x4xf32, #tpu.memory_space<vmem>>, %arg6: memref<1x4x8xf32, #tpu.memory_space<vmem>>, %arg7: memref<2x32xf32, #tpu.memory_space<vmem>>, %arg8: memref<14x32xf32, #tpu.memory_space<vmem>>, %arg9: memref<1x32xf32, #tpu.memory_space<vmem>>, %arg10: memref<32x2xf32, #tpu.memory_space<vmem>>, %arg11: memref<1x2xf32, #tpu.memory_space<vmem>>, %arg12: memref<2x32x96xbf16, #tpu.memory_space<vmem>>, %arg13: memref<2x1x96xf32, #tpu.memory_space<vmem>>, %arg14: memref<2x32x32xbf16, #tpu.memory_space<vmem>>, %arg15: memref<2x1x32xf32, #tpu.memory_space<vmem>>, %arg16: memref<2x32x32xbf16, #tpu.memory_space<vmem>>, %arg17: memref<2x1x32xf32, #tpu.memory_space<vmem>>, %arg18: memref<2x32x64xbf16, #tpu.memory_space<vmem>>, %arg19: memref<2x1x64xf32, #tpu.memory_space<vmem>>, %arg20: memref<2x32x32xbf16, #tpu.memory_space<vmem>>, %arg21: memref<2x1x32xf32, #tpu.memory_space<vmem>>, %arg22: memref<2x32x64xbf16, #tpu.memory_space<vmem>>, %arg23: memref<2x1x64xf32, #tpu.memory_space<vmem>>, %arg24: memref<2x64x32xbf16, #tpu.memory_space<vmem>>, %arg25: memref<2x1x32xf32, #tpu.memory_space<vmem>>, %arg26: memref<2x3x1x32xf32, #tpu.memory_space<vmem>>, %arg27: memref<2x3x1x32xf32, #tpu.memory_space<vmem>>, %arg28: memref<1x3x4x2xf32, #tpu.memory_space<vmem>>, %arg29: memref<1x3x4x8xf32, #tpu.memory_space<vmem>>, %arg30: memref<4x2xf32, #tpu.memory_space<vmem>>, %arg31: memref<4x32xf32, #tpu.memory_space<vmem>>, %arg32: memref<2x32x8xbf16, #tpu.memory_space<vmem>>, %arg33: memref<2x8x32xbf16, #tpu.memory_space<vmem>>) attributes {dimension_semantics = [#tpu.dimension_semantics<parallel>], iteration_bounds = array<i64: 2>, scalar_prefetch = 0 : i64, scratch_operands = 4 : i64, tpu.core_type = #tpu.core_type<tc>, window_params = [{transform_indices = @transform_0, window_bounds = array<i64: 1, 4, 2>}, {transform_indices = @transform_1, window_bounds = array<i64: 1, 4, 14>}, {transform_indices = @transform_2, window_bounds = array<i64: 1, 8, 32>}, {pipeline_mode = #tpu.pipeline_mode<synchronous>, transform_indices = @transform_3, window_bounds = array<i64: 3, 1, 32>}, {transform_indices = @transform_4, window_bounds = array<i64: 1, 4, 4>}, {transform_indices = @transform_5, window_bounds = array<i64: 1, 4, 8>}, {pipeline_mode = #tpu.pipeline_mode<synchronous>, transform_indices = @transform_6, window_bounds = array<i64: 2, 32>}, {pipeline_mode = #tpu.pipeline_mode<synchronous>, transform_indices = @transform_7, window_bounds = array<i64: 14, 32>}, {pipeline_mode = #tpu.pipeline_mode<synchronous>, transform_indices = @transform_8, window_bounds = array<i64: 1, 32>}, {pipeline_mode = #tpu.pipeline_mode<synchronous>, transform_indices = @transform_9, window_bounds = array<i64: 32, 2>}, {pipeline_mode = #tpu.pipeline_mode<synchronous>, transform_indices = @transform_10, window_bounds = array<i64: 1, 2>}, {pipeline_mode = #tpu.pipeline_mode<synchronous>, transform_indices = @transform_11, window_bounds = array<i64: 2, 32, 96>}, {pipeline_mode = #tpu.pipeline_mode<synchronous>, transform_indices = @transform_12, window_bounds = array<i64: 2, 1, 96>}, {pipeline_mode = #tpu.pipeline_mode<synchronous>, transform_indices = @transform_13, window_bounds = array<i64: 2, 32, 32>}, {pipeline_mode = #tpu.pipeline_mode<synchronous>, transform_indices = @transform_14, window_bounds = array<i64: 2, 1, 32>}, {pipeline_mode = #tpu.pipeline_mode<synchronous>, transform_indices = @transform_15, window_bounds = array<i64: 2, 32, 32>}, {pipeline_mode = #tpu.pipeline_mode<synchronous>, transform_indices = @transform_16, window_bounds = array<i64: 2, 1, 32>}, {pipeline_mode = #tpu.pipeline_mode<synchronous>, transform_indices = @transform_17, window_bounds = array<i64: 2, 32, 64>}, {pipeline_mode = #tpu.pipeline_mode<synchronous>, transform_indices = @transform_18, window_bounds = array<i64: 2, 1, 64>}, {pipeline_mode = #tpu.pipeline_mode<synchronous>, transform_indices = @transform_19, window_bounds = array<i64: 2, 32, 32>}, {pipeline_mode = #tpu.pipeline_mode<synchronous>, transform_indices = @transform_20, window_bounds = array<i64: 2, 1, 32>}, {pipeline_mode = #tpu.pipeline_mode<synchronous>, transform_indices = @transform_21, window_bounds = array<i64: 2, 32, 64>}, {pipeline_mode = #tpu.pipeline_mode<synchronous>, transform_indices = @transform_22, window_bounds = array<i64: 2, 1, 64>}, {pipeline_mode = #tpu.pipeline_mode<synchronous>, transform_indices = @transform_23, window_bounds = array<i64: 2, 64, 32>}, {pipeline_mode = #tpu.pipeline_mode<synchronous>, transform_indices = @transform_24, window_bounds = array<i64: 2, 1, 32>}, {pipeline_mode = #tpu.pipeline_mode<synchronous>, transform_indices = @transform_25, window_bounds = array<i64: 2, 3, 1, 32>}, {pipeline_mode = #tpu.pipeline_mode<synchronous>, transform_indices = @transform_26, window_bounds = array<i64: 2, 3, 1, 32>}, {transform_indices = @transform_27, window_bounds = array<i64: 1, 3, 4, 2>}, {transform_indices = @transform_28, window_bounds = array<i64: 1, 3, 4, 8>}]} {
    %c0 = arith.constant 0 : index
    %c0_0 = arith.constant 0 : index
    %c0_1 = arith.constant 0 : index
    %0 = vector.load %arg1[%c0, %c0_0, %c0_1] : memref<1x4x2xf32, #tpu.memory_space<vmem>>, vector<1x4x2xf32>
    %1 = vector.shape_cast %0 : vector<1x4x2xf32> to vector<4x2xf32>
    %c0_2 = arith.constant 0 : index
    %c0_3 = arith.constant 0 : index
    %2 = vector.load %arg30[%c0_2, %c0_3] : memref<4x2xf32, #tpu.memory_space<vmem>>, vector<4x2xf32>
    tpu.vector_store %arg30[%c0_2, %c0_3], %1 {strides = array<i32>} : memref<4x2xf32, #tpu.memory_space<vmem>>, vector<4x2xf32>,
    %c0_4 = arith.constant 0 : index
    %c0_5 = arith.constant 0 : index
    %c0_6 = arith.constant 0 : index
    %3 = vector.load %arg2[%c0_4, %c0_5, %c0_6] : memref<1x4x14xf32, #tpu.memory_space<vmem>>, vector<1x4x14xf32>
    %4 = vector.shape_cast %3 : vector<1x4x14xf32> to vector<4x14xf32>
    %c0_7 = arith.constant 0 : index
    %c0_8 = arith.constant 0 : index
    %5 = vector.load %arg8[%c0_7, %c0_8] : memref<14x32xf32, #tpu.memory_space<vmem>>, vector<14x32xf32>
    %cst = arith.constant dense<0.000000e+00> : vector<4x32xf32>
    %6 = tpu.matmul %4, %5, %cst {dimension_numbers = #tpu.dot_dimension_numbers<[1], [0], [0], [1], [0, 0, 1, 1], [], []>} : vector<4x14xf32>, vector<14x32xf32>, vector<4x32xf32> -> vector<4x32xf32>
    %c0_9 = arith.constant 0 : index
    %c0_10 = arith.constant 0 : index
    %7 = vector.load %arg9[%c0_9, %c0_10] : memref<1x32xf32, #tpu.memory_space<vmem>>, vector<1x32xf32>
    %8 = vector.broadcast %7 : vector<1x32xf32> to vector<4x32xf32>
    %9 = arith.addf %6, %8 : vector<4x32xf32>
    %c0_11 = arith.constant 0 : index
    %c0_12 = arith.constant 0 : index
    %10 = vector.load %arg31[%c0_11, %c0_12] : memref<4x32xf32, #tpu.memory_space<vmem>>, vector<4x32xf32>
    tpu.vector_store %arg31[%c0_11, %c0_12], %9 {strides = array<i32>} : memref<4x32xf32, #tpu.memory_space<vmem>>, vector<4x32xf32>,
    %c0_13 = arith.constant 0 : index
    %c0_14 = arith.constant 0 : index
    %c0_15 = arith.constant 0 : index
    %11 = vector.load %arg3[%c0_13, %c0_14, %c0_15] : memref<1x8x32xf32, #tpu.memory_space<vmem>>, vector<1x8x32xf32>
    %12 = vector.shape_cast %11 : vector<1x8x32xf32> to vector<8x32xf32>
    %13 = arith.truncf %12 : vector<8x32xf32> to vector<8x32xbf16>
    %c0_16 = arith.constant 0 : index
    %c0_17 = arith.constant 0 : index
    %c0_18 = arith.constant 0 : index
    %14 = vector.load %arg18[%c0_16, %c0_17, %c0_18] : memref<2x32x64xbf16, #tpu.memory_space<vmem>>, vector<1x32x64xbf16>
    %15 = vector.shape_cast %14 : vector<1x32x64xbf16> to vector<32x64xbf16>
    %cst_19 = arith.constant dense<0.000000e+00> : vector<8x64xf32>
    %16 = tpu.matmul %13, %15, %cst_19 {dimension_numbers = #tpu.dot_dimension_numbers<[1], [0], [0], [1], [0, 0, 1, 1], [], []>} : vector<8x32xbf16>, vector<32x64xbf16>, vector<8x64xf32> -> vector<8x64xf32>
    %c0_20 = arith.constant 0 : index
    %c0_21 = arith.constant 0 : index
    %c0_22 = arith.constant 0 : index
    %17 = vector.load %arg19[%c0_20, %c0_21, %c0_22] : memref<2x1x64xf32, #tpu.memory_space<vmem>>, vector<1x1x64xf32>
    %18 = vector.shape_cast %17 : vector<1x1x64xf32> to vector<1x64xf32>
    %19 = vector.broadcast %18 : vector<1x64xf32> to vector<8x64xf32>
    %20 = arith.addf %16, %19 : vector<8x64xf32>
    %21 = vector.extract_strided_slice %20 {offsets = [0, 0], sizes = [8, 32], strides = [1, 1]} : vector<8x64xf32> to vector<8x32xf32>
    %22 = tpu.transpose %21, [1, 0] : vector<8x32xf32> -> vector<32x8xf32>
    %23 = arith.truncf %22 : vector<32x8xf32> to vector<32x8xbf16>
    %c0_23 = arith.constant 0 : index
    %c0_24 = arith.constant 0 : index
    %c0_25 = arith.constant 0 : index
    %24 = vector.load %arg32[%c0_23, %c0_24, %c0_25] : memref<2x32x8xbf16, #tpu.memory_space<vmem>>, vector<1x32x8xbf16>
    %25 = vector.shape_cast %24 : vector<1x32x8xbf16> to vector<32x8xbf16>
    %26 = vector.shape_cast %23 : vector<32x8xbf16> to vector<1x32x8xbf16>
    tpu.vector_store %arg32[%c0_23, %c0_24, %c0_25], %26 {strides = array<i32>} : memref<2x32x8xbf16, #tpu.memory_space<vmem>>, vector<1x32x8xbf16>,
    %27 = vector.extract_strided_slice %20 {offsets = [0, 32], sizes = [8, 32], strides = [1, 1]} : vector<8x64xf32> to vector<8x32xf32>
    %28 = arith.truncf %27 : vector<8x32xf32> to vector<8x32xbf16>
    %c0_26 = arith.constant 0 : index
    %c0_27 = arith.constant 0 : index
    %c0_28 = arith.constant 0 : index
    %29 = vector.load %arg33[%c0_26, %c0_27, %c0_28] : memref<2x8x32xbf16, #tpu.memory_space<vmem>>, vector<1x8x32xbf16>
    %30 = vector.shape_cast %29 : vector<1x8x32xbf16> to vector<8x32xbf16>
    %31 = vector.shape_cast %28 : vector<8x32xbf16> to vector<1x8x32xbf16>
    tpu.vector_store %arg33[%c0_26, %c0_27, %c0_28], %31 {strides = array<i32>} : memref<2x8x32xbf16, #tpu.memory_space<vmem>>, vector<1x8x32xbf16>,
    %c1 = arith.constant 1 : index
    %c0_29 = arith.constant 0 : index
    %c0_30 = arith.constant 0 : index
    %32 = vector.load %arg18[%c1, %c0_29, %c0_30] : memref<2x32x64xbf16, #tpu.memory_space<vmem>>, vector<1x32x64xbf16>
    %33 = vector.shape_cast %32 : vector<1x32x64xbf16> to vector<32x64xbf16>
    %cst_31 = arith.constant dense<0.000000e+00> : vector<8x64xf32>
    %34 = tpu.matmul %13, %33, %cst_31 {dimension_numbers = #tpu.dot_dimension_numbers<[1], [0], [0], [1], [0, 0, 1, 1], [], []>} : vector<8x32xbf16>, vector<32x64xbf16>, vector<8x64xf32> -> vector<8x64xf32>
    %c1_32 = arith.constant 1 : index
    %c0_33 = arith.constant 0 : index
    %c0_34 = arith.constant 0 : index
    %35 = vector.load %arg19[%c1_32, %c0_33, %c0_34] : memref<2x1x64xf32, #tpu.memory_space<vmem>>, vector<1x1x64xf32>
    %36 = vector.shape_cast %35 : vector<1x1x64xf32> to vector<1x64xf32>
    %37 = vector.broadcast %36 : vector<1x64xf32> to vector<8x64xf32>
    %38 = arith.addf %34, %37 : vector<8x64xf32>
    %39 = vector.extract_strided_slice %38 {offsets = [0, 0], sizes = [8, 32], strides = [1, 1]} : vector<8x64xf32> to vector<8x32xf32>
    %40 = tpu.transpose %39, [1, 0] : vector<8x32xf32> -> vector<32x8xf32>
    %41 = arith.truncf %40 : vector<32x8xf32> to vector<32x8xbf16>
    %c1_35 = arith.constant 1 : index
    %c0_36 = arith.constant 0 : index
    %c0_37 = arith.constant 0 : index
    %42 = vector.load %arg32[%c1_35, %c0_36, %c0_37] : memref<2x32x8xbf16, #tpu.memory_space<vmem>>, vector<1x32x8xbf16>
    %43 = vector.shape_cast %42 : vector<1x32x8xbf16> to vector<32x8xbf16>
    %44 = vector.shape_cast %41 : vector<32x8xbf16> to vector<1x32x8xbf16>
    tpu.vector_store %arg32[%c1_35, %c0_36, %c0_37], %44 {strides = array<i32>} : memref<2x32x8xbf16, #tpu.memory_space<vmem>>, vector<1x32x8xbf16>,
    %45 = vector.extract_strided_slice %38 {offsets = [0, 32], sizes = [8, 32], strides = [1, 1]} : vector<8x64xf32> to vector<8x32xf32>
    %46 = arith.truncf %45 : vector<8x32xf32> to vector<8x32xbf16>
    %c1_38 = arith.constant 1 : index
    %c0_39 = arith.constant 0 : index
    %c0_40 = arith.constant 0 : index
    %47 = vector.load %arg33[%c1_38, %c0_39, %c0_40] : memref<2x8x32xbf16, #tpu.memory_space<vmem>>, vector<1x8x32xbf16>
    %48 = vector.shape_cast %47 : vector<1x8x32xbf16> to vector<8x32xbf16>
    %49 = vector.shape_cast %46 : vector<8x32xbf16> to vector<1x8x32xbf16>
    tpu.vector_store %arg33[%c1_38, %c0_39, %c0_40], %49 {strides = array<i32>} : memref<2x8x32xbf16, #tpu.memory_space<vmem>>, vector<1x8x32xbf16>,
    %c0_41 = arith.constant 0 : index
    %c0_42 = arith.constant 0 : index
    %c0_43 = arith.constant 0 : index
    %50 = vector.load %arg5[%c0_41, %c0_42, %c0_43] : memref<1x4x4xf32, #tpu.memory_space<vmem>>, vector<1x4x4xf32>
    %51 = vector.shape_cast %50 : vector<1x4x4xf32> to vector<4x4xf32>
    %c0_44 = arith.constant 0 : index
    %c0_45 = arith.constant 0 : index
    %c0_46 = arith.constant 0 : index
    %52 = vector.load %arg6[%c0_44, %c0_45, %c0_46] : memref<1x4x8xf32, #tpu.memory_space<vmem>>, vector<1x4x8xf32>
    %53 = vector.shape_cast %52 : vector<1x4x8xf32> to vector<4x8xf32>
    %c0_i32 = arith.constant 0 : i32
    %c3_i32 = arith.constant 3 : i32
    %54 = arith.addi %c0_i32, %c3_i32 : i32
    %c1_i32 = arith.constant 1 : i32
    scf.for %arg34 = %c0_i32 to %54 step %c1_i32  : i32 {
      %c1_i32_48 = arith.constant 1 : i32
      %55 = arith.muli %arg34, %c1_i32_48 : i32
      %c0_i32_49 = arith.constant 0 : i32
      %56 = arith.addi %c0_i32_49, %55 : i32
      %c0_50 = arith.constant 0 : index
      %c0_51 = arith.constant 0 : index
      %57 = vector.load %arg30[%c0_50, %c0_51] : memref<4x2xf32, #tpu.memory_space<vmem>>, vector<4x2xf32>
      %c0_52 = arith.constant 0 : index
      %c0_53 = arith.constant 0 : index
      %58 = vector.load %arg7[%c0_52, %c0_53] : memref<2x32xf32, #tpu.memory_space<vmem>>, vector<2x32xf32>
      %cst_54 = arith.constant dense<0.000000e+00> : vector<4x32xf32>
      %59 = tpu.matmul %57, %58, %cst_54 {dimension_numbers = #tpu.dot_dimension_numbers<[1], [0], [0], [1], [0, 0, 1, 1], [], []>} : vector<4x2xf32>, vector<2x32xf32>, vector<4x32xf32> -> vector<4x32xf32>
      %c0_55 = arith.constant 0 : index
      %c0_56 = arith.constant 0 : index
      %60 = vector.load %arg31[%c0_55, %c0_56] : memref<4x32xf32, #tpu.memory_space<vmem>>, vector<4x32xf32>
      %61 = arith.addf %59, %60 : vector<4x32xf32>
      %62 = arith.index_cast %56 : i32 to index
      %c0_57 = arith.constant 0 : index
      %c0_58 = arith.constant 0 : index
      %63 = vector.load %arg4[%62, %c0_57, %c0_58] : memref<3x1x32xf32, #tpu.memory_space<vmem>>, vector<1x1x32xf32>
      %64 = vector.shape_cast %63 : vector<1x1x32xf32> to vector<1x32xf32>
      %65 = vector.broadcast %64 : vector<1x32xf32> to vector<4x32xf32>
      %66 = arith.addf %61, %65 : vector<4x32xf32>
      %67 = arith.truncf %66 : vector<4x32xf32> to vector<4x32xbf16>
      %c0_59 = arith.constant 0 : index
      %c0_60 = arith.constant 0 : index
      %c0_61 = arith.constant 0 : index
      %68 = vector.load %arg12[%c0_59, %c0_60, %c0_61] : memref<2x32x96xbf16, #tpu.memory_space<vmem>>, vector<1x32x96xbf16>
      %69 = vector.shape_cast %68 : vector<1x32x96xbf16> to vector<32x96xbf16>
      %cst_62 = arith.constant dense<0.000000e+00> : vector<4x96xf32>
      %70 = tpu.matmul %67, %69, %cst_62 {dimension_numbers = #tpu.dot_dimension_numbers<[1], [0], [0], [1], [0, 0, 1, 1], [], []>} : vector<4x32xbf16>, vector<32x96xbf16>, vector<4x96xf32> -> vector<4x96xf32>
      %c0_63 = arith.constant 0 : index
      %c0_64 = arith.constant 0 : index
      %c0_65 = arith.constant 0 : index
      %71 = vector.load %arg13[%c0_63, %c0_64, %c0_65] : memref<2x1x96xf32, #tpu.memory_space<vmem>>, vector<1x1x96xf32>
      %72 = vector.shape_cast %71 : vector<1x1x96xf32> to vector<1x96xf32>
      %73 = vector.broadcast %72 : vector<1x96xf32> to vector<4x96xf32>
      %74 = arith.addf %70, %73 : vector<4x96xf32>
      %75 = arith.truncf %74 : vector<4x96xf32> to vector<4x96xbf16>
      %76 = vector.extract_strided_slice %75 {offsets = [0, 0], sizes = [4, 32], strides = [1, 1]} : vector<4x96xbf16> to vector<4x32xbf16>
      %77 = vector.extract_strided_slice %75 {offsets = [0, 32], sizes = [4, 32], strides = [1, 1]} : vector<4x96xbf16> to vector<4x32xbf16>
      %78 = vector.extract_strided_slice %75 {offsets = [0, 64], sizes = [4, 32], strides = [1, 1]} : vector<4x96xbf16> to vector<4x32xbf16>
      %c0_66 = arith.constant 0 : index
      %c0_67 = arith.constant 0 : index
      %c0_68 = arith.constant 0 : index
      %79 = vector.load %arg14[%c0_66, %c0_67, %c0_68] : memref<2x32x32xbf16, #tpu.memory_space<vmem>>, vector<1x32x32xbf16>
      %80 = vector.shape_cast %79 : vector<1x32x32xbf16> to vector<32x32xbf16>
      %81 = vector.extract_strided_slice %76 {offsets = [0, 0], sizes = [4, 16], strides = [1, 1]} : vector<4x32xbf16> to vector<4x16xbf16>
      %82 = vector.extract_strided_slice %77 {offsets = [0, 0], sizes = [4, 16], strides = [1, 1]} : vector<4x32xbf16> to vector<4x16xbf16>
      %cst_69 = arith.constant dense<0.000000e+00> : vector<4x4xf32>
      %83 = tpu.matmul %81, %82, %cst_69 {dimension_numbers = #tpu.dot_dimension_numbers<[1], [1], [0], [0], [0, 0, 1, 0], [], []>} : vector<4x16xbf16>, vector<4x16xbf16>, vector<4x4xf32> -> vector<4x4xf32>
      %cst_70 = arith.constant 2.500000e-01 : f32
      %84 = vector.broadcast %cst_70 : f32 to vector<4x4xf32>
      %85 = arith.mulf %83, %84 : vector<4x4xf32>
      %86 = arith.addf %85, %51 : vector<4x4xf32>
      %cst_71 = arith.constant dense<0xFF800000> : vector<4xf32>
      %87 = vector.multi_reduction <maximumf>, %86, %cst_71 [1] : vector<4x4xf32> to vector<4xf32>
      %88 = vector.shape_cast %87 : vector<4xf32> to vector<4x1xf32>
      %89 = vector.broadcast %88 : vector<4x1xf32> to vector<4x4xf32>
      %90 = arith.subf %86, %89 : vector<4x4xf32>
      %91 = math.exp %90 : vector<4x4xf32>
      %cst_72 = arith.constant dense<0.000000e+00> : vector<4xf32>
      %92 = vector.multi_reduction <add>, %91, %cst_72 [1] : vector<4x4xf32> to vector<4xf32>
      %93 = vector.shape_cast %92 : vector<4xf32> to vector<4x1xf32>
      %94 = tpu.reciprocal %93 {approx = true} : vector<4x1xf32> -> vector<4x1xf32>
      %95 = vector.broadcast %94 : vector<4x1xf32> to vector<4x4xf32>
      %96 = arith.mulf %91, %95 : vector<4x4xf32>
      %97 = arith.truncf %96 : vector<4x4xf32> to vector<4x4xbf16>
      %98 = vector.extract_strided_slice %78 {offsets = [0, 0], sizes = [4, 16], strides = [1, 1]} : vector<4x32xbf16> to vector<4x16xbf16>
      %cst_73 = arith.constant dense<0.000000e+00> : vector<4x16xf32>
      %99 = tpu.matmul %97, %98, %cst_73 {dimension_numbers = #tpu.dot_dimension_numbers<[1], [0], [0], [1], [0, 0, 1, 1], [], []>} : vector<4x4xbf16>, vector<4x16xbf16>, vector<4x16xf32> -> vector<4x16xf32>
      %100 = vector.extract_strided_slice %76 {offsets = [0, 16], sizes = [4, 16], strides = [1, 1]} : vector<4x32xbf16> to vector<4x16xbf16>
      %101 = vector.extract_strided_slice %77 {offsets = [0, 16], sizes = [4, 16], strides = [1, 1]} : vector<4x32xbf16> to vector<4x16xbf16>
      %cst_74 = arith.constant dense<0.000000e+00> : vector<4x4xf32>
      %102 = tpu.matmul %100, %101, %cst_74 {dimension_numbers = #tpu.dot_dimension_numbers<[1], [1], [0], [0], [0, 0, 1, 0], [], []>} : vector<4x16xbf16>, vector<4x16xbf16>, vector<4x4xf32> -> vector<4x4xf32>
      %cst_75 = arith.constant 2.500000e-01 : f32
      %103 = vector.broadcast %cst_75 : f32 to vector<4x4xf32>
      %104 = arith.mulf %102, %103 : vector<4x4xf32>
      %105 = arith.addf %104, %51 : vector<4x4xf32>
      %cst_76 = arith.constant dense<0xFF800000> : vector<4xf32>
      %106 = vector.multi_reduction <maximumf>, %105, %cst_76 [1] : vector<4x4xf32> to vector<4xf32>
      %107 = vector.shape_cast %106 : vector<4xf32> to vector<4x1xf32>
      %108 = vector.broadcast %107 : vector<4x1xf32> to vector<4x4xf32>
      %109 = arith.subf %105, %108 : vector<4x4xf32>
      %110 = math.exp %109 : vector<4x4xf32>
      %cst_77 = arith.constant dense<0.000000e+00> : vector<4xf32>
      %111 = vector.multi_reduction <add>, %110, %cst_77 [1] : vector<4x4xf32> to vector<4xf32>
      %112 = vector.shape_cast %111 : vector<4xf32> to vector<4x1xf32>
      %113 = tpu.reciprocal %112 {approx = true} : vector<4x1xf32> -> vector<4x1xf32>
      %114 = vector.broadcast %113 : vector<4x1xf32> to vector<4x4xf32>
      %115 = arith.mulf %110, %114 : vector<4x4xf32>
      %116 = arith.truncf %115 : vector<4x4xf32> to vector<4x4xbf16>
      %117 = vector.extract_strided_slice %78 {offsets = [0, 16], sizes = [4, 16], strides = [1, 1]} : vector<4x32xbf16> to vector<4x16xbf16>
      %cst_78 = arith.constant dense<0.000000e+00> : vector<4x16xf32>
      %118 = tpu.matmul %116, %117, %cst_78 {dimension_numbers = #tpu.dot_dimension_numbers<[1], [0], [0], [1], [0, 0, 1, 1], [], []>} : vector<4x4xbf16>, vector<4x16xbf16>, vector<4x16xf32> -> vector<4x16xf32>
      %119 = tpu.concatenate %99, %118 in 1 : vector<4x16xf32>, vector<4x16xf32> -> vector<4x32xf32>
      %120 = arith.truncf %119 : vector<4x32xf32> to vector<4x32xbf16>
      %cst_79 = arith.constant dense<0.000000e+00> : vector<4x32xf32>
      %121 = tpu.matmul %120, %80, %cst_79 {dimension_numbers = #tpu.dot_dimension_numbers<[1], [0], [0], [1], [0, 0, 1, 1], [], []>} : vector<4x32xbf16>, vector<32x32xbf16>, vector<4x32xf32> -> vector<4x32xf32>
      %122 = arith.addf %66, %121 : vector<4x32xf32>
      %c0_80 = arith.constant 0 : index
      %c0_81 = arith.constant 0 : index
      %c0_82 = arith.constant 0 : index
      %123 = vector.load %arg15[%c0_80, %c0_81, %c0_82] : memref<2x1x32xf32, #tpu.memory_space<vmem>>, vector<1x1x32xf32>
      %124 = vector.shape_cast %123 : vector<1x1x32xf32> to vector<1x32xf32>
      %125 = vector.broadcast %124 : vector<1x32xf32> to vector<4x32xf32>
      %126 = arith.addf %122, %125 : vector<4x32xf32>
      %c0_83 = arith.constant 0 : index
      %c0_84 = arith.constant 0 : index
      %c0_85 = arith.constant 0 : index
      %c0_86 = arith.constant 0 : index
      %127 = vector.load %arg26[%c0_83, %c0_84, %c0_85, %c0_86] : memref<2x3x1x32xf32, #tpu.memory_space<vmem>>, vector<1x1x1x32xf32>
      %128 = vector.shape_cast %127 : vector<1x1x1x32xf32> to vector<1x32xf32>
      %c0_87 = arith.constant 0 : index
      %c0_88 = arith.constant 0 : index
      %c0_89 = arith.constant 0 : index
      %c0_90 = arith.constant 0 : index
      %129 = vector.load %arg27[%c0_87, %c0_88, %c0_89, %c0_90] : memref<2x3x1x32xf32, #tpu.memory_space<vmem>>, vector<1x1x1x32xf32>
      %130 = vector.shape_cast %129 : vector<1x1x1x32xf32> to vector<1x32xf32>
      %cst_91 = arith.constant dense<0.000000e+00> : vector<4xf32>
      %131 = vector.multi_reduction <add>, %126, %cst_91 [1] : vector<4x32xf32> to vector<4xf32>
      %132 = vector.shape_cast %131 : vector<4xf32> to vector<4x1xf32>
      %cst_92 = arith.constant 3.200000e+01 : f32
      %133 = vector.broadcast %cst_92 : f32 to vector<4x1xf32>
      %134 = arith.divf %132, %133 : vector<4x1xf32>
      %135 = vector.broadcast %134 : vector<4x1xf32> to vector<4x32xf32>
      %136 = arith.subf %126, %135 : vector<4x32xf32>
      %137 = arith.mulf %136, %136 : vector<4x32xf32>
      %cst_93 = arith.constant dense<0.000000e+00> : vector<4xf32>
      %138 = vector.multi_reduction <add>, %137, %cst_93 [1] : vector<4x32xf32> to vector<4xf32>
      %139 = vector.shape_cast %138 : vector<4xf32> to vector<4x1xf32>
      %cst_94 = arith.constant 3.200000e+01 : f32
      %140 = vector.broadcast %cst_94 : f32 to vector<4x1xf32>
      %141 = arith.divf %139, %140 : vector<4x1xf32>
      %142 = vector.broadcast %134 : vector<4x1xf32> to vector<4x32xf32>
      %143 = arith.subf %126, %142 : vector<4x32xf32>
      %cst_95 = arith.constant 9.99999974E-6 : f32
      %144 = vector.broadcast %cst_95 : f32 to vector<4x1xf32>
      %145 = arith.addf %141, %144 : vector<4x1xf32>
      %146 = math.rsqrt %145 : vector<4x1xf32>
      %147 = vector.broadcast %146 : vector<4x1xf32> to vector<4x32xf32>
      %148 = arith.mulf %143, %147 : vector<4x32xf32>
      %149 = vector.broadcast %128 : vector<1x32xf32> to vector<4x32xf32>
      %150 = arith.mulf %148, %149 : vector<4x32xf32>
      %151 = vector.broadcast %130 : vector<1x32xf32> to vector<4x32xf32>
      %152 = arith.addf %150, %151 : vector<4x32xf32>
      %153 = arith.truncf %152 : vector<4x32xf32> to vector<4x32xbf16>
      %c0_96 = arith.constant 0 : index
      %c0_97 = arith.constant 0 : index
      %c0_98 = arith.constant 0 : index
      %154 = vector.load %arg16[%c0_96, %c0_97, %c0_98] : memref<2x32x32xbf16, #tpu.memory_space<vmem>>, vector<1x32x32xbf16>
      %155 = vector.shape_cast %154 : vector<1x32x32xbf16> to vector<32x32xbf16>
      %cst_99 = arith.constant dense<0.000000e+00> : vector<4x32xf32>
      %156 = tpu.matmul %153, %155, %cst_99 {dimension_numbers = #tpu.dot_dimension_numbers<[1], [0], [0], [1], [0, 0, 1, 1], [], []>} : vector<4x32xbf16>, vector<32x32xbf16>, vector<4x32xf32> -> vector<4x32xf32>
      %c0_100 = arith.constant 0 : index
      %c0_101 = arith.constant 0 : index
      %c0_102 = arith.constant 0 : index
      %157 = vector.load %arg17[%c0_100, %c0_101, %c0_102] : memref<2x1x32xf32, #tpu.memory_space<vmem>>, vector<1x1x32xf32>
      %158 = vector.shape_cast %157 : vector<1x1x32xf32> to vector<1x32xf32>
      %159 = vector.broadcast %158 : vector<1x32xf32> to vector<4x32xf32>
      %160 = arith.addf %156, %159 : vector<4x32xf32>
      %161 = arith.truncf %160 : vector<4x32xf32> to vector<4x32xbf16>
      %c0_103 = arith.constant 0 : index
      %c0_104 = arith.constant 0 : index
      %c0_105 = arith.constant 0 : index
      %162 = vector.load %arg32[%c0_103, %c0_104, %c0_105] : memref<2x32x8xbf16, #tpu.memory_space<vmem>>, vector<1x32x8xbf16>
      %163 = vector.shape_cast %162 : vector<1x32x8xbf16> to vector<32x8xbf16>
      %c0_106 = arith.constant 0 : index
      %c0_107 = arith.constant 0 : index
      %c0_108 = arith.constant 0 : index
      %164 = vector.load %arg33[%c0_106, %c0_107, %c0_108] : memref<2x8x32xbf16, #tpu.memory_space<vmem>>, vector<1x8x32xbf16>
      %165 = vector.shape_cast %164 : vector<1x8x32xbf16> to vector<8x32xbf16>
      %c0_109 = arith.constant 0 : index
      %c0_110 = arith.constant 0 : index
      %c0_111 = arith.constant 0 : index
      %166 = vector.load %arg20[%c0_109, %c0_110, %c0_111] : memref<2x32x32xbf16, #tpu.memory_space<vmem>>, vector<1x32x32xbf16>
      %167 = vector.shape_cast %166 : vector<1x32x32xbf16> to vector<32x32xbf16>
      %168 = vector.extract_strided_slice %161 {offsets = [0, 0], sizes = [4, 16], strides = [1, 1]} : vector<4x32xbf16> to vector<4x16xbf16>
      %169 = vector.extract_strided_slice %163 {offsets = [0, 0], sizes = [16, 8], strides = [1, 1]} : vector<32x8xbf16> to vector<16x8xbf16>
      %cst_112 = arith.constant dense<0.000000e+00> : vector<4x8xf32>
      %170 = tpu.matmul %168, %169, %cst_112 {dimension_numbers = #tpu.dot_dimension_numbers<[1], [0], [0], [1], [0, 0, 1, 1], [], []>} : vector<4x16xbf16>, vector<16x8xbf16>, vector<4x8xf32> -> vector<4x8xf32>
      %cst_113 = arith.constant 2.500000e-01 : f32
      %171 = vector.broadcast %cst_113 : f32 to vector<4x8xf32>
      %172 = arith.mulf %170, %171 : vector<4x8xf32>
      %173 = arith.addf %172, %53 : vector<4x8xf32>
      %cst_114 = arith.constant dense<0xFF800000> : vector<4xf32>
      %174 = vector.multi_reduction <maximumf>, %173, %cst_114 [1] : vector<4x8xf32> to vector<4xf32>
      %175 = vector.shape_cast %174 : vector<4xf32> to vector<4x1xf32>
      %176 = vector.broadcast %175 : vector<4x1xf32> to vector<4x8xf32>
      %177 = arith.subf %173, %176 : vector<4x8xf32>
      %178 = math.exp %177 : vector<4x8xf32>
      %cst_115 = arith.constant dense<0.000000e+00> : vector<4xf32>
      %179 = vector.multi_reduction <add>, %178, %cst_115 [1] : vector<4x8xf32> to vector<4xf32>
      %180 = vector.shape_cast %179 : vector<4xf32> to vector<4x1xf32>
      %181 = tpu.reciprocal %180 {approx = true} : vector<4x1xf32> -> vector<4x1xf32>
      %182 = vector.broadcast %181 : vector<4x1xf32> to vector<4x8xf32>
      %183 = arith.mulf %178, %182 : vector<4x8xf32>
      %184 = arith.truncf %183 : vector<4x8xf32> to vector<4x8xbf16>
      %185 = vector.extract_strided_slice %165 {offsets = [0, 0], sizes = [8, 16], strides = [1, 1]} : vector<8x32xbf16> to vector<8x16xbf16>
      %cst_116 = arith.constant dense<0.000000e+00> : vector<4x16xf32>
      %186 = tpu.matmul %184, %185, %cst_116 {dimension_numbers = #tpu.dot_dimension_numbers<[1], [0], [0], [1], [0, 0, 1, 1], [], []>} : vector<4x8xbf16>, vector<8x16xbf16>, vector<4x16xf32> -> vector<4x16xf32>
      %187 = vector.extract_strided_slice %161 {offsets = [0, 16], sizes = [4, 16], strides = [1, 1]} : vector<4x32xbf16> to vector<4x16xbf16>
      %188 = vector.extract_strided_slice %163 {offsets = [16, 0], sizes = [16, 8], strides = [1, 1]} : vector<32x8xbf16> to vector<16x8xbf16>
      %cst_117 = arith.constant dense<0.000000e+00> : vector<4x8xf32>
      %189 = tpu.matmul %187, %188, %cst_117 {dimension_numbers = #tpu.dot_dimension_numbers<[1], [0], [0], [1], [0, 0, 1, 1], [], []>} : vector<4x16xbf16>, vector<16x8xbf16>, vector<4x8xf32> -> vector<4x8xf32>
      %cst_118 = arith.constant 2.500000e-01 : f32
      %190 = vector.broadcast %cst_118 : f32 to vector<4x8xf32>
      %191 = arith.mulf %189, %190 : vector<4x8xf32>
      %192 = arith.addf %191, %53 : vector<4x8xf32>
      %cst_119 = arith.constant dense<0xFF800000> : vector<4xf32>
      %193 = vector.multi_reduction <maximumf>, %192, %cst_119 [1] : vector<4x8xf32> to vector<4xf32>
      %194 = vector.shape_cast %193 : vector<4xf32> to vector<4x1xf32>
      %195 = vector.broadcast %194 : vector<4x1xf32> to vector<4x8xf32>
      %196 = arith.subf %192, %195 : vector<4x8xf32>
      %197 = math.exp %196 : vector<4x8xf32>
      %cst_120 = arith.constant dense<0.000000e+00> : vector<4xf32>
      %198 = vector.multi_reduction <add>, %197, %cst_120 [1] : vector<4x8xf32> to vector<4xf32>
      %199 = vector.shape_cast %198 : vector<4xf32> to vector<4x1xf32>
      %200 = tpu.reciprocal %199 {approx = true} : vector<4x1xf32> -> vector<4x1xf32>
      %201 = vector.broadcast %200 : vector<4x1xf32> to vector<4x8xf32>
      %202 = arith.mulf %197, %201 : vector<4x8xf32>
      %203 = arith.truncf %202 : vector<4x8xf32> to vector<4x8xbf16>
      %204 = vector.extract_strided_slice %165 {offsets = [0, 16], sizes = [8, 16], strides = [1, 1]} : vector<8x32xbf16> to vector<8x16xbf16>
      %cst_121 = arith.constant dense<0.000000e+00> : vector<4x16xf32>
      %205 = tpu.matmul %203, %204, %cst_121 {dimension_numbers = #tpu.dot_dimension_numbers<[1], [0], [0], [1], [0, 0, 1, 1], [], []>} : vector<4x8xbf16>, vector<8x16xbf16>, vector<4x16xf32> -> vector<4x16xf32>
      %206 = tpu.concatenate %186, %205 in 1 : vector<4x16xf32>, vector<4x16xf32> -> vector<4x32xf32>
      %207 = arith.truncf %206 : vector<4x32xf32> to vector<4x32xbf16>
      %cst_122 = arith.constant dense<0.000000e+00> : vector<4x32xf32>
      %208 = tpu.matmul %207, %167, %cst_122 {dimension_numbers = #tpu.dot_dimension_numbers<[1], [0], [0], [1], [0, 0, 1, 1], [], []>} : vector<4x32xbf16>, vector<32x32xbf16>, vector<4x32xf32> -> vector<4x32xf32>
      %209 = arith.addf %152, %208 : vector<4x32xf32>
      %c0_123 = arith.constant 0 : index
      %c0_124 = arith.constant 0 : index
      %c0_125 = arith.constant 0 : index
      %210 = vector.load %arg21[%c0_123, %c0_124, %c0_125] : memref<2x1x32xf32, #tpu.memory_space<vmem>>, vector<1x1x32xf32>
      %211 = vector.shape_cast %210 : vector<1x1x32xf32> to vector<1x32xf32>
      %212 = vector.broadcast %211 : vector<1x32xf32> to vector<4x32xf32>
      %213 = arith.addf %209, %212 : vector<4x32xf32>
      %c0_126 = arith.constant 0 : index
      %c1_127 = arith.constant 1 : index
      %c0_128 = arith.constant 0 : index
      %c0_129 = arith.constant 0 : index
      %214 = vector.load %arg26[%c0_126, %c1_127, %c0_128, %c0_129] : memref<2x3x1x32xf32, #tpu.memory_space<vmem>>, vector<1x1x1x32xf32>
      %215 = vector.shape_cast %214 : vector<1x1x1x32xf32> to vector<1x32xf32>
      %c0_130 = arith.constant 0 : index
      %c1_131 = arith.constant 1 : index
      %c0_132 = arith.constant 0 : index
      %c0_133 = arith.constant 0 : index
      %216 = vector.load %arg27[%c0_130, %c1_131, %c0_132, %c0_133] : memref<2x3x1x32xf32, #tpu.memory_space<vmem>>, vector<1x1x1x32xf32>
      %217 = vector.shape_cast %216 : vector<1x1x1x32xf32> to vector<1x32xf32>
      %cst_134 = arith.constant dense<0.000000e+00> : vector<4xf32>
      %218 = vector.multi_reduction <add>, %213, %cst_134 [1] : vector<4x32xf32> to vector<4xf32>
      %219 = vector.shape_cast %218 : vector<4xf32> to vector<4x1xf32>
      %cst_135 = arith.constant 3.200000e+01 : f32
      %220 = vector.broadcast %cst_135 : f32 to vector<4x1xf32>
      %221 = arith.divf %219, %220 : vector<4x1xf32>
      %222 = vector.broadcast %221 : vector<4x1xf32> to vector<4x32xf32>
      %223 = arith.subf %213, %222 : vector<4x32xf32>
      %224 = arith.mulf %223, %223 : vector<4x32xf32>
      %cst_136 = arith.constant dense<0.000000e+00> : vector<4xf32>
      %225 = vector.multi_reduction <add>, %224, %cst_136 [1] : vector<4x32xf32> to vector<4xf32>
      %226 = vector.shape_cast %225 : vector<4xf32> to vector<4x1xf32>
      %cst_137 = arith.constant 3.200000e+01 : f32
      %227 = vector.broadcast %cst_137 : f32 to vector<4x1xf32>
      %228 = arith.divf %226, %227 : vector<4x1xf32>
      %229 = vector.broadcast %221 : vector<4x1xf32> to vector<4x32xf32>
      %230 = arith.subf %213, %229 : vector<4x32xf32>
      %cst_138 = arith.constant 9.99999974E-6 : f32
      %231 = vector.broadcast %cst_138 : f32 to vector<4x1xf32>
      %232 = arith.addf %228, %231 : vector<4x1xf32>
      %233 = math.rsqrt %232 : vector<4x1xf32>
      %234 = vector.broadcast %233 : vector<4x1xf32> to vector<4x32xf32>
      %235 = arith.mulf %230, %234 : vector<4x32xf32>
      %236 = vector.broadcast %215 : vector<1x32xf32> to vector<4x32xf32>
      %237 = arith.mulf %235, %236 : vector<4x32xf32>
      %238 = vector.broadcast %217 : vector<1x32xf32> to vector<4x32xf32>
      %239 = arith.addf %237, %238 : vector<4x32xf32>
      %240 = arith.truncf %239 : vector<4x32xf32> to vector<4x32xbf16>
      %c0_139 = arith.constant 0 : index
      %c0_140 = arith.constant 0 : index
      %c0_141 = arith.constant 0 : index
      %241 = vector.load %arg22[%c0_139, %c0_140, %c0_141] : memref<2x32x64xbf16, #tpu.memory_space<vmem>>, vector<1x32x64xbf16>
      %242 = vector.shape_cast %241 : vector<1x32x64xbf16> to vector<32x64xbf16>
      %cst_142 = arith.constant dense<0.000000e+00> : vector<4x64xf32>
      %243 = tpu.matmul %240, %242, %cst_142 {dimension_numbers = #tpu.dot_dimension_numbers<[1], [0], [0], [1], [0, 0, 1, 1], [], []>} : vector<4x32xbf16>, vector<32x64xbf16>, vector<4x64xf32> -> vector<4x64xf32>
      %c0_143 = arith.constant 0 : index
      %c0_144 = arith.constant 0 : index
      %c0_145 = arith.constant 0 : index
      %244 = vector.load %arg23[%c0_143, %c0_144, %c0_145] : memref<2x1x64xf32, #tpu.memory_space<vmem>>, vector<1x1x64xf32>
      %245 = vector.shape_cast %244 : vector<1x1x64xf32> to vector<1x64xf32>
      %246 = vector.broadcast %245 : vector<1x64xf32> to vector<4x64xf32>
      %247 = arith.addf %243, %246 : vector<4x64xf32>
      %cst_146 = arith.constant 0.000000e+00 : f32
      %248 = vector.broadcast %cst_146 : f32 to vector<4x64xf32>
      %249 = arith.maximumf %247, %248 : vector<4x64xf32>
      %250 = arith.truncf %249 : vector<4x64xf32> to vector<4x64xbf16>
      %c0_147 = arith.constant 0 : index
      %c0_148 = arith.constant 0 : index
      %c0_149 = arith.constant 0 : index
      %251 = vector.load %arg24[%c0_147, %c0_148, %c0_149] : memref<2x64x32xbf16, #tpu.memory_space<vmem>>, vector<1x64x32xbf16>
      %252 = vector.shape_cast %251 : vector<1x64x32xbf16> to vector<64x32xbf16>
      %cst_150 = arith.constant dense<0.000000e+00> : vector<4x32xf32>
      %253 = tpu.matmul %250, %252, %cst_150 {dimension_numbers = #tpu.dot_dimension_numbers<[1], [0], [0], [1], [0, 0, 1, 1], [], []>} : vector<4x64xbf16>, vector<64x32xbf16>, vector<4x32xf32> -> vector<4x32xf32>
      %c0_151 = arith.constant 0 : index
      %c0_152 = arith.constant 0 : index
      %c0_153 = arith.constant 0 : index
      %254 = vector.load %arg25[%c0_151, %c0_152, %c0_153] : memref<2x1x32xf32, #tpu.memory_space<vmem>>, vector<1x1x32xf32>
      %255 = vector.shape_cast %254 : vector<1x1x32xf32> to vector<1x32xf32>
      %256 = vector.broadcast %255 : vector<1x32xf32> to vector<4x32xf32>
      %257 = arith.addf %253, %256 : vector<4x32xf32>
      %258 = arith.addf %239, %257 : vector<4x32xf32>
      %c0_154 = arith.constant 0 : index
      %c2 = arith.constant 2 : index
      %c0_155 = arith.constant 0 : index
      %c0_156 = arith.constant 0 : index
      %259 = vector.load %arg26[%c0_154, %c2, %c0_155, %c0_156] : memref<2x3x1x32xf32, #tpu.memory_space<vmem>>, vector<1x1x1x32xf32>
      %260 = vector.shape_cast %259 : vector<1x1x1x32xf32> to vector<1x32xf32>
      %c0_157 = arith.constant 0 : index
      %c2_158 = arith.constant 2 : index
      %c0_159 = arith.constant 0 : index
      %c0_160 = arith.constant 0 : index
      %261 = vector.load %arg27[%c0_157, %c2_158, %c0_159, %c0_160] : memref<2x3x1x32xf32, #tpu.memory_space<vmem>>, vector<1x1x1x32xf32>
      %262 = vector.shape_cast %261 : vector<1x1x1x32xf32> to vector<1x32xf32>
      %cst_161 = arith.constant dense<0.000000e+00> : vector<4xf32>
      %263 = vector.multi_reduction <add>, %258, %cst_161 [1] : vector<4x32xf32> to vector<4xf32>
      %264 = vector.shape_cast %263 : vector<4xf32> to vector<4x1xf32>
      %cst_162 = arith.constant 3.200000e+01 : f32
      %265 = vector.broadcast %cst_162 : f32 to vector<4x1xf32>
      %266 = arith.divf %264, %265 : vector<4x1xf32>
      %267 = vector.broadcast %266 : vector<4x1xf32> to vector<4x32xf32>
      %268 = arith.subf %258, %267 : vector<4x32xf32>
      %269 = arith.mulf %268, %268 : vector<4x32xf32>
      %cst_163 = arith.constant dense<0.000000e+00> : vector<4xf32>
      %270 = vector.multi_reduction <add>, %269, %cst_163 [1] : vector<4x32xf32> to vector<4xf32>
      %271 = vector.shape_cast %270 : vector<4xf32> to vector<4x1xf32>
      %cst_164 = arith.constant 3.200000e+01 : f32
      %272 = vector.broadcast %cst_164 : f32 to vector<4x1xf32>
      %273 = arith.divf %271, %272 : vector<4x1xf32>
      %274 = vector.broadcast %266 : vector<4x1xf32> to vector<4x32xf32>
      %275 = arith.subf %258, %274 : vector<4x32xf32>
      %cst_165 = arith.constant 9.99999974E-6 : f32
      %276 = vector.broadcast %cst_165 : f32 to vector<4x1xf32>
      %277 = arith.addf %273, %276 : vector<4x1xf32>
      %278 = math.rsqrt %277 : vector<4x1xf32>
      %279 = vector.broadcast %278 : vector<4x1xf32> to vector<4x32xf32>
      %280 = arith.mulf %275, %279 : vector<4x32xf32>
      %281 = vector.broadcast %260 : vector<1x32xf32> to vector<4x32xf32>
      %282 = arith.mulf %280, %281 : vector<4x32xf32>
      %283 = vector.broadcast %262 : vector<1x32xf32> to vector<4x32xf32>
      %284 = arith.addf %282, %283 : vector<4x32xf32>
      %285 = arith.truncf %284 : vector<4x32xf32> to vector<4x32xbf16>
      %c1_166 = arith.constant 1 : index
      %c0_167 = arith.constant 0 : index
      %c0_168 = arith.constant 0 : index
      %286 = vector.load %arg12[%c1_166, %c0_167, %c0_168] : memref<2x32x96xbf16, #tpu.memory_space<vmem>>, vector<1x32x96xbf16>
      %287 = vector.shape_cast %286 : vector<1x32x96xbf16> to vector<32x96xbf16>
      %cst_169 = arith.constant dense<0.000000e+00> : vector<4x96xf32>
      %288 = tpu.matmul %285, %287, %cst_169 {dimension_numbers = #tpu.dot_dimension_numbers<[1], [0], [0], [1], [0, 0, 1, 1], [], []>} : vector<4x32xbf16>, vector<32x96xbf16>, vector<4x96xf32> -> vector<4x96xf32>
      %c1_170 = arith.constant 1 : index
      %c0_171 = arith.constant 0 : index
      %c0_172 = arith.constant 0 : index
      %289 = vector.load %arg13[%c1_170, %c0_171, %c0_172] : memref<2x1x96xf32, #tpu.memory_space<vmem>>, vector<1x1x96xf32>
      %290 = vector.shape_cast %289 : vector<1x1x96xf32> to vector<1x96xf32>
      %291 = vector.broadcast %290 : vector<1x96xf32> to vector<4x96xf32>
      %292 = arith.addf %288, %291 : vector<4x96xf32>
      %293 = arith.truncf %292 : vector<4x96xf32> to vector<4x96xbf16>
      %294 = vector.extract_strided_slice %293 {offsets = [0, 0], sizes = [4, 32], strides = [1, 1]} : vector<4x96xbf16> to vector<4x32xbf16>
      %295 = vector.extract_strided_slice %293 {offsets = [0, 32], sizes = [4, 32], strides = [1, 1]} : vector<4x96xbf16> to vector<4x32xbf16>
      %296 = vector.extract_strided_slice %293 {offsets = [0, 64], sizes = [4, 32], strides = [1, 1]} : vector<4x96xbf16> to vector<4x32xbf16>
      %c1_173 = arith.constant 1 : index
      %c0_174 = arith.constant 0 : index
      %c0_175 = arith.constant 0 : index
      %297 = vector.load %arg14[%c1_173, %c0_174, %c0_175] : memref<2x32x32xbf16, #tpu.memory_space<vmem>>, vector<1x32x32xbf16>
      %298 = vector.shape_cast %297 : vector<1x32x32xbf16> to vector<32x32xbf16>
      %299 = vector.extract_strided_slice %294 {offsets = [0, 0], sizes = [4, 16], strides = [1, 1]} : vector<4x32xbf16> to vector<4x16xbf16>
      %300 = vector.extract_strided_slice %295 {offsets = [0, 0], sizes = [4, 16], strides = [1, 1]} : vector<4x32xbf16> to vector<4x16xbf16>
      %cst_176 = arith.constant dense<0.000000e+00> : vector<4x4xf32>
      %301 = tpu.matmul %299, %300, %cst_176 {dimension_numbers = #tpu.dot_dimension_numbers<[1], [1], [0], [0], [0, 0, 1, 0], [], []>} : vector<4x16xbf16>, vector<4x16xbf16>, vector<4x4xf32> -> vector<4x4xf32>
      %cst_177 = arith.constant 2.500000e-01 : f32
      %302 = vector.broadcast %cst_177 : f32 to vector<4x4xf32>
      %303 = arith.mulf %301, %302 : vector<4x4xf32>
      %304 = arith.addf %303, %51 : vector<4x4xf32>
      %cst_178 = arith.constant dense<0xFF800000> : vector<4xf32>
      %305 = vector.multi_reduction <maximumf>, %304, %cst_178 [1] : vector<4x4xf32> to vector<4xf32>
      %306 = vector.shape_cast %305 : vector<4xf32> to vector<4x1xf32>
      %307 = vector.broadcast %306 : vector<4x1xf32> to vector<4x4xf32>
      %308 = arith.subf %304, %307 : vector<4x4xf32>
      %309 = math.exp %308 : vector<4x4xf32>
      %cst_179 = arith.constant dense<0.000000e+00> : vector<4xf32>
      %310 = vector.multi_reduction <add>, %309, %cst_179 [1] : vector<4x4xf32> to vector<4xf32>
      %311 = vector.shape_cast %310 : vector<4xf32> to vector<4x1xf32>
      %312 = tpu.reciprocal %311 {approx = true} : vector<4x1xf32> -> vector<4x1xf32>
      %313 = vector.broadcast %312 : vector<4x1xf32> to vector<4x4xf32>
      %314 = arith.mulf %309, %313 : vector<4x4xf32>
      %315 = arith.truncf %314 : vector<4x4xf32> to vector<4x4xbf16>
      %316 = vector.extract_strided_slice %296 {offsets = [0, 0], sizes = [4, 16], strides = [1, 1]} : vector<4x32xbf16> to vector<4x16xbf16>
      %cst_180 = arith.constant dense<0.000000e+00> : vector<4x16xf32>
      %317 = tpu.matmul %315, %316, %cst_180 {dimension_numbers = #tpu.dot_dimension_numbers<[1], [0], [0], [1], [0, 0, 1, 1], [], []>} : vector<4x4xbf16>, vector<4x16xbf16>, vector<4x16xf32> -> vector<4x16xf32>
      %318 = vector.extract_strided_slice %294 {offsets = [0, 16], sizes = [4, 16], strides = [1, 1]} : vector<4x32xbf16> to vector<4x16xbf16>
      %319 = vector.extract_strided_slice %295 {offsets = [0, 16], sizes = [4, 16], strides = [1, 1]} : vector<4x32xbf16> to vector<4x16xbf16>
      %cst_181 = arith.constant dense<0.000000e+00> : vector<4x4xf32>
      %320 = tpu.matmul %318, %319, %cst_181 {dimension_numbers = #tpu.dot_dimension_numbers<[1], [1], [0], [0], [0, 0, 1, 0], [], []>} : vector<4x16xbf16>, vector<4x16xbf16>, vector<4x4xf32> -> vector<4x4xf32>
      %cst_182 = arith.constant 2.500000e-01 : f32
      %321 = vector.broadcast %cst_182 : f32 to vector<4x4xf32>
      %322 = arith.mulf %320, %321 : vector<4x4xf32>
      %323 = arith.addf %322, %51 : vector<4x4xf32>
      %cst_183 = arith.constant dense<0xFF800000> : vector<4xf32>
      %324 = vector.multi_reduction <maximumf>, %323, %cst_183 [1] : vector<4x4xf32> to vector<4xf32>
      %325 = vector.shape_cast %324 : vector<4xf32> to vector<4x1xf32>
      %326 = vector.broadcast %325 : vector<4x1xf32> to vector<4x4xf32>
      %327 = arith.subf %323, %326 : vector<4x4xf32>
      %328 = math.exp %327 : vector<4x4xf32>
      %cst_184 = arith.constant dense<0.000000e+00> : vector<4xf32>
      %329 = vector.multi_reduction <add>, %328, %cst_184 [1] : vector<4x4xf32> to vector<4xf32>
      %330 = vector.shape_cast %329 : vector<4xf32> to vector<4x1xf32>
      %331 = tpu.reciprocal %330 {approx = true} : vector<4x1xf32> -> vector<4x1xf32>
      %332 = vector.broadcast %331 : vector<4x1xf32> to vector<4x4xf32>
      %333 = arith.mulf %328, %332 : vector<4x4xf32>
      %334 = arith.truncf %333 : vector<4x4xf32> to vector<4x4xbf16>
      %335 = vector.extract_strided_slice %296 {offsets = [0, 16], sizes = [4, 16], strides = [1, 1]} : vector<4x32xbf16> to vector<4x16xbf16>
      %cst_185 = arith.constant dense<0.000000e+00> : vector<4x16xf32>
      %336 = tpu.matmul %334, %335, %cst_185 {dimension_numbers = #tpu.dot_dimension_numbers<[1], [0], [0], [1], [0, 0, 1, 1], [], []>} : vector<4x4xbf16>, vector<4x16xbf16>, vector<4x16xf32> -> vector<4x16xf32>
      %337 = tpu.concatenate %317, %336 in 1 : vector<4x16xf32>, vector<4x16xf32> -> vector<4x32xf32>
      %338 = arith.truncf %337 : vector<4x32xf32> to vector<4x32xbf16>
      %cst_186 = arith.constant dense<0.000000e+00> : vector<4x32xf32>
      %339 = tpu.matmul %338, %298, %cst_186 {dimension_numbers = #tpu.dot_dimension_numbers<[1], [0], [0], [1], [0, 0, 1, 1], [], []>} : vector<4x32xbf16>, vector<32x32xbf16>, vector<4x32xf32> -> vector<4x32xf32>
      %340 = arith.addf %284, %339 : vector<4x32xf32>
      %c1_187 = arith.constant 1 : index
      %c0_188 = arith.constant 0 : index
      %c0_189 = arith.constant 0 : index
      %341 = vector.load %arg15[%c1_187, %c0_188, %c0_189] : memref<2x1x32xf32, #tpu.memory_space<vmem>>, vector<1x1x32xf32>
      %342 = vector.shape_cast %341 : vector<1x1x32xf32> to vector<1x32xf32>
      %343 = vector.broadcast %342 : vector<1x32xf32> to vector<4x32xf32>
      %344 = arith.addf %340, %343 : vector<4x32xf32>
      %c1_190 = arith.constant 1 : index
      %c0_191 = arith.constant 0 : index
      %c0_192 = arith.constant 0 : index
      %c0_193 = arith.constant 0 : index
      %345 = vector.load %arg26[%c1_190, %c0_191, %c0_192, %c0_193] : memref<2x3x1x32xf32, #tpu.memory_space<vmem>>, vector<1x1x1x32xf32>
      %346 = vector.shape_cast %345 : vector<1x1x1x32xf32> to vector<1x32xf32>
      %c1_194 = arith.constant 1 : index
      %c0_195 = arith.constant 0 : index
      %c0_196 = arith.constant 0 : index
      %c0_197 = arith.constant 0 : index
      %347 = vector.load %arg27[%c1_194, %c0_195, %c0_196, %c0_197] : memref<2x3x1x32xf32, #tpu.memory_space<vmem>>, vector<1x1x1x32xf32>
      %348 = vector.shape_cast %347 : vector<1x1x1x32xf32> to vector<1x32xf32>
      %cst_198 = arith.constant dense<0.000000e+00> : vector<4xf32>
      %349 = vector.multi_reduction <add>, %344, %cst_198 [1] : vector<4x32xf32> to vector<4xf32>
      %350 = vector.shape_cast %349 : vector<4xf32> to vector<4x1xf32>
      %cst_199 = arith.constant 3.200000e+01 : f32
      %351 = vector.broadcast %cst_199 : f32 to vector<4x1xf32>
      %352 = arith.divf %350, %351 : vector<4x1xf32>
      %353 = vector.broadcast %352 : vector<4x1xf32> to vector<4x32xf32>
      %354 = arith.subf %344, %353 : vector<4x32xf32>
      %355 = arith.mulf %354, %354 : vector<4x32xf32>
      %cst_200 = arith.constant dense<0.000000e+00> : vector<4xf32>
      %356 = vector.multi_reduction <add>, %355, %cst_200 [1] : vector<4x32xf32> to vector<4xf32>
      %357 = vector.shape_cast %356 : vector<4xf32> to vector<4x1xf32>
      %cst_201 = arith.constant 3.200000e+01 : f32
      %358 = vector.broadcast %cst_201 : f32 to vector<4x1xf32>
      %359 = arith.divf %357, %358 : vector<4x1xf32>
      %360 = vector.broadcast %352 : vector<4x1xf32> to vector<4x32xf32>
      %361 = arith.subf %344, %360 : vector<4x32xf32>
      %cst_202 = arith.constant 9.99999974E-6 : f32
      %362 = vector.broadcast %cst_202 : f32 to vector<4x1xf32>
      %363 = arith.addf %359, %362 : vector<4x1xf32>
      %364 = math.rsqrt %363 : vector<4x1xf32>
      %365 = vector.broadcast %364 : vector<4x1xf32> to vector<4x32xf32>
      %366 = arith.mulf %361, %365 : vector<4x32xf32>
      %367 = vector.broadcast %346 : vector<1x32xf32> to vector<4x32xf32>
      %368 = arith.mulf %366, %367 : vector<4x32xf32>
      %369 = vector.broadcast %348 : vector<1x32xf32> to vector<4x32xf32>
      %370 = arith.addf %368, %369 : vector<4x32xf32>
      %371 = arith.truncf %370 : vector<4x32xf32> to vector<4x32xbf16>
      %c1_203 = arith.constant 1 : index
      %c0_204 = arith.constant 0 : index
      %c0_205 = arith.constant 0 : index
      %372 = vector.load %arg16[%c1_203, %c0_204, %c0_205] : memref<2x32x32xbf16, #tpu.memory_space<vmem>>, vector<1x32x32xbf16>
      %373 = vector.shape_cast %372 : vector<1x32x32xbf16> to vector<32x32xbf16>
      %cst_206 = arith.constant dense<0.000000e+00> : vector<4x32xf32>
      %374 = tpu.matmul %371, %373, %cst_206 {dimension_numbers = #tpu.dot_dimension_numbers<[1], [0], [0], [1], [0, 0, 1, 1], [], []>} : vector<4x32xbf16>, vector<32x32xbf16>, vector<4x32xf32> -> vector<4x32xf32>
      %c1_207 = arith.constant 1 : index
      %c0_208 = arith.constant 0 : index
      %c0_209 = arith.constant 0 : index
      %375 = vector.load %arg17[%c1_207, %c0_208, %c0_209] : memref<2x1x32xf32, #tpu.memory_space<vmem>>, vector<1x1x32xf32>
      %376 = vector.shape_cast %375 : vector<1x1x32xf32> to vector<1x32xf32>
      %377 = vector.broadcast %376 : vector<1x32xf32> to vector<4x32xf32>
      %378 = arith.addf %374, %377 : vector<4x32xf32>
      %379 = arith.truncf %378 : vector<4x32xf32> to vector<4x32xbf16>
      %c1_210 = arith.constant 1 : index
      %c0_211 = arith.constant 0 : index
      %c0_212 = arith.constant 0 : index
      %380 = vector.load %arg32[%c1_210, %c0_211, %c0_212] : memref<2x32x8xbf16, #tpu.memory_space<vmem>>, vector<1x32x8xbf16>
      %381 = vector.shape_cast %380 : vector<1x32x8xbf16> to vector<32x8xbf16>
      %c1_213 = arith.constant 1 : index
      %c0_214 = arith.constant 0 : index
      %c0_215 = arith.constant 0 : index
      %382 = vector.load %arg33[%c1_213, %c0_214, %c0_215] : memref<2x8x32xbf16, #tpu.memory_space<vmem>>, vector<1x8x32xbf16>
      %383 = vector.shape_cast %382 : vector<1x8x32xbf16> to vector<8x32xbf16>
      %c1_216 = arith.constant 1 : index
      %c0_217 = arith.constant 0 : index
      %c0_218 = arith.constant 0 : index
      %384 = vector.load %arg20[%c1_216, %c0_217, %c0_218] : memref<2x32x32xbf16, #tpu.memory_space<vmem>>, vector<1x32x32xbf16>
      %385 = vector.shape_cast %384 : vector<1x32x32xbf16> to vector<32x32xbf16>
      %386 = vector.extract_strided_slice %379 {offsets = [0, 0], sizes = [4, 16], strides = [1, 1]} : vector<4x32xbf16> to vector<4x16xbf16>
      %387 = vector.extract_strided_slice %381 {offsets = [0, 0], sizes = [16, 8], strides = [1, 1]} : vector<32x8xbf16> to vector<16x8xbf16>
      %cst_219 = arith.constant dense<0.000000e+00> : vector<4x8xf32>
      %388 = tpu.matmul %386, %387, %cst_219 {dimension_numbers = #tpu.dot_dimension_numbers<[1], [0], [0], [1], [0, 0, 1, 1], [], []>} : vector<4x16xbf16>, vector<16x8xbf16>, vector<4x8xf32> -> vector<4x8xf32>
      %cst_220 = arith.constant 2.500000e-01 : f32
      %389 = vector.broadcast %cst_220 : f32 to vector<4x8xf32>
      %390 = arith.mulf %388, %389 : vector<4x8xf32>
      %391 = arith.addf %390, %53 : vector<4x8xf32>
      %cst_221 = arith.constant dense<0xFF800000> : vector<4xf32>
      %392 = vector.multi_reduction <maximumf>, %391, %cst_221 [1] : vector<4x8xf32> to vector<4xf32>
      %393 = vector.shape_cast %392 : vector<4xf32> to vector<4x1xf32>
      %394 = vector.broadcast %393 : vector<4x1xf32> to vector<4x8xf32>
      %395 = arith.subf %391, %394 : vector<4x8xf32>
      %396 = math.exp %395 : vector<4x8xf32>
      %cst_222 = arith.constant dense<0.000000e+00> : vector<4xf32>
      %397 = vector.multi_reduction <add>, %396, %cst_222 [1] : vector<4x8xf32> to vector<4xf32>
      %398 = vector.shape_cast %397 : vector<4xf32> to vector<4x1xf32>
      %399 = vector.broadcast %398 : vector<4x1xf32> to vector<4x8xf32>
      %400 = arith.divf %396, %399 : vector<4x8xf32>
      %401 = arith.truncf %400 : vector<4x8xf32> to vector<4x8xbf16>
      %402 = vector.extract_strided_slice %383 {offsets = [0, 0], sizes = [8, 16], strides = [1, 1]} : vector<8x32xbf16> to vector<8x16xbf16>
      %cst_223 = arith.constant dense<0.000000e+00> : vector<4x16xf32>
      %403 = tpu.matmul %401, %402, %cst_223 {dimension_numbers = #tpu.dot_dimension_numbers<[1], [0], [0], [1], [0, 0, 1, 1], [], []>} : vector<4x8xbf16>, vector<8x16xbf16>, vector<4x16xf32> -> vector<4x16xf32>
      %404 = vector.extract_strided_slice %379 {offsets = [0, 16], sizes = [4, 16], strides = [1, 1]} : vector<4x32xbf16> to vector<4x16xbf16>
      %405 = vector.extract_strided_slice %381 {offsets = [16, 0], sizes = [16, 8], strides = [1, 1]} : vector<32x8xbf16> to vector<16x8xbf16>
      %cst_224 = arith.constant dense<0.000000e+00> : vector<4x8xf32>
      %406 = tpu.matmul %404, %405, %cst_224 {dimension_numbers = #tpu.dot_dimension_numbers<[1], [0], [0], [1], [0, 0, 1, 1], [], []>} : vector<4x16xbf16>, vector<16x8xbf16>, vector<4x8xf32> -> vector<4x8xf32>
      %cst_225 = arith.constant 2.500000e-01 : f32
      %407 = vector.broadcast %cst_225 : f32 to vector<4x8xf32>
      %408 = arith.mulf %406, %407 : vector<4x8xf32>
      %409 = arith.addf %408, %53 : vector<4x8xf32>
      %cst_226 = arith.constant dense<0xFF800000> : vector<4xf32>
      %410 = vector.multi_reduction <maximumf>, %409, %cst_226 [1] : vector<4x8xf32> to vector<4xf32>
      %411 = vector.shape_cast %410 : vector<4xf32> to vector<4x1xf32>
      %412 = vector.broadcast %411 : vector<4x1xf32> to vector<4x8xf32>
      %413 = arith.subf %409, %412 : vector<4x8xf32>
      %414 = math.exp %413 : vector<4x8xf32>
      %cst_227 = arith.constant dense<0.000000e+00> : vector<4xf32>
      %415 = vector.multi_reduction <add>, %414, %cst_227 [1] : vector<4x8xf32> to vector<4xf32>
      %416 = vector.shape_cast %415 : vector<4xf32> to vector<4x1xf32>
      %417 = vector.broadcast %416 : vector<4x1xf32> to vector<4x8xf32>
      %418 = arith.divf %414, %417 : vector<4x8xf32>
      %419 = arith.addf %400, %418 : vector<4x8xf32>
      %420 = arith.truncf %418 : vector<4x8xf32> to vector<4x8xbf16>
      %421 = vector.extract_strided_slice %383 {offsets = [0, 16], sizes = [8, 16], strides = [1, 1]} : vector<8x32xbf16> to vector<8x16xbf16>
      %cst_228 = arith.constant dense<0.000000e+00> : vector<4x16xf32>
      %422 = tpu.matmul %420, %421, %cst_228 {dimension_numbers = #tpu.dot_dimension_numbers<[1], [0], [0], [1], [0, 0, 1, 1], [], []>} : vector<4x8xbf16>, vector<8x16xbf16>, vector<4x16xf32> -> vector<4x16xf32>
      %423 = tpu.concatenate %403, %422 in 1 : vector<4x16xf32>, vector<4x16xf32> -> vector<4x32xf32>
      %424 = arith.truncf %423 : vector<4x32xf32> to vector<4x32xbf16>
      %cst_229 = arith.constant dense<0.000000e+00> : vector<4x32xf32>
      %425 = tpu.matmul %424, %385, %cst_229 {dimension_numbers = #tpu.dot_dimension_numbers<[1], [0], [0], [1], [0, 0, 1, 1], [], []>} : vector<4x32xbf16>, vector<32x32xbf16>, vector<4x32xf32> -> vector<4x32xf32>
      %cst_230 = arith.constant 5.000000e-01 : f32
      %426 = vector.broadcast %cst_230 : f32 to vector<4x8xf32>
      %427 = arith.mulf %419, %426 : vector<4x8xf32>
      %c0_231 = arith.constant 0 : index
      %428 = arith.index_cast %56 : i32 to index
      %c0_232 = arith.constant 0 : index
      %c0_233 = arith.constant 0 : index
      %429 = vector.load %arg29[%c0_231, %428, %c0_232, %c0_233] : memref<1x3x4x8xf32, #tpu.memory_space<vmem>>, vector<1x1x4x8xf32>
      %430 = vector.shape_cast %429 : vector<1x1x4x8xf32> to vector<4x8xf32>
      %431 = vector.shape_cast %427 : vector<4x8xf32> to vector<1x1x4x8xf32>
      tpu.vector_store %arg29[%c0_231, %428, %c0_232, %c0_233], %431 {strides = array<i32>} : memref<1x3x4x8xf32, #tpu.memory_space<vmem>>, vector<1x1x4x8xf32>,
      %432 = arith.addf %370, %425 : vector<4x32xf32>
      %c1_234 = arith.constant 1 : index
      %c0_235 = arith.constant 0 : index
      %c0_236 = arith.constant 0 : index
      %433 = vector.load %arg21[%c1_234, %c0_235, %c0_236] : memref<2x1x32xf32, #tpu.memory_space<vmem>>, vector<1x1x32xf32>
      %434 = vector.shape_cast %433 : vector<1x1x32xf32> to vector<1x32xf32>
      %435 = vector.broadcast %434 : vector<1x32xf32> to vector<4x32xf32>
      %436 = arith.addf %432, %435 : vector<4x32xf32>
      %c1_237 = arith.constant 1 : index
      %c1_238 = arith.constant 1 : index
      %c0_239 = arith.constant 0 : index
      %c0_240 = arith.constant 0 : index
      %437 = vector.load %arg26[%c1_237, %c1_238, %c0_239, %c0_240] : memref<2x3x1x32xf32, #tpu.memory_space<vmem>>, vector<1x1x1x32xf32>
      %438 = vector.shape_cast %437 : vector<1x1x1x32xf32> to vector<1x32xf32>
      %c1_241 = arith.constant 1 : index
      %c1_242 = arith.constant 1 : index
      %c0_243 = arith.constant 0 : index
      %c0_244 = arith.constant 0 : index
      %439 = vector.load %arg27[%c1_241, %c1_242, %c0_243, %c0_244] : memref<2x3x1x32xf32, #tpu.memory_space<vmem>>, vector<1x1x1x32xf32>
      %440 = vector.shape_cast %439 : vector<1x1x1x32xf32> to vector<1x32xf32>
      %cst_245 = arith.constant dense<0.000000e+00> : vector<4xf32>
      %441 = vector.multi_reduction <add>, %436, %cst_245 [1] : vector<4x32xf32> to vector<4xf32>
      %442 = vector.shape_cast %441 : vector<4xf32> to vector<4x1xf32>
      %cst_246 = arith.constant 3.200000e+01 : f32
      %443 = vector.broadcast %cst_246 : f32 to vector<4x1xf32>
      %444 = arith.divf %442, %443 : vector<4x1xf32>
      %445 = vector.broadcast %444 : vector<4x1xf32> to vector<4x32xf32>
      %446 = arith.subf %436, %445 : vector<4x32xf32>
      %447 = arith.mulf %446, %446 : vector<4x32xf32>
      %cst_247 = arith.constant dense<0.000000e+00> : vector<4xf32>
      %448 = vector.multi_reduction <add>, %447, %cst_247 [1] : vector<4x32xf32> to vector<4xf32>
      %449 = vector.shape_cast %448 : vector<4xf32> to vector<4x1xf32>
      %cst_248 = arith.constant 3.200000e+01 : f32
      %450 = vector.broadcast %cst_248 : f32 to vector<4x1xf32>
      %451 = arith.divf %449, %450 : vector<4x1xf32>
      %452 = vector.broadcast %444 : vector<4x1xf32> to vector<4x32xf32>
      %453 = arith.subf %436, %452 : vector<4x32xf32>
      %cst_249 = arith.constant 9.99999974E-6 : f32
      %454 = vector.broadcast %cst_249 : f32 to vector<4x1xf32>
      %455 = arith.addf %451, %454 : vector<4x1xf32>
      %456 = math.rsqrt %455 : vector<4x1xf32>
      %457 = vector.broadcast %456 : vector<4x1xf32> to vector<4x32xf32>
      %458 = arith.mulf %453, %457 : vector<4x32xf32>
      %459 = vector.broadcast %438 : vector<1x32xf32> to vector<4x32xf32>
      %460 = arith.mulf %458, %459 : vector<4x32xf32>
      %461 = vector.broadcast %440 : vector<1x32xf32> to vector<4x32xf32>
      %462 = arith.addf %460, %461 : vector<4x32xf32>
      %463 = arith.truncf %462 : vector<4x32xf32> to vector<4x32xbf16>
      %c1_250 = arith.constant 1 : index
      %c0_251 = arith.constant 0 : index
      %c0_252 = arith.constant 0 : index
      %464 = vector.load %arg22[%c1_250, %c0_251, %c0_252] : memref<2x32x64xbf16, #tpu.memory_space<vmem>>, vector<1x32x64xbf16>
      %465 = vector.shape_cast %464 : vector<1x32x64xbf16> to vector<32x64xbf16>
      %cst_253 = arith.constant dense<0.000000e+00> : vector<4x64xf32>
      %466 = tpu.matmul %463, %465, %cst_253 {dimension_numbers = #tpu.dot_dimension_numbers<[1], [0], [0], [1], [0, 0, 1, 1], [], []>} : vector<4x32xbf16>, vector<32x64xbf16>, vector<4x64xf32> -> vector<4x64xf32>
      %c1_254 = arith.constant 1 : index
      %c0_255 = arith.constant 0 : index
      %c0_256 = arith.constant 0 : index
      %467 = vector.load %arg23[%c1_254, %c0_255, %c0_256] : memref<2x1x64xf32, #tpu.memory_space<vmem>>, vector<1x1x64xf32>
      %468 = vector.shape_cast %467 : vector<1x1x64xf32> to vector<1x64xf32>
      %469 = vector.broadcast %468 : vector<1x64xf32> to vector<4x64xf32>
      %470 = arith.addf %466, %469 : vector<4x64xf32>
      %cst_257 = arith.constant 0.000000e+00 : f32
      %471 = vector.broadcast %cst_257 : f32 to vector<4x64xf32>
      %472 = arith.maximumf %470, %471 : vector<4x64xf32>
      %473 = arith.truncf %472 : vector<4x64xf32> to vector<4x64xbf16>
      %c1_258 = arith.constant 1 : index
      %c0_259 = arith.constant 0 : index
      %c0_260 = arith.constant 0 : index
      %474 = vector.load %arg24[%c1_258, %c0_259, %c0_260] : memref<2x64x32xbf16, #tpu.memory_space<vmem>>, vector<1x64x32xbf16>
      %475 = vector.shape_cast %474 : vector<1x64x32xbf16> to vector<64x32xbf16>
      %cst_261 = arith.constant dense<0.000000e+00> : vector<4x32xf32>
      %476 = tpu.matmul %473, %475, %cst_261 {dimension_numbers = #tpu.dot_dimension_numbers<[1], [0], [0], [1], [0, 0, 1, 1], [], []>} : vector<4x64xbf16>, vector<64x32xbf16>, vector<4x32xf32> -> vector<4x32xf32>
      %c1_262 = arith.constant 1 : index
      %c0_263 = arith.constant 0 : index
      %c0_264 = arith.constant 0 : index
      %477 = vector.load %arg25[%c1_262, %c0_263, %c0_264] : memref<2x1x32xf32, #tpu.memory_space<vmem>>, vector<1x1x32xf32>
      %478 = vector.shape_cast %477 : vector<1x1x32xf32> to vector<1x32xf32>
      %479 = vector.broadcast %478 : vector<1x32xf32> to vector<4x32xf32>
      %480 = arith.addf %476, %479 : vector<4x32xf32>
      %481 = arith.addf %462, %480 : vector<4x32xf32>
      %c1_265 = arith.constant 1 : index
      %c2_266 = arith.constant 2 : index
      %c0_267 = arith.constant 0 : index
      %c0_268 = arith.constant 0 : index
      %482 = vector.load %arg26[%c1_265, %c2_266, %c0_267, %c0_268] : memref<2x3x1x32xf32, #tpu.memory_space<vmem>>, vector<1x1x1x32xf32>
      %483 = vector.shape_cast %482 : vector<1x1x1x32xf32> to vector<1x32xf32>
      %c1_269 = arith.constant 1 : index
      %c2_270 = arith.constant 2 : index
      %c0_271 = arith.constant 0 : index
      %c0_272 = arith.constant 0 : index
      %484 = vector.load %arg27[%c1_269, %c2_270, %c0_271, %c0_272] : memref<2x3x1x32xf32, #tpu.memory_space<vmem>>, vector<1x1x1x32xf32>
      %485 = vector.shape_cast %484 : vector<1x1x1x32xf32> to vector<1x32xf32>
      %cst_273 = arith.constant dense<0.000000e+00> : vector<4xf32>
      %486 = vector.multi_reduction <add>, %481, %cst_273 [1] : vector<4x32xf32> to vector<4xf32>
      %487 = vector.shape_cast %486 : vector<4xf32> to vector<4x1xf32>
      %cst_274 = arith.constant 3.200000e+01 : f32
      %488 = vector.broadcast %cst_274 : f32 to vector<4x1xf32>
      %489 = arith.divf %487, %488 : vector<4x1xf32>
      %490 = vector.broadcast %489 : vector<4x1xf32> to vector<4x32xf32>
      %491 = arith.subf %481, %490 : vector<4x32xf32>
      %492 = arith.mulf %491, %491 : vector<4x32xf32>
      %cst_275 = arith.constant dense<0.000000e+00> : vector<4xf32>
      %493 = vector.multi_reduction <add>, %492, %cst_275 [1] : vector<4x32xf32> to vector<4xf32>
      %494 = vector.shape_cast %493 : vector<4xf32> to vector<4x1xf32>
      %cst_276 = arith.constant 3.200000e+01 : f32
      %495 = vector.broadcast %cst_276 : f32 to vector<4x1xf32>
      %496 = arith.divf %494, %495 : vector<4x1xf32>
      %497 = vector.broadcast %489 : vector<4x1xf32> to vector<4x32xf32>
      %498 = arith.subf %481, %497 : vector<4x32xf32>
      %cst_277 = arith.constant 9.99999974E-6 : f32
      %499 = vector.broadcast %cst_277 : f32 to vector<4x1xf32>
      %500 = arith.addf %496, %499 : vector<4x1xf32>
      %501 = math.rsqrt %500 : vector<4x1xf32>
      %502 = vector.broadcast %501 : vector<4x1xf32> to vector<4x32xf32>
      %503 = arith.mulf %498, %502 : vector<4x32xf32>
      %504 = vector.broadcast %483 : vector<1x32xf32> to vector<4x32xf32>
      %505 = arith.mulf %503, %504 : vector<4x32xf32>
      %506 = vector.broadcast %485 : vector<1x32xf32> to vector<4x32xf32>
      %507 = arith.addf %505, %506 : vector<4x32xf32>
      %c0_278 = arith.constant 0 : index
      %c0_279 = arith.constant 0 : index
      %508 = vector.load %arg10[%c0_278, %c0_279] : memref<32x2xf32, #tpu.memory_space<vmem>>, vector<32x2xf32>
      %cst_280 = arith.constant dense<0.000000e+00> : vector<4x2xf32>
      %509 = tpu.matmul %507, %508, %cst_280 {dimension_numbers = #tpu.dot_dimension_numbers<[1], [0], [0], [1], [0, 0, 1, 1], [], []>} : vector<4x32xf32>, vector<32x2xf32>, vector<4x2xf32> -> vector<4x2xf32>
      %c0_281 = arith.constant 0 : index
      %c0_282 = arith.constant 0 : index
      %510 = vector.load %arg11[%c0_281, %c0_282] : memref<1x2xf32, #tpu.memory_space<vmem>>, vector<1x2xf32>
      %511 = vector.broadcast %510 : vector<1x2xf32> to vector<4x2xf32>
      %512 = arith.addf %509, %511 : vector<4x2xf32>
      %c0_283 = arith.constant 0 : index
      %c0_284 = arith.constant 0 : index
      %c0_285 = arith.constant 0 : index
      %513 = vector.load %arg1[%c0_283, %c0_284, %c0_285] : memref<1x4x2xf32, #tpu.memory_space<vmem>>, vector<1x4x2xf32>
      %514 = vector.shape_cast %513 : vector<1x4x2xf32> to vector<4x2xf32>
      %515 = arith.addf %512, %514 : vector<4x2xf32>
      %c0_286 = arith.constant 0 : index
      %c0_287 = arith.constant 0 : index
      %516 = vector.load %arg30[%c0_286, %c0_287] : memref<4x2xf32, #tpu.memory_space<vmem>>, vector<4x2xf32>
      tpu.vector_store %arg30[%c0_286, %c0_287], %515 {strides = array<i32>} : memref<4x2xf32, #tpu.memory_space<vmem>>, vector<4x2xf32>,
      %c0_288 = arith.constant 0 : index
      %517 = arith.index_cast %56 : i32 to index
      %c0_289 = arith.constant 0 : index
      %c0_290 = arith.constant 0 : index
      %518 = vector.load %arg28[%c0_288, %517, %c0_289, %c0_290] : memref<1x3x4x2xf32, #tpu.memory_space<vmem>>, vector<1x1x4x2xf32>
      %519 = vector.shape_cast %518 : vector<1x1x4x2xf32> to vector<4x2xf32>
      %520 = vector.shape_cast %515 : vector<4x2xf32> to vector<1x1x4x2xf32>
      tpu.vector_store %arg28[%c0_288, %517, %c0_289, %c0_290], %520 {strides = array<i32>} : memref<1x3x4x2xf32, #tpu.memory_space<vmem>>, vector<1x1x4x2xf32>,
    }
    %c3_i32_47 = arith.constant 3 : i32
    return
  }
  func.func @transform_0(%arg0: i32) -> (i32, i32, i32) {
    %c0_i32 = arith.constant 0 : i32
    %c0_i32_0 = arith.constant 0 : i32
    %c0_i32_1 = arith.constant 0 : i32
    return %arg0, %c0_i32, %c0_i32_0 : i32, i32, i32
  }
  func.func @transform_1(%arg0: i32) -> (i32, i32, i32) {
    %c0_i32 = arith.constant 0 : i32
    %c0_i32_0 = arith.constant 0 : i32
    %c0_i32_1 = arith.constant 0 : i32
    return %arg0, %c0_i32, %c0_i32_0 : i32, i32, i32
  }
  func.func @transform_2(%arg0: i32) -> (i32, i32, i32) {
    %c0_i32 = arith.constant 0 : i32
    %c0_i32_0 = arith.constant 0 : i32
    %c0_i32_1 = arith.constant 0 : i32
    return %arg0, %c0_i32, %c0_i32_0 : i32, i32, i32
  }
  func.func @transform_3(%arg0: i32) -> (i32, i32, i32) {
    %c0_i32 = arith.constant 0 : i32
    %c0_i32_0 = arith.constant 0 : i32
    %c0_i32_1 = arith.constant 0 : i32
    %c0_i32_2 = arith.constant 0 : i32
    return %c0_i32, %c0_i32_0, %c0_i32_1 : i32, i32, i32
  }
  func.func @transform_4(%arg0: i32) -> (i32, i32, i32) {
    %c0_i32 = arith.constant 0 : i32
    %c0_i32_0 = arith.constant 0 : i32
    %c0_i32_1 = arith.constant 0 : i32
    return %arg0, %c0_i32, %c0_i32_0 : i32, i32, i32
  }
  func.func @transform_5(%arg0: i32) -> (i32, i32, i32) {
    %c0_i32 = arith.constant 0 : i32
    %c0_i32_0 = arith.constant 0 : i32
    %c0_i32_1 = arith.constant 0 : i32
    return %arg0, %c0_i32, %c0_i32_0 : i32, i32, i32
  }
  func.func @transform_6(%arg0: i32) -> (i32, i32) {
    %c0_i32 = arith.constant 0 : i32
    %c0_i32_0 = arith.constant 0 : i32
    %c0_i32_1 = arith.constant 0 : i32
    return %c0_i32, %c0_i32_0 : i32, i32
  }
  func.func @transform_7(%arg0: i32) -> (i32, i32) {
    %c0_i32 = arith.constant 0 : i32
    %c0_i32_0 = arith.constant 0 : i32
    %c0_i32_1 = arith.constant 0 : i32
    return %c0_i32, %c0_i32_0 : i32, i32
  }
  func.func @transform_8(%arg0: i32) -> (i32, i32) {
    %c0_i32 = arith.constant 0 : i32
    %c0_i32_0 = arith.constant 0 : i32
    %c0_i32_1 = arith.constant 0 : i32
    return %c0_i32, %c0_i32_0 : i32, i32
  }
  func.func @transform_9(%arg0: i32) -> (i32, i32) {
    %c0_i32 = arith.constant 0 : i32
    %c0_i32_0 = arith.constant 0 : i32
    %c0_i32_1 = arith.constant 0 : i32
    return %c0_i32, %c0_i32_0 : i32, i32
  }
  func.func @transform_10(%arg0: i32) -> (i32, i32) {
    %c0_i32 = arith.constant 0 : i32
    %c0_i32_0 = arith.constant 0 : i32
    %c0_i32_1 = arith.constant 0 : i32
    return %c0_i32, %c0_i32_0 : i32, i32
  }
  func.func @transform_11(%arg0: i32) -> (i32, i32, i32) {
    %c0_i32 = arith.constant 0 : i32
    %c0_i32_0 = arith.constant 0 : i32
    %c0_i32_1 = arith.constant 0 : i32
    %c0_i32_2 = arith.constant 0 : i32
    return %c0_i32, %c0_i32_0, %c0_i32_1 : i32, i32, i32
  }
  func.func @transform_12(%arg0: i32) -> (i32, i32, i32) {
    %c0_i32 = arith.constant 0 : i32
    %c0_i32_0 = arith.constant 0 : i32
    %c0_i32_1 = arith.constant 0 : i32
    %c0_i32_2 = arith.constant 0 : i32
    return %c0_i32, %c0_i32_0, %c0_i32_1 : i32, i32, i32
  }
  func.func @transform_13(%arg0: i32) -> (i32, i32, i32) {
    %c0_i32 = arith.constant 0 : i32
    %c0_i32_0 = arith.constant 0 : i32
    %c0_i32_1 = arith.constant 0 : i32
    %c0_i32_2 = arith.constant 0 : i32
    return %c0_i32, %c0_i32_0, %c0_i32_1 : i32, i32, i32
  }
  func.func @transform_14(%arg0: i32) -> (i32, i32, i32) {
    %c0_i32 = arith.constant 0 : i32
    %c0_i32_0 = arith.constant 0 : i32
    %c0_i32_1 = arith.constant 0 : i32
    %c0_i32_2 = arith.constant 0 : i32
    return %c0_i32, %c0_i32_0, %c0_i32_1 : i32, i32, i32
  }
  func.func @transform_15(%arg0: i32) -> (i32, i32, i32) {
    %c0_i32 = arith.constant 0 : i32
    %c0_i32_0 = arith.constant 0 : i32
    %c0_i32_1 = arith.constant 0 : i32
    %c0_i32_2 = arith.constant 0 : i32
    return %c0_i32, %c0_i32_0, %c0_i32_1 : i32, i32, i32
  }
  func.func @transform_16(%arg0: i32) -> (i32, i32, i32) {
    %c0_i32 = arith.constant 0 : i32
    %c0_i32_0 = arith.constant 0 : i32
    %c0_i32_1 = arith.constant 0 : i32
    %c0_i32_2 = arith.constant 0 : i32
    return %c0_i32, %c0_i32_0, %c0_i32_1 : i32, i32, i32
  }
  func.func @transform_17(%arg0: i32) -> (i32, i32, i32) {
    %c0_i32 = arith.constant 0 : i32
    %c0_i32_0 = arith.constant 0 : i32
    %c0_i32_1 = arith.constant 0 : i32
    %c0_i32_2 = arith.constant 0 : i32
    return %c0_i32, %c0_i32_0, %c0_i32_1 : i32, i32, i32
  }
  func.func @transform_18(%arg0: i32) -> (i32, i32, i32) {
    %c0_i32 = arith.constant 0 : i32
    %c0_i32_0 = arith.constant 0 : i32
    %c0_i32_1 = arith.constant 0 : i32
    %c0_i32_2 = arith.constant 0 : i32
    return %c0_i32, %c0_i32_0, %c0_i32_1 : i32, i32, i32
  }
  func.func @transform_19(%arg0: i32) -> (i32, i32, i32) {
    %c0_i32 = arith.constant 0 : i32
    %c0_i32_0 = arith.constant 0 : i32
    %c0_i32_1 = arith.constant 0 : i32
    %c0_i32_2 = arith.constant 0 : i32
    return %c0_i32, %c0_i32_0, %c0_i32_1 : i32, i32, i32
  }
  func.func @transform_20(%arg0: i32) -> (i32, i32, i32) {
    %c0_i32 = arith.constant 0 : i32
    %c0_i32_0 = arith.constant 0 : i32
    %c0_i32_1 = arith.constant 0 : i32
    %c0_i32_2 = arith.constant 0 : i32
    return %c0_i32, %c0_i32_0, %c0_i32_1 : i32, i32, i32
  }
  func.func @transform_21(%arg0: i32) -> (i32, i32, i32) {
    %c0_i32 = arith.constant 0 : i32
    %c0_i32_0 = arith.constant 0 : i32
    %c0_i32_1 = arith.constant 0 : i32
    %c0_i32_2 = arith.constant 0 : i32
    return %c0_i32, %c0_i32_0, %c0_i32_1 : i32, i32, i32
  }
  func.func @transform_22(%arg0: i32) -> (i32, i32, i32) {
    %c0_i32 = arith.constant 0 : i32
    %c0_i32_0 = arith.constant 0 : i32
    %c0_i32_1 = arith.constant 0 : i32
    %c0_i32_2 = arith.constant 0 : i32
    return %c0_i32, %c0_i32_0, %c0_i32_1 : i32, i32, i32
  }
  func.func @transform_23(%arg0: i32) -> (i32, i32, i32) {
    %c0_i32 = arith.constant 0 : i32
    %c0_i32_0 = arith.constant 0 : i32
    %c0_i32_1 = arith.constant 0 : i32
    %c0_i32_2 = arith.constant 0 : i32
    return %c0_i32, %c0_i32_0, %c0_i32_1 : i32, i32, i32
  }
  func.func @transform_24(%arg0: i32) -> (i32, i32, i32) {
    %c0_i32 = arith.constant 0 : i32
    %c0_i32_0 = arith.constant 0 : i32
    %c0_i32_1 = arith.constant 0 : i32
    %c0_i32_2 = arith.constant 0 : i32
    return %c0_i32, %c0_i32_0, %c0_i32_1 : i32, i32, i32
  }
  func.func @transform_25(%arg0: i32) -> (i32, i32, i32, i32) {
    %c0_i32 = arith.constant 0 : i32
    %c0_i32_0 = arith.constant 0 : i32
    %c0_i32_1 = arith.constant 0 : i32
    %c0_i32_2 = arith.constant 0 : i32
    %c0_i32_3 = arith.constant 0 : i32
    return %c0_i32, %c0_i32_0, %c0_i32_1, %c0_i32_2 : i32, i32, i32, i32
  }
  func.func @transform_26(%arg0: i32) -> (i32, i32, i32, i32) {
    %c0_i32 = arith.constant 0 : i32
    %c0_i32_0 = arith.constant 0 : i32
    %c0_i32_1 = arith.constant 0 : i32
    %c0_i32_2 = arith.constant 0 : i32
    %c0_i32_3 = arith.constant 0 : i32
    return %c0_i32, %c0_i32_0, %c0_i32_1, %c0_i32_2 : i32, i32, i32, i32
  }
  func.func @transform_27(%arg0: i32) -> (i32, i32, i32, i32) {
    %c0_i32 = arith.constant 0 : i32
    %c0_i32_0 = arith.constant 0 : i32
    %c0_i32_1 = arith.constant 0 : i32
    %c0_i32_2 = arith.constant 0 : i32
    return %arg0, %c0_i32, %c0_i32_0, %c0_i32_1 : i32, i32, i32, i32
  }
  func.func @transform_28(%arg0: i32) -> (i32, i32, i32, i32) {
    %c0_i32 = arith.constant 0 : i32
    %c0_i32_0 = arith.constant 0 : i32
    %c0_i32_1 = arith.constant 0 : i32
    %c0_i32_2 = arith.constant 0 : i32
    return %arg0, %c0_i32, %c0_i32_0, %c0_i32_1 : i32, i32, i32, i32
  }
}

</mosaic_0001>

<llo_original>
// kernel: future_decoder_forward.1
$region0: #{future_decoder_forward.1}
  #allocation0 [shape = 'u32[]', space=smem, size = 0x4, offset = 0x4, fixed_abs, tag = 'smem constant byte address 0x4 - core index']
  #allocation1 [shape = 'u32[72,128]{1,0:T(1,128)}', space=vmem, size = 0x9000, scoped, tag = 'internal scratch']
  #allocation2 [shape = 'f32[4,2]{1,0:T(4,128)}', space=vmem, size = 0x800, scoped, tag = 'scratch operand']
  #allocation3 [shape = 'f32[4,32]{1,0:T(4,128)}', space=vmem, size = 0x800, scoped, tag = 'scratch operand']
  #allocation4 [shape = 'bf16[2,32,8]{2,1,0:T(8,128)(2,1)}', space=vmem, size = 0x4000, scoped, tag = 'scratch operand']
  #allocation5 [shape = 'bf16[2,8,32]{2,1,0:T(8,128)(2,1)}', space=vmem, size = 0x1000, scoped, tag = 'scratch operand']
  %s0 = inlined_call_operand.vmem [shape: f32[2,4,2], index: 0, kind: input, shape index: {}]
  %s1 = inlined_call_operand.vmem [shape: f32[2,4,14], index: 1, kind: input, shape index: {}]
  %s2 = inlined_call_operand.vmem [shape: f32[2,8,32], index: 2, kind: input, shape index: {}]
  %s3 = inlined_call_operand.vmem [shape: f32[3,1,32], index: 3, kind: input, shape index: {}]
  %s4 = inlined_call_operand.vmem [shape: f32[2,4,4], index: 4, kind: input, shape index: {}]
  %s5 = inlined_call_operand.vmem [shape: f32[2,4,8], index: 5, kind: input, shape index: {}]
  %s6 = inlined_call_operand.vmem [shape: f32[2,32], index: 6, kind: input, shape index: {}]
  %s7 = inlined_call_operand.vmem [shape: f32[14,32], index: 7, kind: input, shape index: {}]
  %s8 = inlined_call_operand.vmem [shape: f32[1,32], index: 8, kind: input, shape index: {}]
  %s9 = inlined_call_operand.vmem [shape: f32[32,2], index: 9, kind: input, shape index: {}]
  %s10 = inlined_call_operand.vmem [shape: f32[1,2], index: 10, kind: input, shape index: {}]
  %s11 = inlined_call_operand.vmem [shape: bf16[2,32,96], index: 11, kind: input, shape index: {}]
  %s12 = inlined_call_operand.vmem [shape: f32[2,1,96], index: 12, kind: input, shape index: {}]
  %s13 = inlined_call_operand.vmem [shape: bf16[2,32,32], index: 13, kind: input, shape index: {}]
  %s14 = inlined_call_operand.vmem [shape: f32[2,1,32], index: 14, kind: input, shape index: {}]
  %s15 = inlined_call_operand.vmem [shape: bf16[2,32,32], index: 15, kind: input, shape index: {}]
  %s16 = inlined_call_operand.vmem [shape: f32[2,1,32], index: 16, kind: input, shape index: {}]
  %s17 = inlined_call_operand.vmem [shape: bf16[2,32,64], index: 17, kind: input, shape index: {}]
  %s18 = inlined_call_operand.vmem [shape: f32[2,1,64], index: 18, kind: input, shape index: {}]
  %s19 = inlined_call_operand.vmem [shape: bf16[2,32,32], index: 19, kind: input, shape index: {}]
  %s20 = inlined_call_operand.vmem [shape: f32[2,1,32], index: 20, kind: input, shape index: {}]
  %s21 = inlined_call_operand.vmem [shape: bf16[2,32,64], index: 21, kind: input, shape index: {}]
  %s22 = inlined_call_operand.vmem [shape: f32[2,1,64], index: 22, kind: input, shape index: {}]
  %s23 = inlined_call_operand.vmem [shape: bf16[2,64,32], index: 23, kind: input, shape index: {}]
  %s24 = inlined_call_operand.vmem [shape: f32[2,1,32], index: 24, kind: input, shape index: {}]
  %s25 = inlined_call_operand.vmem [shape: f32[2,3,1,32], index: 25, kind: input, shape index: {}]
  %s26 = inlined_call_operand.vmem [shape: f32[2,3,1,32], index: 26, kind: input, shape index: {}]
  %s27 = inlined_call_operand.vmem [shape: f32[2,3,4,2], index: 27, kind: output, shape index: {0}]
  %s28 = inlined_call_operand.vmem [shape: f32[2,3,4,8], index: 28, kind: output, shape index: {1}]
  %29 = xla_tuple %s27, %s28
  %s30 = sld [smem:[#allocation0]]
  $region156: #{future_decoder_forward.1} parent=0
    _
  %s32 = ssub.s32 1, %s30
  %s33 = scalar_select 0, %s32, %s30
  loop: start=0, step=1, limit=4
  $region2: #{future_decoder_forward.1} parent=0 // loop_pre_header
    _
  $region3: #{future_decoder_forward.1} parent=0 // loop_header
    %s35 = sphi 0, %s39
    %p36 = scmp.ge.s32.totalorder %s35, 4
    %s45 = sphi 0, %s47
    %s48 = sphi 0, %s45
    %s49 = sphi 0, %s48
    %s65 = sphi 0, %s49
    %s71 = sphi 0, %s73
    %s74 = sphi 0, %s71
    %s75 = sphi 0, %s74
    %s91 = sphi 0, %s75
    %s97 = sphi 0, %s99
    %s100 = sphi 0, %s97
    %s101 = sphi 0, %s100
    %s117 = sphi 0, %s101
    %s121 = sphi 0, %s121
    %s123 = sphi 0, %s121
    %s124 = sphi 0, %s123
    %s138 = sphi 0, %s124
    %s144 = sphi 0, %s146
    %s147 = sphi 0, %s144
    %s148 = sphi 0, %s147
    %s164 = sphi 0, %s148
    %s170 = sphi 0, %s172
    %s173 = sphi 0, %s170
    %s174 = sphi 0, %s173
    %s190 = sphi 0, %s174
    %s194 = sphi 0, %s194
    %s196 = sphi 0, %s194
    %s197 = sphi 0, %s196
    %s211 = sphi 0, %s197
    %s215 = sphi 0, %s215
    %s217 = sphi 0, %s215
    %s218 = sphi 0, %s217
    %s232 = sphi 0, %s218
    %s236 = sphi 0, %s236
    %s238 = sphi 0, %s236
    %s239 = sphi 0, %s238
    %s253 = sphi 0, %s239
    %s257 = sphi 0, %s257
    %s259 = sphi 0, %s257
    %s260 = sphi 0, %s259
    %s274 = sphi 0, %s260
    %s278 = sphi 0, %s278
    %s280 = sphi 0, %s278
    %s281 = sphi 0, %s280
    %s295 = sphi 0, %s281
    %s299 = sphi 0, %s299
    %s301 = sphi 0, %s299
    %s302 = sphi 0, %s301
    %s316 = sphi 0, %s302
    %s320 = sphi 0, %s320
    %s322 = sphi 0, %s320
    %s323 = sphi 0, %s322
    %s337 = sphi 0, %s323
    %s341 = sphi 0, %s341
    %s343 = sphi 0, %s341
    %s344 = sphi 0, %s343
    %s358 = sphi 0, %s344
    %s362 = sphi 0, %s362
    %s364 = sphi 0, %s362
    %s365 = sphi 0, %s364
    %s379 = sphi 0, %s365
    %s383 = sphi 0, %s383
    %s385 = sphi 0, %s383
    %s386 = sphi 0, %s385
    %s400 = sphi 0, %s386
    %s404 = sphi 0, %s404
    %s406 = sphi 0, %s404
    %s407 = sphi 0, %s406
    %s421 = sphi 0, %s407
    %s425 = sphi 0, %s425
    %s427 = sphi 0, %s425
    %s428 = sphi 0, %s427
    %s442 = sphi 0, %s428
    %s446 = sphi 0, %s446
    %s448 = sphi 0, %s446
    %s449 = sphi 0, %s448
    %s463 = sphi 0, %s449
    %s467 = sphi 0, %s467
    %s469 = sphi 0, %s467
    %s470 = sphi 0, %s469
    %s484 = sphi 0, %s470
    %s488 = sphi 0, %s488
    %s490 = sphi 0, %s488
    %s491 = sphi 0, %s490
    %s505 = sphi 0, %s491
    %s509 = sphi 0, %s509
    %s511 = sphi 0, %s509
    %s512 = sphi 0, %s511
    %s526 = sphi 0, %s512
    %s530 = sphi 0, %s530
    %s532 = sphi 0, %s530
    %s533 = sphi 0, %s532
    %s547 = sphi 0, %s533
    %s551 = sphi 0, %s551
    %s553 = sphi 0, %s551
    %s554 = sphi 0, %s553
    %s568 = sphi 0, %s554
    %s572 = sphi 0, %s572
    %s574 = sphi 0, %s572
    %s575 = sphi 0, %s574
    %s589 = sphi 0, %s575
    %s593 = sphi 0, %s593
    %s595 = sphi 0, %s593
    %s596 = sphi 0, %s595
    %s610 = sphi 0, %s596
    %s614 = sphi 0, %s614
    %s616 = sphi 0, %s614
    %s617 = sphi 0, %s616
    %s631 = sphi 0, %s617
    %s637 = sphi 0, %s639
    %s640 = sphi 0, %s637
    %s641 = sphi 0, %s640
    %s657 = sphi 0, %s641
    %s663 = sphi 0, %s665
    %s666 = sphi 0, %s663
    %s667 = sphi 0, %s666
    %s683 = sphi 0, %s667
  $region4: #{future_decoder_forward.1} parent=0 // loop_header_branch
    %38 = sbr.rel (%p36) target = $region8
  $region5: #{future_decoder_forward.1} parent=0 // loop_body
    %s40 = ssub.s32 %s35, 1
    %s41 = ssub.s32 %s35, 2
    %s42 = sadd.s32 %s35, 1
    %s43 = ssub.s32 %s35, %s42
    %p44 = scmp.eq.s32.totalorder %s43, 0
    %s46 = sadd.s32 %s45, 1
    %s47 = scalar_select %p44, %s45, %s46
    %p50 = pneg %p44
    %p51 = scmp.eq.s32.totalorder %s35, 1
    %p52 = por %p50, %p51
    %p53 = scmp.ne.s32.totalorder %s45, %s48
    %p54 = scmp.eq.s32.totalorder %s35, 0
    %p55 = por %p53, %p54
    %p56 = scmp.ne.s32.totalorder %s45, %s48
    %p57 = scmp.eq.s32.totalorder %s40, 1
    %p58 = por %p56, %p57
    %p59 = scmp.ne.s32.totalorder %s48, %s49
    %p60 = scmp.eq.s32.totalorder %s40, 0
    %p61 = por %p59, %p60
    %p62 = scmp.ne.s32.totalorder %s48, %s49
    %p63 = scmp.eq.s32.totalorder %s41, 1
    %p64 = por %p62, %p63
    %p66 = scmp.ne.s32.totalorder %s49, %s65
    %p67 = scmp.eq.s32.totalorder %s41, 0
    %p68 = por %p66, %p67
    %s69 = ssub.s32 %s35, %s42
    %p70 = scmp.eq.s32.totalorder %s69, 0
    %s72 = sadd.s32 %s71, 1
    %s73 = scalar_select %p70, %s71, %s72
    %p76 = pneg %p70
    %p77 = scmp.eq.s32.totalorder %s35, 1
    %p78 = por %p76, %p77
    %p79 = scmp.ne.s32.totalorder %s71, %s74
    %p80 = scmp.eq.s32.totalorder %s35, 0
    %p81 = por %p79, %p80
    %p82 = scmp.ne.s32.totalorder %s71, %s74
    %p83 = scmp.eq.s32.totalorder %s40, 1
    %p84 = por %p82, %p83
    %p85 = scmp.ne.s32.totalorder %s74, %s75
    %p86 = scmp.eq.s32.totalorder %s40, 0
    %p87 = por %p85, %p86
    %p88 = scmp.ne.s32.totalorder %s74, %s75
    %p89 = scmp.eq.s32.totalorder %s41, 1
    %p90 = por %p88, %p89
    %p92 = scmp.ne.s32.totalorder %s75, %s91
    %p93 = scmp.eq.s32.totalorder %s41, 0
    %p94 = por %p92, %p93
    %s95 = ssub.s32 %s35, %s42
    %p96 = scmp.eq.s32.totalorder %s95, 0
    %s98 = sadd.s32 %s97, 1
    %s99 = scalar_select %p96, %s97, %s98
    %p102 = pneg %p96
    %p103 = scmp.eq.s32.totalorder %s35, 1
    %p104 = por %p102, %p103
    %p105 = scmp.ne.s32.totalorder %s97, %s100
    %p106 = scmp.eq.s32.totalorder %s35, 0
    %p107 = por %p105, %p106
    %p108 = scmp.ne.s32.totalorder %s97, %s100
    %p109 = scmp.eq.s32.totalorder %s40, 1
    %p110 = por %p108, %p109
    %p111 = scmp.ne.s32.totalorder %s100, %s101
    %p112 = scmp.eq.s32.totalorder %s40, 0
    %p113 = por %p111, %p112
    %p114 = scmp.ne.s32.totalorder %s100, %s101
    %p115 = scmp.eq.s32.totalorder %s41, 1
    %p116 = por %p114, %p115
    %p118 = scmp.ne.s32.totalorder %s101, %s117
    %p119 = scmp.eq.s32.totalorder %s41, 0
    %p120 = por %p118, %p119
    %s122 = sadd.s32 %s121, 1
    %p125 = scmp.eq.s32.totalorder %s35, 1
    %p126 = scmp.ne.s32.totalorder %s121, %s123
    %p127 = scmp.eq.s32.totalorder %s35, 0
    %p128 = por %p126, %p127
    %p129 = scmp.ne.s32.totalorder %s121, %s123
    %p130 = scmp.eq.s32.totalorder %s40, 1
    %p131 = por %p129, %p130
    %p132 = scmp.ne.s32.totalorder %s123, %s124
    %p133 = scmp.eq.s32.totalorder %s40, 0
    %p134 = por %p132, %p133
    %p135 = scmp.ne.s32.totalorder %s123, %s124
    %p136 = scmp.eq.s32.totalorder %s41, 1
    %p137 = por %p135, %p136
    %p139 = scmp.ne.s32.totalorder %s124, %s138
    %p140 = scmp.eq.s32.totalorder %s41, 0
    %p141 = por %p139, %p140
    %s142 = ssub.s32 %s35, %s42
    %p143 = scmp.eq.s32.totalorder %s142, 0
    %s145 = sadd.s32 %s144, 1
    %s146 = scalar_select %p143, %s144, %s145
    %p149 = pneg %p143
    %p150 = scmp.eq.s32.totalorder %s35, 1
    %p151 = por %p149, %p150
    %p152 = scmp.ne.s32.totalorder %s144, %s147
    %p153 = scmp.eq.s32.totalorder %s35, 0
    %p154 = por %p152, %p153
    %p155 = scmp.ne.s32.totalorder %s144, %s147
    %p156 = scmp.eq.s32.totalorder %s40, 1
    %p157 = por %p155, %p156
    %p158 = scmp.ne.s32.totalorder %s147, %s148
    %p159 = scmp.eq.s32.totalorder %s40, 0
    %p160 = por %p158, %p159
    %p161 = scmp.ne.s32.totalorder %s147, %s148
    %p162 = scmp.eq.s32.totalorder %s41, 1
    %p163 = por %p161, %p162
    %p165 = scmp.ne.s32.totalorder %s148, %s164
    %p166 = scmp.eq.s32.totalorder %s41, 0
    %p167 = por %p165, %p166
    %s168 = ssub.s32 %s35, %s42
    %p169 = scmp.eq.s32.totalorder %s168, 0
    %s171 = sadd.s32 %s170, 1
    %s172 = scalar_select %p169, %s170, %s171
    %p175 = pneg %p169
    %p176 = scmp.eq.s32.totalorder %s35, 1
    %p177 = por %p175, %p176
    %p178 = scmp.ne.s32.totalorder %s170, %s173
    %p179 = scmp.eq.s32.totalorder %s35, 0
    %p180 = por %p178, %p179
    %p181 = scmp.ne.s32.totalorder %s170, %s173
    %p182 = scmp.eq.s32.totalorder %s40, 1
    %p183 = por %p181, %p182
    %p184 = scmp.ne.s32.totalorder %s173, %s174
    %p185 = scmp.eq.s32.totalorder %s40, 0
    %p186 = por %p184, %p185
    %p187 = scmp.ne.s32.totalorder %s173, %s174
    %p188 = scmp.eq.s32.totalorder %s41, 1
    %p189 = por %p187, %p188
    %p191 = scmp.ne.s32.totalorder %s174, %s190
    %p192 = scmp.eq.s32.totalorder %s41, 0
    %p193 = por %p191, %p192
    %s195 = sadd.s32 %s194, 1
    %p198 = scmp.eq.s32.totalorder %s35, 1
    %p199 = scmp.ne.s32.totalorder %s194, %s196
    %p200 = scmp.eq.s32.totalorder %s35, 0
    %p201 = por %p199, %p200
    %p202 = scmp.ne.s32.totalorder %s194, %s196
    %p203 = scmp.eq.s32.totalorder %s40, 1
    %p204 = por %p202, %p203
    %p205 = scmp.ne.s32.totalorder %s196, %s197
    %p206 = scmp.eq.s32.totalorder %s40, 0
    %p207 = por %p205, %p206
    %p208 = scmp.ne.s32.totalorder %s196, %s197
    %p209 = scmp.eq.s32.totalorder %s41, 1
    %p210 = por %p208, %p209
    %p212 = scmp.ne.s32.totalorder %s197, %s211
    %p213 = scmp.eq.s32.totalorder %s41, 0
    %p214 = por %p212, %p213
    %s216 = sadd.s32 %s215, 1
    %p219 = scmp.eq.s32.totalorder %s35, 1
    %p220 = scmp.ne.s32.totalorder %s215, %s217
    %p221 = scmp.eq.s32.totalorder %s35, 0
    %p222 = por %p220, %p221
    %p223 = scmp.ne.s32.totalorder %s215, %s217
    %p224 = scmp.eq.s32.totalorder %s40, 1
    %p225 = por %p223, %p224
    %p226 = scmp.ne.s32.totalorder %s217, %s218
    %p227 = scmp.eq.s32.totalorder %s40, 0
    %p228 = por %p226, %p227
    %p229 = scmp.ne.s32.totalorder %s217, %s218
    %p230 = scmp.eq.s32.totalorder %s41, 1
    %p231 = por %p229, %p230
    %p233 = scmp.ne.s32.totalorder %s218, %s232
    %p234 = scmp.eq.s32.totalorder %s41, 0
    %p235 = por %p233, %p234
    %s237 = sadd.s32 %s236, 1
    %p240 = scmp.eq.s32.totalorder %s35, 1
    %p241 = scmp.ne.s32.totalorder %s236, %s238
    %p242 = scmp.eq.s32.totalorder %s35, 0
    %p243 = por %p241, %p242
    %p244 = scmp.ne.s32.totalorder %s236, %s238
    %p245 = scmp.eq.s32.totalorder %s40, 1
    %p246 = por %p244, %p245
    %p247 = scmp.ne.s32.totalorder %s238, %s239
    %p248 = scmp.eq.s32.totalorder %s40, 0
    %p249 = por %p247, %p248
    %p250 = scmp.ne.s32.totalorder %s238, %s239
    %p251 = scmp.eq.s32.totalorder %s41, 1
    %p252 = por %p250, %p251
    %p254 = scmp.ne.s32.totalorder %s239, %s253
    %p255 = scmp.eq.s32.totalorder %s41, 0
    %p256 = por %p254, %p255
    %s258 = sadd.s32 %s257, 1
    %p261 = scmp.eq.s32.totalorder %s35, 1
    %p262 = scmp.ne.s32.totalorder %s257, %s259
    %p263 = scmp.eq.s32.totalorder %s35, 0
    %p264 = por %p262, %p263
    %p265 = scmp.ne.s32.totalorder %s257, %s259
    %p266 = scmp.eq.s32.totalorder %s40, 1
    %p267 = por %p265, %p266
    %p268 = scmp.ne.s32.totalorder %s259, %s260
    %p269 = scmp.eq.s32.totalorder %s40, 0
    %p270 = por %p268, %p269
    %p271 = scmp.ne.s32.totalorder %s259, %s260
    %p272 = scmp.eq.s32.totalorder %s41, 1
    %p273 = por %p271, %p272
    %p275 = scmp.ne.s32.totalorder %s260, %s274
    %p276 = scmp.eq.s32.totalorder %s41, 0
    %p277 = por %p275, %p276
    %s279 = sadd.s32 %s278, 1
    %p282 = scmp.eq.s32.totalorder %s35, 1
    %p283 = scmp.ne.s32.totalorder %s278, %s280
    %p284 = scmp.eq.s32.totalorder %s35, 0
    %p285 = por %p283, %p284
    %p286 = scmp.ne.s32.totalorder %s278, %s280
    %p287 = scmp.eq.s32.totalorder %s40, 1
    %p288 = por %p286, %p287
    %p289 = scmp.ne.s32.totalorder %s280, %s281
    %p290 = scmp.eq.s32.totalorder %s40, 0
    %p291 = por %p289, %p290
    %p292 = scmp.ne.s32.totalorder %s280, %s281
    %p293 = scmp.eq.s32.totalorder %s41, 1
    %p294 = por %p292, %p293
    %p296 = scmp.ne.s32.totalorder %s281, %s295
    %p297 = scmp.eq.s32.totalorder %s41, 0
    %p298 = por %p296, %p297
    %s300 = sadd.s32 %s299, 1
    %p303 = scmp.eq.s32.totalorder %s35, 1
    %p304 = scmp.ne.s32.totalorder %s299, %s301
    %p305 = scmp.eq.s32.totalorder %s35, 0
    %p306 = por %p304, %p305
    %p307 = scmp.ne.s32.totalorder %s299, %s301
    %p308 = scmp.eq.s32.totalorder %s40, 1
    %p309 = por %p307, %p308
    %p310 = scmp.ne.s32.totalorder %s301, %s302
    %p311 = scmp.eq.s32.totalorder %s40, 0
    %p312 = por %p310, %p311
    %p313 = scmp.ne.s32.totalorder %s301, %s302
    %p314 = scmp.eq.s32.totalorder %s41, 1
    %p315 = por %p313, %p314
    %p317 = scmp.ne.s32.totalorder %s302, %s316
    %p318 = scmp.eq.s32.totalorder %s41, 0
    %p319 = por %p317, %p318
    %s321 = sadd.s32 %s320, 1
    %p324 = scmp.eq.s32.totalorder %s35, 1
    %p325 = scmp.ne.s32.totalorder %s320, %s322
    %p326 = scmp.eq.s32.totalorder %s35, 0
    %p327 = por %p325, %p326
    %p328 = scmp.ne.s32.totalorder %s320, %s322
    %p329 = scmp.eq.s32.totalorder %s40, 1
    %p330 = por %p328, %p329
    %p331 = scmp.ne.s32.totalorder %s322, %s323
    %p332 = scmp.eq.s32.totalorder %s40, 0
    %p333 = por %p331, %p332
    %p334 = scmp.ne.s32.totalorder %s322, %s323
    %p335 = scmp.eq.s32.totalorder %s41, 1
    %p336 = por %p334, %p335
    %p338 = scmp.ne.s32.totalorder %s323, %s337
    %p339 = scmp.eq.s32.totalorder %s41, 0
    %p340 = por %p338, %p339
    %s342 = sadd.s32 %s341, 1
    %p345 = scmp.eq.s32.totalorder %s35, 1
    %p346 = scmp.ne.s32.totalorder %s341, %s343
    %p347 = scmp.eq.s32.totalorder %s35, 0
    %p348 = por %p346, %p347
    %p349 = scmp.ne.s32.totalorder %s341, %s343
    %p350 = scmp.eq.s32.totalorder %s40, 1
    %p351 = por %p349, %p350
    %p352 = scmp.ne.s32.totalorder %s343, %s344
    %p353 = scmp.eq.s32.totalorder %s40, 0
    %p354 = por %p352, %p353
    %p355 = scmp.ne.s32.totalorder %s343, %s344
    %p356 = scmp.eq.s32.totalorder %s41, 1
    %p357 = por %p355, %p356
    %p359 = scmp.ne.s32.totalorder %s344, %s358
    %p360 = scmp.eq.s32.totalorder %s41, 0
    %p361 = por %p359, %p360
    %s363 = sadd.s32 %s362, 1
    %p366 = scmp.eq.s32.totalorder %s35, 1
    %p367 = scmp.ne.s32.totalorder %s362, %s364
    %p368 = scmp.eq.s32.totalorder %s35, 0
    %p369 = por %p367, %p368
    %p370 = scmp.ne.s32.totalorder %s362, %s364
    %p371 = scmp.eq.s32.totalorder %s40, 1
    %p372 = por %p370, %p371
    %p373 = scmp.ne.s32.totalorder %s364, %s365
    %p374 = scmp.eq.s32.totalorder %s40, 0
    %p375 = por %p373, %p374
    %p376 = scmp.ne.s32.totalorder %s364, %s365
    %p377 = scmp.eq.s32.totalorder %s41, 1
    %p378 = por %p376, %p377
    %p380 = scmp.ne.s32.totalorder %s365, %s379
    %p381 = scmp.eq.s32.totalorder %s41, 0
    %p382 = por %p380, %p381
    %s384 = sadd.s32 %s383, 1
    %p387 = scmp.eq.s32.totalorder %s35, 1
    %p388 = scmp.ne.s32.totalorder %s383, %s385
    %p389 = scmp.eq.s32.totalorder %s35, 0
    %p390 = por %p388, %p389
    %p391 = scmp.ne.s32.totalorder %s383, %s385
    %p392 = scmp.eq.s32.totalorder %s40, 1
    %p393 = por %p391, %p392
    %p394 = scmp.ne.s32.totalorder %s385, %s386
    %p395 = scmp.eq.s32.totalorder %s40, 0
    %p396 = por %p394, %p395
    %p397 = scmp.ne.s32.totalorder %s385, %s386
    %p398 = scmp.eq.s32.totalorder %s41, 1
    %p399 = por %p397, %p398
    %p401 = scmp.ne.s32.totalorder %s386, %s400
    %p402 = scmp.eq.s32.totalorder %s41, 0
    %p403 = por %p401, %p402
    %s405 = sadd.s32 %s404, 1
    %p408 = scmp.eq.s32.totalorder %s35, 1
    %p409 = scmp.ne.s32.totalorder %s404, %s406
    %p410 = scmp.eq.s32.totalorder %s35, 0
    %p411 = por %p409, %p410
    %p412 = scmp.ne.s32.totalorder %s404, %s406
    %p413 = scmp.eq.s32.totalorder %s40, 1
    %p414 = por %p412, %p413
    %p415 = scmp.ne.s32.totalorder %s406, %s407
    %p416 = scmp.eq.s32.totalorder %s40, 0
    %p417 = por %p415, %p416
    %p418 = scmp.ne.s32.totalorder %s406, %s407
    %p419 = scmp.eq.s32.totalorder %s41, 1
    %p420 = por %p418, %p419
    %p422 = scmp.ne.s32.totalorder %s407, %s421
    %p423 = scmp.eq.s32.totalorder %s41, 0
    %p424 = por %p422, %p423
    %s426 = sadd.s32 %s425, 1
    %p429 = scmp.eq.s32.totalorder %s35, 1
    %p430 = scmp.ne.s32.totalorder %s425, %s427
    %p431 = scmp.eq.s32.totalorder %s35, 0
    %p432 = por %p430, %p431
    %p433 = scmp.ne.s32.totalorder %s425, %s427
    %p434 = scmp.eq.s32.totalorder %s40, 1
    %p435 = por %p433, %p434
    %p436 = scmp.ne.s32.totalorder %s427, %s428
    %p437 = scmp.eq.s32.totalorder %s40, 0
    %p438 = por %p436, %p437
    %p439 = scmp.ne.s32.totalorder %s427, %s428
    %p440 = scmp.eq.s32.totalorder %s41, 1
    %p441 = por %p439, %p440
    %p443 = scmp.ne.s32.totalorder %s428, %s442
    %p444 = scmp.eq.s32.totalorder %s41, 0
    %p445 = por %p443, %p444
    %s447 = sadd.s32 %s446, 1
    %p450 = scmp.eq.s32.totalorder %s35, 1
    %p451 = scmp.ne.s32.totalorder %s446, %s448
    %p452 = scmp.eq.s32.totalorder %s35, 0
    %p453 = por %p451, %p452
    %p454 = scmp.ne.s32.totalorder %s446, %s448
    %p455 = scmp.eq.s32.totalorder %s40, 1
    %p456 = por %p454, %p455
    %p457 = scmp.ne.s32.totalorder %s448, %s449
    %p458 = scmp.eq.s32.totalorder %s40, 0
    %p459 = por %p457, %p458
    %p460 = scmp.ne.s32.totalorder %s448, %s449
    %p461 = scmp.eq.s32.totalorder %s41, 1
    %p462 = por %p460, %p461
    %p464 = scmp.ne.s32.totalorder %s449, %s463
    %p465 = scmp.eq.s32.totalorder %s41, 0
    %p466 = por %p464, %p465
    %s468 = sadd.s32 %s467, 1
    %p471 = scmp.eq.s32.totalorder %s35, 1
    %p472 = scmp.ne.s32.totalorder %s467, %s469
    %p473 = scmp.eq.s32.totalorder %s35, 0
    %p474 = por %p472, %p473
    %p475 = scmp.ne.s32.totalorder %s467, %s469
    %p476 = scmp.eq.s32.totalorder %s40, 1
    %p477 = por %p475, %p476
    %p478 = scmp.ne.s32.totalorder %s469, %s470
    %p479 = scmp.eq.s32.totalorder %s40, 0
    %p480 = por %p478, %p479
    %p481 = scmp.ne.s32.totalorder %s469, %s470
    %p482 = scmp.eq.s32.totalorder %s41, 1
    %p483 = por %p481, %p482
    %p485 = scmp.ne.s32.totalorder %s470, %s484
    %p486 = scmp.eq.s32.totalorder %s41, 0
    %p487 = por %p485, %p486
    %s489 = sadd.s32 %s488, 1
    %p492 = scmp.eq.s32.totalorder %s35, 1
    %p493 = scmp.ne.s32.totalorder %s488, %s490
    %p494 = scmp.eq.s32.totalorder %s35, 0
    %p495 = por %p493, %p494
    %p496 = scmp.ne.s32.totalorder %s488, %s490
    %p497 = scmp.eq.s32.totalorder %s40, 1
    %p498 = por %p496, %p497
    %p499 = scmp.ne.s32.totalorder %s490, %s491
    %p500 = scmp.eq.s32.totalorder %s40, 0
    %p501 = por %p499, %p500
    %p502 = scmp.ne.s32.totalorder %s490, %s491
    %p503 = scmp.eq.s32.totalorder %s41, 1
    %p504 = por %p502, %p503
    %p506 = scmp.ne.s32.totalorder %s491, %s505
    %p507 = scmp.eq.s32.totalorder %s41, 0
    %p508 = por %p506, %p507
    %s510 = sadd.s32 %s509, 1
    %p513 = scmp.eq.s32.totalorder %s35, 1
    %p514 = scmp.ne.s32.totalorder %s509, %s511
    %p515 = scmp.eq.s32.totalorder %s35, 0
    %p516 = por %p514, %p515
    %p517 = scmp.ne.s32.totalorder %s509, %s511
    %p518 = scmp.eq.s32.totalorder %s40, 1
    %p519 = por %p517, %p518
    %p520 = scmp.ne.s32.totalorder %s511, %s512
    %p521 = scmp.eq.s32.totalorder %s40, 0
    %p522 = por %p520, %p521
    %p523 = scmp.ne.s32.totalorder %s511, %s512
    %p524 = scmp.eq.s32.totalorder %s41, 1
    %p525 = por %p523, %p524
    %p527 = scmp.ne.s32.totalorder %s512, %s526
    %p528 = scmp.eq.s32.totalorder %s41, 0
    %p529 = por %p527, %p528
    %s531 = sadd.s32 %s530, 1
    %p534 = scmp.eq.s32.totalorder %s35, 1
    %p535 = scmp.ne.s32.totalorder %s530, %s532
    %p536 = scmp.eq.s32.totalorder %s35, 0
    %p537 = por %p535, %p536
    %p538 = scmp.ne.s32.totalorder %s530, %s532
    %p539 = scmp.eq.s32.totalorder %s40, 1
    %p540 = por %p538, %p539
    %p541 = scmp.ne.s32.totalorder %s532, %s533
    %p542 = scmp.eq.s32.totalorder %s40, 0
    %p543 = por %p541, %p542
    %p544 = scmp.ne.s32.totalorder %s532, %s533
    %p545 = scmp.eq.s32.totalorder %s41, 1
    %p546 = por %p544, %p545
    %p548 = scmp.ne.s32.totalorder %s533, %s547
    %p549 = scmp.eq.s32.totalorder %s41, 0
    %p550 = por %p548, %p549
    %s552 = sadd.s32 %s551, 1
    %p555 = scmp.eq.s32.totalorder %s35, 1
    %p556 = scmp.ne.s32.totalorder %s551, %s553
    %p557 = scmp.eq.s32.totalorder %s35, 0
    %p558 = por %p556, %p557
    %p559 = scmp.ne.s32.totalorder %s551, %s553
    %p560 = scmp.eq.s32.totalorder %s40, 1
    %p561 = por %p559, %p560
    %p562 = scmp.ne.s32.totalorder %s553, %s554
    %p563 = scmp.eq.s32.totalorder %s40, 0
    %p564 = por %p562, %p563
    %p565 = scmp.ne.s32.totalorder %s553, %s554
    %p566 = scmp.eq.s32.totalorder %s41, 1
    %p567 = por %p565, %p566
    %p569 = scmp.ne.s32.totalorder %s554, %s568
    %p570 = scmp.eq.s32.totalorder %s41, 0
    %p571 = por %p569, %p570
    %s573 = sadd.s32 %s572, 1
    %p576 = scmp.eq.s32.totalorder %s35, 1
    %p577 = scmp.ne.s32.totalorder %s572, %s574
    %p578 = scmp.eq.s32.totalorder %s35, 0
    %p579 = por %p577, %p578
    %p580 = scmp.ne.s32.totalorder %s572, %s574
    %p581 = scmp.eq.s32.totalorder %s40, 1
    %p582 = por %p580, %p581
    %p583 = scmp.ne.s32.totalorder %s574, %s575
    %p584 = scmp.eq.s32.totalorder %s40, 0
    %p585 = por %p583, %p584
    %p586 = scmp.ne.s32.totalorder %s574, %s575
    %p587 = scmp.eq.s32.totalorder %s41, 1
    %p588 = por %p586, %p587
    %p590 = scmp.ne.s32.totalorder %s575, %s589
    %p591 = scmp.eq.s32.totalorder %s41, 0
    %p592 = por %p590, %p591
    %s594 = sadd.s32 %s593, 1
    %p597 = scmp.eq.s32.totalorder %s35, 1
    %p598 = scmp.ne.s32.totalorder %s593, %s595
    %p599 = scmp.eq.s32.totalorder %s35, 0
    %p600 = por %p598, %p599
    %p601 = scmp.ne.s32.totalorder %s593, %s595
    %p602 = scmp.eq.s32.totalorder %s40, 1
    %p603 = por %p601, %p602
    %p604 = scmp.ne.s32.totalorder %s595, %s596
    %p605 = scmp.eq.s32.totalorder %s40, 0
    %p606 = por %p604, %p605
    %p607 = scmp.ne.s32.totalorder %s595, %s596
    %p608 = scmp.eq.s32.totalorder %s41, 1
    %p609 = por %p607, %p608
    %p611 = scmp.ne.s32.totalorder %s596, %s610
    %p612 = scmp.eq.s32.totalorder %s41, 0
    %p613 = por %p611, %p612
    %s615 = sadd.s32 %s614, 1
    %p618 = scmp.eq.s32.totalorder %s35, 1
    %p619 = scmp.ne.s32.totalorder %s614, %s616
    %p620 = scmp.eq.s32.totalorder %s35, 0
    %p621 = por %p619, %p620
    %p622 = scmp.ne.s32.totalorder %s614, %s616
    %p623 = scmp.eq.s32.totalorder %s40, 1
    %p624 = por %p622, %p623
    %p625 = scmp.ne.s32.totalorder %s616, %s617
    %p626 = scmp.eq.s32.totalorder %s40, 0
    %p627 = por %p625, %p626
    %p628 = scmp.ne.s32.totalorder %s616, %s617
    %p629 = scmp.eq.s32.totalorder %s41, 1
    %p630 = por %p628, %p629
    %p632 = scmp.ne.s32.totalorder %s617, %s631
    %p633 = scmp.eq.s32.totalorder %s41, 0
    %p634 = por %p632, %p633
    %s635 = ssub.s32 %s35, %s42
    %p636 = scmp.eq.s32.totalorder %s635, 0
    %s638 = sadd.s32 %s637, 1
    %s639 = scalar_select %p636, %s637, %s638
    %p642 = pneg %p636
    %p643 = scmp.eq.s32.totalorder %s35, 1
    %p644 = por %p642, %p643
    %p645 = scmp.ne.s32.totalorder %s637, %s640
    %p646 = scmp.eq.s32.totalorder %s35, 0
    %p647 = por %p645, %p646
    %p648 = scmp.ne.s32.totalorder %s637, %s640
    %p649 = scmp.eq.s32.totalorder %s40, 1
    %p650 = por %p648, %p649
    %p651 = scmp.ne.s32.totalorder %s640, %s641
    %p652 = scmp.eq.s32.totalorder %s40, 0
    %p653 = por %p651, %p652
    %p654 = scmp.ne.s32.totalorder %s640, %s641
    %p655 = scmp.eq.s32.totalorder %s41, 1
    %p656 = por %p654, %p655
    %p658 = scmp.ne.s32.totalorder %s641, %s657
    %p659 = scmp.eq.s32.totalorder %s41, 0
    %p660 = por %p658, %p659
    %s661 = ssub.s32 %s35, %s42
    %p662 = scmp.eq.s32.totalorder %s661, 0
    %s664 = sadd.s32 %s663, 1
    %s665 = scalar_select %p662, %s663, %s664
    %p668 = pneg %p662
    %p669 = scmp.eq.s32.totalorder %s35, 1
    %p670 = por %p668, %p669
    %p671 = scmp.ne.s32.totalorder %s663, %s666
    %p672 = scmp.eq.s32.totalorder %s35, 0
    %p673 = por %p671, %p672
    %p674 = scmp.ne.s32.totalorder %s663, %s666
    %p675 = scmp.eq.s32.totalorder %s40, 1
    %p676 = por %p674, %p675
    %p677 = scmp.ne.s32.totalorder %s666, %s667
    %p678 = scmp.eq.s32.totalorder %s40, 0
    %p679 = por %p677, %p678
    %p680 = scmp.ne.s32.totalorder %s666, %s667
    %p681 = scmp.eq.s32.totalorder %s41, 1
    %p682 = por %p680, %p681
    %p684 = scmp.ne.s32.totalorder %s667, %s683
    %p685 = scmp.eq.s32.totalorder %s41, 0
    %p686 = por %p684, %p685
    %p687 = scmp.le.s32.totalorder 1, %s35
    %p688 = scmp.lt.s32.totalorder %s35, 3
    %p689 = pnand %p687, %p688
    %p690 = pneg %p689
    // Predicated region
    $region9: #{future_decoder_forward.1} parent=5 // pred_check
      _
    $region10: #{future_decoder_forward.1} parent=5 // pred_check_branch
      %692 = sbr.rel (%p689) target = $region12
    $region11: #{future_decoder_forward.1} parent=5 // pred_region
      %s693 = ssub.s32 %s35, 1
      // Predicated region
      $region13: #{future_decoder_forward.1} parent=11 // pred_check
        %p694 = pneg %p134
      $region14: #{future_decoder_forward.1} parent=11 // pred_check_branch
        %696 = sbr.rel (%p694) target = $region16
      $region15: #{future_decoder_forward.1} parent=11 // pred_region
        _
      $region16: #{future_decoder_forward.1} parent=11 // pred_fallthru
        _
      // Predicated region
      $region17: #{future_decoder_forward.1} parent=11 // pred_check
        %p697 = pneg %p207
      $region18: #{future_decoder_forward.1} parent=11 // pred_check_branch
        %699 = sbr.rel (%p697) target = $region20
      $region19: #{future_decoder_forward.1} parent=11 // pred_region
        _
      $region20: #{future_decoder_forward.1} parent=11 // pred_fallthru
        _
      // Predicated region
      $region21: #{future_decoder_forward.1} parent=11 // pred_check
        %p700 = pneg %p228
      $region22: #{future_decoder_forward.1} parent=11 // pred_check_branch
        %702 = sbr.rel (%p700) target = $region24
      $region23: #{future_decoder_forward.1} parent=11 // pred_region
        _
      $region24: #{future_decoder_forward.1} parent=11 // pred_fallthru
        _
      // Predicated region
      $region25: #{future_decoder_forward.1} parent=11 // pred_check
        %p703 = pneg %p249
      $region26: #{future_decoder_forward.1} parent=11 // pred_check_branch
        %705 = sbr.rel (%p703) target = $region28
      $region27: #{future_decoder_forward.1} parent=11 // pred_region
        _
      $region28: #{future_decoder_forward.1} parent=11 // pred_fallthru
        _
      // Predicated region
      $region29: #{future_decoder_forward.1} parent=11 // pred_check
        %p706 = pneg %p270
      $region30: #{future_decoder_forward.1} parent=11 // pred_check_branch
        %708 = sbr.rel (%p706) target = $region32
      $region31: #{future_decoder_forward.1} parent=11 // pred_region
        _
      $region32: #{future_decoder_forward.1} parent=11 // pred_fallthru
        _
      // Predicated region
      $region33: #{future_decoder_forward.1} parent=11 // pred_check
        %p709 = pneg %p291
      $region34: #{future_decoder_forward.1} parent=11 // pred_check_branch
        %711 = sbr.rel (%p709) target = $region36
      $region35: #{future_decoder_forward.1} parent=11 // pred_region
        _
      $region36: #{future_decoder_forward.1} parent=11 // pred_fallthru
        _
      // Predicated region
      $region37: #{future_decoder_forward.1} parent=11 // pred_check
        %p712 = pneg %p312
      $region38: #{future_decoder_forward.1} parent=11 // pred_check_branch
        %714 = sbr.rel (%p712) target = $region40
      $region39: #{future_decoder_forward.1} parent=11 // pred_region
        _
      $region40: #{future_decoder_forward.1} parent=11 // pred_fallthru
        _
      // Predicated region
      $region41: #{future_decoder_forward.1} parent=11 // pred_check
        %p715 = pneg %p333
      $region42: #{future_decoder_forward.1} parent=11 // pred_check_branch
        %717 = sbr.rel (%p715) target = $region44
      $region43: #{future_decoder_forward.1} parent=11 // pred_region
        _
      $region44: #{future_decoder_forward.1} parent=11 // pred_fallthru
        _
      // Predicated region
      $region45: #{future_decoder_forward.1} parent=11 // pred_check
        %p718 = pneg %p354
      $region46: #{future_decoder_forward.1} parent=11 // pred_check_branch
        %720 = sbr.rel (%p718) target = $region48
      $region47: #{future_decoder_forward.1} parent=11 // pred_region
        _
      $region48: #{future_decoder_forward.1} parent=11 // pred_fallthru
        _
      // Predicated region
      $region49: #{future_decoder_forward.1} parent=11 // pred_check
        %p721 = pneg %p375
      $region50: #{future_decoder_forward.1} parent=11 // pred_check_branch
        %723 = sbr.rel (%p721) target = $region52
      $region51: #{future_decoder_forward.1} parent=11 // pred_region
        _
      $region52: #{future_decoder_forward.1} parent=11 // pred_fallthru
        _
      // Predicated region
      $region53: #{future_decoder_forward.1} parent=11 // pred_check
        %p724 = pneg %p396
      $region54: #{future_decoder_forward.1} parent=11 // pred_check_branch
        %726 = sbr.rel (%p724) target = $region56
      $region55: #{future_decoder_forward.1} parent=11 // pred_region
        _
      $region56: #{future_decoder_forward.1} parent=11 // pred_fallthru
        _
      // Predicated region
      $region57: #{future_decoder_forward.1} parent=11 // pred_check
        %p727 = pneg %p417
      $region58: #{future_decoder_forward.1} parent=11 // pred_check_branch
        %729 = sbr.rel (%p727) target = $region60
      $region59: #{future_decoder_forward.1} parent=11 // pred_region
        _
      $region60: #{future_decoder_forward.1} parent=11 // pred_fallthru
        _
      // Predicated region
      $region61: #{future_decoder_forward.1} parent=11 // pred_check
        %p730 = pneg %p438
      $region62: #{future_decoder_forward.1} parent=11 // pred_check_branch
        %732 = sbr.rel (%p730) target = $region64
      $region63: #{future_decoder_forward.1} parent=11 // pred_region
        _
      $region64: #{future_decoder_forward.1} parent=11 // pred_fallthru
        _
      // Predicated region
      $region65: #{future_decoder_forward.1} parent=11 // pred_check
        %p733 = pneg %p459
      $region66: #{future_decoder_forward.1} parent=11 // pred_check_branch
        %735 = sbr.rel (%p733) target = $region68
      $region67: #{future_decoder_forward.1} parent=11 // pred_region
        _
      $region68: #{future_decoder_forward.1} parent=11 // pred_fallthru
        _
      // Predicated region
      $region69: #{future_decoder_forward.1} parent=11 // pred_check
        %p736 = pneg %p480
      $region70: #{future_decoder_forward.1} parent=11 // pred_check_branch
        %738 = sbr.rel (%p736) target = $region72
      $region71: #{future_decoder_forward.1} parent=11 // pred_region
        _
      $region72: #{future_decoder_forward.1} parent=11 // pred_fallthru
        _
      // Predicated region
      $region73: #{future_decoder_forward.1} parent=11 // pred_check
        %p739 = pneg %p501
      $region74: #{future_decoder_forward.1} parent=11 // pred_check_branch
        %741 = sbr.rel (%p739) target = $region76
      $region75: #{future_decoder_forward.1} parent=11 // pred_region
        _
      $region76: #{future_decoder_forward.1} parent=11 // pred_fallthru
        _
      // Predicated region
      $region77: #{future_decoder_forward.1} parent=11 // pred_check
        %p742 = pneg %p522
      $region78: #{future_decoder_forward.1} parent=11 // pred_check_branch
        %744 = sbr.rel (%p742) target = $region80
      $region79: #{future_decoder_forward.1} parent=11 // pred_region
        _
      $region80: #{future_decoder_forward.1} parent=11 // pred_fallthru
        _
      // Predicated region
      $region81: #{future_decoder_forward.1} parent=11 // pred_check
        %p745 = pneg %p543
      $region82: #{future_decoder_forward.1} parent=11 // pred_check_branch
        %747 = sbr.rel (%p745) target = $region84
      $region83: #{future_decoder_forward.1} parent=11 // pred_region
        _
      $region84: #{future_decoder_forward.1} parent=11 // pred_fallthru
        _
      // Predicated region
      $region85: #{future_decoder_forward.1} parent=11 // pred_check
        %p748 = pneg %p564
      $region86: #{future_decoder_forward.1} parent=11 // pred_check_branch
        %750 = sbr.rel (%p748) target = $region88
      $region87: #{future_decoder_forward.1} parent=11 // pred_region
        _
      $region88: #{future_decoder_forward.1} parent=11 // pred_fallthru
        _
      // Predicated region
      $region89: #{future_decoder_forward.1} parent=11 // pred_check
        %p751 = pneg %p585
      $region90: #{future_decoder_forward.1} parent=11 // pred_check_branch
        %753 = sbr.rel (%p751) target = $region92
      $region91: #{future_decoder_forward.1} parent=11 // pred_region
        _
      $region92: #{future_decoder_forward.1} parent=11 // pred_fallthru
        _
      // Predicated region
      $region93: #{future_decoder_forward.1} parent=11 // pred_check
        %p754 = pneg %p606
      $region94: #{future_decoder_forward.1} parent=11 // pred_check_branch
        %756 = sbr.rel (%p754) target = $region96
      $region95: #{future_decoder_forward.1} parent=11 // pred_region
        _
      $region96: #{future_decoder_forward.1} parent=11 // pred_fallthru
        _
      // Predicated region
      $region97: #{future_decoder_forward.1} parent=11 // pred_check
        %p757 = pneg %p627
      $region98: #{future_decoder_forward.1} parent=11 // pred_check_branch
        %759 = sbr.rel (%p757) target = $region100
      $region99: #{future_decoder_forward.1} parent=11 // pred_region
        _
      $region100: #{future_decoder_forward.1} parent=11 // pred_fallthru
        _
    $region12: #{future_decoder_forward.1} parent=5 // pred_fallthru
      _
    %p760 = scmp.lt.s32.totalorder %s35, 2
    // Predicated region
    $region101: #{future_decoder_forward.1} parent=5 // pred_check
      %p761 = pneg %p760
    $region102: #{future_decoder_forward.1} parent=5 // pred_check_branch
      %763 = sbr.rel (%p761) target = $region104
    $region103: #{future_decoder_forward.1} parent=5 // pred_region
      // Predicated region
      $region105: #{future_decoder_forward.1} parent=103 // pred_check
        %p764 = pneg %p55
      $region106: #{future_decoder_forward.1} parent=103 // pred_check_branch
        %766 = sbr.rel (%p764) target = $region108
      $region107: #{future_decoder_forward.1} parent=103 // pred_region
        %p767 = scmp.lt.s32.totalorder %s35, 1
        %s768 = scalar_select %p767, %s35, 1
        %s769 = smul.addr %s768, 4
        %s770 = scalar_lea.vmem %s0, %s769
      $region108: #{future_decoder_forward.1} parent=103 // pred_fallthru
        _
      // Predicated region
      $region109: #{future_decoder_forward.1} parent=103 // pred_check
        %p771 = pneg %p81
      $region110: #{future_decoder_forward.1} parent=103 // pred_check_branch
        %773 = sbr.rel (%p771) target = $region112
      $region111: #{future_decoder_forward.1} parent=103 // pred_region
        %p774 = scmp.lt.s32.totalorder %s35, 1
        %s775 = scalar_select %p774, %s35, 1
        %s776 = smul.addr %s775, 4
        %s777 = scalar_lea.vmem %s1, %s776
      $region112: #{future_decoder_forward.1} parent=103 // pred_fallthru
        _
      // Predicated region
      $region113: #{future_decoder_forward.1} parent=103 // pred_check
        %p778 = pneg %p107
      $region114: #{future_decoder_forward.1} parent=103 // pred_check_branch
        %780 = sbr.rel (%p778) target = $region116
      $region115: #{future_decoder_forward.1} parent=103 // pred_region
        %p781 = scmp.lt.s32.totalorder %s35, 1
        %s782 = scalar_select %p781, %s35, 1
        %s783 = smul.addr %s782, 8
        %s784 = scalar_lea.vmem %s2, %s783
      $region116: #{future_decoder_forward.1} parent=103 // pred_fallthru
        _
      // Predicated region
      $region117: #{future_decoder_forward.1} parent=103 // pred_check
        %p785 = pneg %p154
      $region118: #{future_decoder_forward.1} parent=103 // pred_check_branch
        %787 = sbr.rel (%p785) target = $region120
      $region119: #{future_decoder_forward.1} parent=103 // pred_region
        %p788 = scmp.lt.s32.totalorder %s35, 1
        %s789 = scalar_select %p788, %s35, 1
        %s790 = smul.addr %s789, 4
        %s791 = scalar_lea.vmem %s4, %s790
      $region120: #{future_decoder_forward.1} parent=103 // pred_fallthru
        _
      // Predicated region
      $region121: #{future_decoder_forward.1} parent=103 // pred_check
        %p792 = pneg %p180
      $region122: #{future_decoder_forward.1} parent=103 // pred_check_branch
        %794 = sbr.rel (%p792) target = $region124
      $region123: #{future_decoder_forward.1} parent=103 // pred_region
        %p795 = scmp.lt.s32.totalorder %s35, 1
        %s796 = scalar_select %p795, %s35, 1
        %s797 = smul.addr %s796, 4
        %s798 = scalar_lea.vmem %s5, %s797
      $region124: #{future_decoder_forward.1} parent=103 // pred_fallthru
        _
    $region104: #{future_decoder_forward.1} parent=5 // pred_fallthru
      _
    %p799 = scmp.le.s32.totalorder 1, %s35
    %p800 = scmp.lt.s32.totalorder %s35, 3
    %p801 = pnand %p799, %p800
    %p802 = pneg %p801
    // Predicated region
    $region125: #{future_decoder_forward.1} parent=5 // pred_check
      _
    $region126: #{future_decoder_forward.1} parent=5 // pred_check_branch
      %804 = sbr.rel (%p801) target = $region128
    $region127: #{future_decoder_forward.1} parent=5 // pred_region
      %s805 = ssub.s32 %s35, 1
      %p806 = scmp.lt.s32.totalorder %s40, 1
      %s807 = scalar_select %p806, %s40, 1
      %s808 = smul.addr %s807, 4
      %s809 = scalar_lea.vmem %s0, %s808
      %p810 = pneg %p61
      %p811 = pneg %p58
      %p812 = scmp.lt.s32.totalorder %s40, 1
      %s813 = scalar_select %p812, %s40, 1
      %s814 = smul.addr %s813, 4
      %s815 = scalar_lea.vmem %s1, %s814
      %p816 = pneg %p87
      %p817 = pneg %p84
      %p818 = scmp.lt.s32.totalorder %s40, 1
      %s819 = scalar_select %p818, %s40, 1
      %s820 = smul.addr %s819, 8
      %s821 = scalar_lea.vmem %s2, %s820
      %p822 = pneg %p113
      %p823 = pneg %p110
      %p824 = pneg %p134
      %p825 = pneg %p131
      %p826 = scmp.lt.s32.totalorder %s40, 1
      %s827 = scalar_select %p826, %s40, 1
      %s828 = smul.addr %s827, 4
      %s829 = scalar_lea.vmem %s4, %s828
      %p830 = pneg %p160
      %p831 = pneg %p157
      %p832 = scmp.lt.s32.totalorder %s40, 1
      %s833 = scalar_select %p832, %s40, 1
      %s834 = smul.addr %s833, 4
      %s835 = scalar_lea.vmem %s5, %s834
      %p836 = pneg %p186
      %p837 = pneg %p183
      %p838 = pneg %p207
      %p839 = pneg %p204
      %p840 = pneg %p228
      %p841 = pneg %p225
      %p842 = pneg %p249
      %p843 = pneg %p246
      %p844 = pneg %p270
      %p845 = pneg %p267
      %p846 = pneg %p291
      %p847 = pneg %p288
      %p848 = pneg %p312
      %p849 = pneg %p309
      %p850 = pneg %p333
      %p851 = pneg %p330
      %p852 = pneg %p354
      %p853 = pneg %p351
      %p854 = pneg %p375
      %p855 = pneg %p372
      %p856 = pneg %p396
      %p857 = pneg %p393
      %p858 = pneg %p417
      %p859 = pneg %p414
      %p860 = pneg %p438
      %p861 = pneg %p435
      %p862 = pneg %p459
      %p863 = pneg %p456
      %p864 = pneg %p480
      %p865 = pneg %p477
      %p866 = pneg %p501
      %p867 = pneg %p498
      %p868 = pneg %p522
      %p869 = pneg %p519
      %p870 = pneg %p543
      %p871 = pneg %p540
      %p872 = pneg %p564
      %p873 = pneg %p561
      %p874 = pneg %p585
      %p875 = pneg %p582
      %p876 = pneg %p606
      %p877 = pneg %p603
      %p878 = pneg %p627
      %p879 = pneg %p624
      %p880 = pneg %p653
      %p881 = pneg %p650
      %p882 = scmp.lt.s32.totalorder %s40, 1
      %s883 = scalar_select %p882, %s40, 1
      %s884 = smul.addr %s883, 3
      %s885 = smul.addr %s884, 4
      %s886 = scalar_lea.vmem %s27, %s885
      %p887 = pneg %p679
      %p888 = pneg %p676
      %p889 = scmp.lt.s32.totalorder %s40, 1
      %s890 = scalar_select %p889, %s40, 1
      %s891 = smul.addr %s890, 3
      %s892 = smul.addr %s891, 4
      %s893 = scalar_lea.vmem %s28, %s892
      %p894 = scmp.lt.s32.totalorder %s40, 1
      %s895 = scalar_select %p894, %s40, 1
      %s896 = smul.addr %s895, 4
      %s897 = scalar_lea.vmem %s0, %s896
      %p898 = scmp.lt.s32.totalorder %s40, 1
      %s899 = scalar_select %p898, %s40, 1
      %s900 = smul.addr %s899, 4
      %s901 = scalar_lea.vmem %s1, %s900
      %p902 = scmp.lt.s32.totalorder %s40, 1
      %s903 = scalar_select %p902, %s40, 1
      %s904 = smul.addr %s903, 8
      %s905 = scalar_lea.vmem %s2, %s904
      %p906 = scmp.lt.s32.totalorder %s40, 1
      %s907 = scalar_select %p906, %s40, 1
      %s908 = smul.addr %s907, 4
      %s909 = scalar_lea.vmem %s4, %s908
      %p910 = scmp.lt.s32.totalorder %s40, 1
      %s911 = scalar_select %p910, %s40, 1
      %s912 = smul.addr %s911, 4
      %s913 = scalar_lea.vmem %s5, %s912
      %p914 = scmp.lt.s32.totalorder %s40, 1
      %s915 = scalar_select %p914, %s40, 1
      %s916 = smul.addr %s915, 3
      %s917 = smul.addr %s916, 4
      %s918 = scalar_lea.vmem %s27, %s917
      %p919 = scmp.lt.s32.totalorder %s40, 1
      %s920 = scalar_select %p919, %s40, 1
      %s921 = smul.addr %s920, 3
      %s922 = smul.addr %s921, 4
      %s923 = scalar_lea.vmem %s28, %s922
      %v925 = vld [vmem:[%s897] sm:$0xf]
      %vm926 = vcmask 11264
      %927 = vst.msk [vmem:[#allocation2] sm:$0xf] %vm926, %v925
      %v928 = vld [vmem:[%s901] sm:$0xf]
      %v929 = vld [vmem:[%s7] sm:$0xff]
      %v930 = vld [vmem:[%s7 + $0x8] sm:$0x3f]
      %v931 = vld [vmem:[%s8] sm:$0x1]
      %v933 = vperm.slane %v931, 0
      %vm935 = vcmask 113664
      %v937 = vsel %vm935, %v928, 0
      %vm939 = vcmask 1045504
      %v941 = vsel %vm939, %v930, 0
      %943 = vmatpush.msra.mxu0 0.0
      %944 = vmatpush.msra.mxu0 0.0
      %945 = vmatpush.msra.mxu0 0.0
      %946 = vmatpush.msra.mxu0 0.0
      %947 = vmatpush.msra.mxu0 0.0
      %948 = vmatpush.msra.mxu0 0.0
      %949 = vmatpush.msra.mxu0 0.0
      %950 = vmatpush.msra.mxu0 0.0
      %951 = vmatpush.msra.mxu0 0.0
      %952 = vmatpush.msra.mxu0 0.0
      %953 = vmatpush.msra.mxu0 0.0
      %954 = vmatpush.msra.mxu0 0.0
      %955 = vmatpush.msra.mxu0 0.0
      %956 = vmatpush.msra.mxu0 0.0
      %957 = vmatpush.msra.mxu0 %v941
      %958 = vmatpush.msra.mxu0 %v929
      %959 = vmatmul.f32.gmra.mxu0 %v937
      %v960 = vpop.f32.mrf.mxu0
      %v961 = vadd.f32 %v933, %v960
      %962 = vdwg.mxu0
      %vm963 = vcmask 257024
      %964 = vst.msk [vmem:[#allocation3] sm:$0xf] %vm963, %v961
      %v965 = vld [vmem:[%s905] sm:$0xff]
      %v966 = vpack.c.bf16 %v965, %v965
      %v967 = vld [vmem:[%s17] sm:$0xf]
      %v968 = vld [vmem:[%s17 + $0x4] sm:$0xf]
      %v969 = vld [vmem:[%s17 + $0x8] sm:$0xf]
      %v970 = vld [vmem:[%s17 + $0xc] sm:$0xf]
      %v971 = vld [vmem:[%s18] sm:$0x1]
      %v973 = vperm.slane %v971, 0
      %v979 = vunpack.c.l.b16 %v967
      %v980 = vunpack.c.l.b16 %v968
      %v981 = vunpack.c.l.b16 %v969
      %v982 = vunpack.c.l.b16 %v970
      %v983 = vpack.c.b16 %v980, %v979
      %v984 = vpack.c.b16 %v982, %v981
      %vm987 = vcmask 261120
      %v989 = vsel %vm987, %v966, 0
      %991 = vmatpush.bf16.msra.mxu0 0
      %992 = vmatpush.bf16.msra.mxu0 0
      %993 = vmatpush.bf16.msra.mxu0 0
      %994 = vmatpush.bf16.msra.mxu0 0
      %995 = vmatpush.bf16.msra.mxu0 0
      %996 = vmatpush.bf16.msra.mxu0 0
      %997 = vmatpush.bf16.msra.mxu0 %v984
      %998 = vmatpush.bf16.msra.mxu0 %v983
      %999 = vmatmul.bf16.gmra.mxu0 %v989
      %v1000 = vpop.f32.mrf.mxu0
      %v1001 = vadd.f32 %v973, %v1000
      %v1002 = vpop.f32.mrf.mxu0
      %1003 = vdwg.mxu0
      %1004 = vxpose.xlu0.b32.start [1/16] %v1001, 128
      %1005 = vxpose.xlu0.b32.cont [2/16] 0.0, 128
      %1006 = vxpose.xlu0.b32.cont [3/16] 0.0, 128
      %1007 = vxpose.xlu0.b32.cont [4/16] 0.0, 128
      %1008 = vxpose.xlu0.b32.cont [5/16] 0.0, 128
      %1009 = vxpose.xlu0.b32.cont [6/16] 0.0, 128
      %1010 = vxpose.xlu0.b32.cont [7/16] 0.0, 128
      %1011 = vxpose.xlu0.b32.cont [8/16] 0.0, 128
      %1012 = vxpose.xlu0.b32.cont [9/16] 0.0, 128
      %1013 = vxpose.xlu0.b32.cont [10/16] 0.0, 128
      %1014 = vxpose.xlu0.b32.cont [11/16] 0.0, 128
      %1015 = vxpose.xlu0.b32.cont [12/16] 0.0, 128
      %1016 = vxpose.xlu0.b32.cont [13/16] 0.0, 128
      %1017 = vxpose.xlu0.b32.cont [14/16] 0.0, 128
      %1018 = vxpose.xlu0.b32.cont [15/16] 0.0, 128
      %1019 = vxpose.xlu0.b32.end [16/16] 0.0, 128
      %v1020 = vpop.trf.xlu0
      %v1021 = vpop.trf.xlu0
      %v1022 = vpop.trf.xlu0
      %v1023 = vpop.trf.xlu0
      %v1024 = vpop.trf.xlu0
      %v1025 = vpop.trf.xlu0
      %v1026 = vpop.trf.xlu0
      %v1027 = vpop.trf.xlu0
      %v1028 = vpop.trf.xlu0
      %v1029 = vpop.trf.xlu0
      %v1030 = vpop.trf.xlu0
      %v1031 = vpop.trf.xlu0
      %v1032 = vpop.trf.xlu0
      %v1033 = vpop.trf.xlu0
      %v1034 = vpop.trf.xlu0
      %v1035 = vpop.trf.xlu0
      %v1036 = vpack.c.bf16 %v1020, %v1020
      %v1037 = vpack.c.bf16 %v1021, %v1021
      %v1038 = vpack.c.bf16 %v1022, %v1022
      %v1039 = vpack.c.bf16 %v1023, %v1023
      %vm1040 = vcmask 60416
      %1041 = vst.msk [vmem:[#allocation4] sm:$0xf] %vm1040, %v1036
      %1042 = vst.msk [vmem:[#allocation4 + $0x4] sm:$0xf] %vm1040, %v1037
      %1043 = vst.msk [vmem:[#allocation4 + $0x8] sm:$0xf] %vm1040, %v1038
      %1044 = vst.msk [vmem:[#allocation4 + $0xc] sm:$0xf] %vm1040, %v1039
      %v1045 = vpack.c.bf16 %v1001, %v1001
      %1047 = vrot.lane.b32.xlu0 %v1045, 96
      %v1048 = vpop.permute.xlu0 %1047
      %1050 = vst.msk [vmem:[#allocation5] sm:$0xf] %vm963, %v1048
      %s1051 = scalar_lea.vmem %s17, 16
      %v1052 = vld [vmem:[%s1051] sm:$0xf]
      %v1053 = vld [vmem:[%s1051 + $0x4] sm:$0xf]
      %v1054 = vld [vmem:[%s1051 + $0x8] sm:$0xf]
      %v1055 = vld [vmem:[%s1051 + $0xc] sm:$0xf]
      %s1056 = scalar_lea.vmem %s18, 1
      %v1057 = vld [vmem:[%s1056] sm:$0x1]
      %v1059 = vperm.slane %v1057, 0
      %v1065 = vunpack.c.l.b16 %v1052
      %v1066 = vunpack.c.l.b16 %v1053
      %v1067 = vunpack.c.l.b16 %v1054
      %v1068 = vunpack.c.l.b16 %v1055
      %v1069 = vpack.c.b16 %v1066, %v1065
      %v1070 = vpack.c.b16 %v1068, %v1067
      %1073 = vmatpush.bf16.msra.mxu0 0
      %1074 = vmatpush.bf16.msra.mxu0 0
      %1075 = vmatpush.bf16.msra.mxu0 0
      %1076 = vmatpush.bf16.msra.mxu0 0
      %1077 = vmatpush.bf16.msra.mxu0 0
      %1078 = vmatpush.bf16.msra.mxu0 0
      %1079 = vmatpush.bf16.msra.mxu0 %v1070
      %1080 = vmatpush.bf16.msra.mxu0 %v1069
      %1081 = vmatmul.bf16.gmra.mxu0 %v989
      %v1082 = vpop.f32.mrf.mxu0
      %v1083 = vadd.f32 %v1059, %v1082
      %v1084 = vpop.f32.mrf.mxu0
      %1085 = vdwg.mxu0
      %1086 = vxpose.xlu0.b32.start [1/16] %v1083, 128
      %1087 = vxpose.xlu0.b32.cont [2/16] 0.0, 128
      %1088 = vxpose.xlu0.b32.cont [3/16] 0.0, 128
      %1089 = vxpose.xlu0.b32.cont [4/16] 0.0, 128
      %1090 = vxpose.xlu0.b32.cont [5/16] 0.0, 128
      %1091 = vxpose.xlu0.b32.cont [6/16] 0.0, 128
      %1092 = vxpose.xlu0.b32.cont [7/16] 0.0, 128
      %1093 = vxpose.xlu0.b32.cont [8/16] 0.0, 128
      %1094 = vxpose.xlu0.b32.cont [9/16] 0.0, 128
      %1095 = vxpose.xlu0.b32.cont [10/16] 0.0, 128
      %1096 = vxpose.xlu0.b32.cont [11/16] 0.0, 128
      %1097 = vxpose.xlu0.b32.cont [12/16] 0.0, 128
      %1098 = vxpose.xlu0.b32.cont [13/16] 0.0, 128
      %1099 = vxpose.xlu0.b32.cont [14/16] 0.0, 128
      %1100 = vxpose.xlu0.b32.cont [15/16] 0.0, 128
      %1101 = vxpose.xlu0.b32.end [16/16] 0.0, 128
      %v1102 = vpop.trf.xlu0
      %v1103 = vpop.trf.xlu0
      %v1104 = vpop.trf.xlu0
      %v1105 = vpop.trf.xlu0
      %v1106 = vpop.trf.xlu0
      %v1107 = vpop.trf.xlu0
      %v1108 = vpop.trf.xlu0
      %v1109 = vpop.trf.xlu0
      %v1110 = vpop.trf.xlu0
      %v1111 = vpop.trf.xlu0
      %v1112 = vpop.trf.xlu0
      %v1113 = vpop.trf.xlu0
      %v1114 = vpop.trf.xlu0
      %v1115 = vpop.trf.xlu0
      %v1116 = vpop.trf.xlu0
      %v1117 = vpop.trf.xlu0
      %v1118 = vpack.c.bf16 %v1102, %v1102
      %v1119 = vpack.c.bf16 %v1103, %v1103
      %v1120 = vpack.c.bf16 %v1104, %v1104
      %v1121 = vpack.c.bf16 %v1105, %v1105
      %s1122 = scalar_lea.vmem [#allocation4], 16
      %1123 = vst.msk [vmem:[%s1122] sm:$0xf] %vm1040, %v1118
      %1124 = vst.msk [vmem:[%s1122 + $0x4] sm:$0xf] %vm1040, %v1119
      %1125 = vst.msk [vmem:[%s1122 + $0x8] sm:$0xf] %vm1040, %v1120
      %1126 = vst.msk [vmem:[%s1122 + $0xc] sm:$0xf] %vm1040, %v1121
      %v1127 = vpack.c.bf16 %v1083, %v1083
      %1129 = vrot.lane.b32.xlu0 %v1127, 96
      %v1130 = vpop.permute.xlu0 %1129
      %s1132 = scalar_lea.vmem [#allocation5], 4
      %1133 = vst.msk [vmem:[%s1132] sm:$0xf] %vm963, %v1130
      %v1134 = vld [vmem:[%s909] sm:$0xf]
      %v1135 = vld [vmem:[%s913] sm:$0xf]
      loop: start=0, step=1, limit=3
      $region129: #{future_decoder_forward.1} parent=127 // loop_pre_header
        _
      $region130: #{future_decoder_forward.1} parent=127 // loop_header
        %s1137 = sphi 0, %s1141
        %p1138 = scmp.ge.s32.totalorder %s1137, 3
      $region131: #{future_decoder_forward.1} parent=127 // loop_header_branch
        %1140 = sbr.rel (%p1138) target = $region135
      $region132: #{future_decoder_forward.1} parent=127 // loop_body
        %v1142 = vld [vmem:[#allocation2] sm:$0xf]
        %v1143 = vld [vmem:[%s6] sm:$0x3]
        %v1144 = vld [vmem:[#allocation3] sm:$0xf]
        %vm1145 = vcmask 15360
        %v1147 = vsel %vm1145, %v1142, 0
        %vm1149 = vcmask 1041408
        %v1151 = vsel %vm1149, %v1143, 0
        %1153 = vmatpush.msra.mxu0 0.0
        %1154 = vmatpush.msra.mxu0 0.0
        %1155 = vmatpush.msra.mxu0 0.0
        %1156 = vmatpush.msra.mxu0 0.0
        %1157 = vmatpush.msra.mxu0 0.0
        %1158 = vmatpush.msra.mxu0 0.0
        %1159 = vmatpush.msra.mxu0 0.0
        %1160 = vmatpush.msra.mxu0 0.0
        %1161 = vmatpush.msra.mxu0 0.0
        %1162 = vmatpush.msra.mxu0 0.0
        %1163 = vmatpush.msra.mxu0 0.0
        %1164 = vmatpush.msra.mxu0 0.0
        %1165 = vmatpush.msra.mxu0 0.0
        %1166 = vmatpush.msra.mxu0 0.0
        %1167 = vmatpush.msra.mxu0 0.0
        %1168 = vmatpush.msra.mxu0 %v1151
        %1169 = vmatmul.f32.gmra.mxu0 %v1147
        %v1170 = vpop.f32.mrf.mxu0
        %v1171 = vadd.f32 %v1144, %v1170
        %1172 = vdwg.mxu0
        %s1173 = scalar_lea.vmem %s3, %s1137
        %v1174 = vld [vmem:[%s1173] sm:$0x1]
        %v1176 = vperm.slane %v1174, 0
        %v1178 = vadd.f32 %v1171, %v1176
        %v1179 = vpack.c.bf16 %v1178, %v1178
        %v1180 = vld [vmem:[%s11] sm:$0xf]
        %v1181 = vld [vmem:[%s11 + $0x4] sm:$0xf]
        %v1182 = vld [vmem:[%s11 + $0x8] sm:$0xf]
        %v1183 = vld [vmem:[%s11 + $0xc] sm:$0xf]
        %v1184 = vld [vmem:[%s12] sm:$0x1]
        %v1186 = vperm.slane %v1184, 0
        %v1192 = vunpack.c.l.b16 %v1180
        %v1193 = vunpack.c.l.b16 %v1181
        %v1194 = vunpack.c.l.b16 %v1182
        %v1195 = vunpack.c.l.b16 %v1183
        %v1196 = vpack.c.b16 %v1193, %v1192
        %v1197 = vpack.c.b16 %v1195, %v1194
        %v1201 = vsel %vm987, %v1179, 0
        %1203 = vmatpush.bf16.msra.mxu0 0
        %1204 = vmatpush.bf16.msra.mxu0 0
        %1205 = vmatpush.bf16.msra.mxu0 0
        %1206 = vmatpush.bf16.msra.mxu0 0
        %1207 = vmatpush.bf16.msra.mxu0 0
        %1208 = vmatpush.bf16.msra.mxu0 0
        %1209 = vmatpush.bf16.msra.mxu0 %v1197
        %1210 = vmatpush.bf16.msra.mxu0 %v1196
        %1211 = vmatmul.bf16.gmra.mxu0 %v1201
        %v1212 = vpop.f32.mrf.mxu0
        %v1213 = vadd.f32 %v1186, %v1212
        %v1214 = vpop.f32.mrf.mxu0
        %1215 = vdwg.mxu0
        %v1216 = vpack.c.bf16 %v1213, %v1213
        %v1217 = vld [vmem:[%s13] sm:$0xf]
        %v1218 = vld [vmem:[%s13 + $0x4] sm:$0xf]
        %v1219 = vld [vmem:[%s13 + $0x8] sm:$0xf]
        %v1220 = vld [vmem:[%s13 + $0xc] sm:$0xf]
        %v1222 = vunpack.c.l.b16 %v1216
        %v1223 = vpack.c.b16 %v1222, %v1222
        %1224 = vrot.lane.b32.xlu0 %v1223, 96
        %v1225 = vpop.permute.xlu0 %1224
        %vm1226 = vcmask 130048
        %v1228 = vsel %vm1226, %v1216, 0
        %v1231 = vsel %vm1226, %v1225, 0
        %1233 = vmatpush.bf16.xpose.msra.mxu0 0
        %1234 = vmatpush.bf16.xpose.msra.mxu0 0
        %1235 = vmatpush.bf16.xpose.msra.mxu0 0
        %1236 = vmatpush.bf16.xpose.msra.mxu0 0
        %1237 = vmatpush.bf16.xpose.msra.mxu0 0
        %1238 = vmatpush.bf16.xpose.msra.mxu0 0
        %1239 = vmatpush.bf16.xpose.msra.mxu0 0
        %1240 = vmatpush.bf16.xpose.msra.mxu0 %v1231
        %1241 = vmatmul.bf16.gmra.mxu0 %v1228
        %v1242 = vpop.f32.mrf.mxu0
        %v1243 = vadd.f32 0.0, %v1242
        %v1244 = vpop.f32.mrf.mxu0
        %1245 = vdwg.mxu0
        %v1246 = vmul.f32 %v1243, 0.25
        %v1247 = vadd.f32 %v1246, %v1134
        %vm1248 = vcmask 27648
        %v1249 = vsel %vm1248, %v1247, -inf
        %1250 = vmax.xlane.f32.xlu0 %v1249
        %v1251 = vpop.xlane.xlu0 %1250
        %v1252 = vsub.f32 %v1247, %v1251
        %v1253 = vmul.f32 %v1252, 1.442695
        %v1254 = vpow.pop %v1253
        %v1255 = vsel %vm1248, %v1254, 0.0
        %1256 = vadd.xlane.f32.xlu0 %v1255
        %v1257 = vpop.xlane.xlu0 %1256
        %v1258 = vrcp.pop %v1257
        %v1259 = vmul.f32 %v1254, %v1258
        %v1260 = vpack.c.bf16 %v1259, %v1259
        %1261 = vrot.lane.b32.xlu0 %v1223, 64
        %v1262 = vpop.permute.xlu0 %1261
        %vm1263 = vcmask 31744
        %v1265 = vsel %vm1263, %v1260, 0
        %v1268 = vsel %vm1149, %v1262, 0
        %1270 = vmatpush.bf16.msra.mxu0 0
        %1271 = vmatpush.bf16.msra.mxu0 0
        %1272 = vmatpush.bf16.msra.mxu0 0
        %1273 = vmatpush.bf16.msra.mxu0 0
        %1274 = vmatpush.bf16.msra.mxu0 0
        %1275 = vmatpush.bf16.msra.mxu0 0
        %1276 = vmatpush.bf16.msra.mxu0 0
        %1277 = vmatpush.bf16.msra.mxu0 %v1268
        %1278 = vmatmul.bf16.gmra.mxu0 %v1265
        %v1279 = vpop.f32.mrf.mxu0
        %v1280 = vadd.f32 0.0, %v1279
        %v1281 = vpop.f32.mrf.mxu0
        %1282 = vdwg.mxu0
        %1283 = vrot.lane.b32.xlu0 %v1223, 112
        %v1284 = vpop.permute.xlu0 %1283
        %1285 = vrot.lane.b32.xlu0 %v1223, 80
        %v1286 = vpop.permute.xlu0 %1285
        %v1288 = vsel %vm1226, %v1284, 0
        %v1291 = vsel %vm1226, %v1286, 0
        %1293 = vmatpush.bf16.xpose.msra.mxu0 0
        %1294 = vmatpush.bf16.xpose.msra.mxu0 0
        %1295 = vmatpush.bf16.xpose.msra.mxu0 0
        %1296 = vmatpush.bf16.xpose.msra.mxu0 0
        %1297 = vmatpush.bf16.xpose.msra.mxu0 0
        %1298 = vmatpush.bf16.xpose.msra.mxu0 0
        %1299 = vmatpush.bf16.xpose.msra.mxu0 0
        %1300 = vmatpush.bf16.xpose.msra.mxu0 %v1291
        %1301 = vmatmul.bf16.gmra.mxu0 %v1288
        %v1302 = vpop.f32.mrf.mxu0
        %v1303 = vadd.f32 0.0, %v1302
        %v1304 = vpop.f32.mrf.mxu0
        %1305 = vdwg.mxu0
        %v1306 = vmul.f32 %v1303, 0.25
        %v1307 = vadd.f32 %v1306, %v1134
        %v1308 = vsel %vm1248, %v1307, -inf
        %1309 = vmax.xlane.f32.xlu0 %v1308
        %v1310 = vpop.xlane.xlu0 %1309
        %v1311 = vsub.f32 %v1307, %v1310
        %v1312 = vmul.f32 %v1311, 1.442695
        %v1313 = vpow.pop %v1312
        %v1314 = vsel %vm1248, %v1313, 0.0
        %1315 = vadd.xlane.f32.xlu0 %v1314
        %v1316 = vpop.xlane.xlu0 %1315
        %v1317 = vrcp.pop %v1316
        %v1318 = vmul.f32 %v1313, %v1317
        %v1319 = vpack.c.bf16 %v1318, %v1318
        %1320 = vrot.lane.b32.xlu0 %v1223, 48
        %v1321 = vpop.permute.xlu0 %1320
        %v1323 = vsel %vm1263, %v1319, 0
        %v1326 = vsel %vm1149, %v1321, 0
        %1328 = vmatpush.bf16.msra.mxu0 0
        %1329 = vmatpush.bf16.msra.mxu0 0
        %1330 = vmatpush.bf16.msra.mxu0 0
        %1331 = vmatpush.bf16.msra.mxu0 0
        %1332 = vmatpush.bf16.msra.mxu0 0
        %1333 = vmatpush.bf16.msra.mxu0 0
        %1334 = vmatpush.bf16.msra.mxu0 0
        %1335 = vmatpush.bf16.msra.mxu0 %v1326
        %1336 = vmatmul.bf16.gmra.mxu0 %v1323
        %v1337 = vpop.f32.mrf.mxu0
        %v1338 = vadd.f32 0.0, %v1337
        %v1339 = vpop.f32.mrf.mxu0
        %1340 = vdwg.mxu0
        %1342 = vrot.lane.b32.xlu0 %v1338, 16
        %v1343 = vpop.permute.xlu0 %1342
        %v1345 = vsel %vm1226, %v1280, %v1343
        %v1346 = vpack.c.bf16 %v1345, %v1345
        %v1351 = vunpack.c.l.b16 %v1217
        %v1352 = vunpack.c.l.b16 %v1218
        %v1353 = vunpack.c.l.b16 %v1219
        %v1354 = vunpack.c.l.b16 %v1220
        %v1355 = vpack.c.b16 %v1352, %v1351
        %v1356 = vpack.c.b16 %v1354, %v1353
        %v1360 = vsel %vm987, %v1346, 0
        %1362 = vmatpush.bf16.msra.mxu0 0
        %1363 = vmatpush.bf16.msra.mxu0 0
        %1364 = vmatpush.bf16.msra.mxu0 0
        %1365 = vmatpush.bf16.msra.mxu0 0
        %1366 = vmatpush.bf16.msra.mxu0 0
        %1367 = vmatpush.bf16.msra.mxu0 0
        %1368 = vmatpush.bf16.msra.mxu0 %v1356
        %1369 = vmatpush.bf16.msra.mxu0 %v1355
        %1370 = vmatmul.bf16.gmra.mxu0 %v1360
        %v1371 = vpop.f32.mrf.mxu0
        %v1372 = vadd.f32 0.0, %v1371
        %v1373 = vpop.f32.mrf.mxu0
        %1374 = vdwg.mxu0
        %v1375 = vadd.f32 %v1178, %v1372
        %v1376 = vld [vmem:[%s14] sm:$0x1]
        %v1378 = vperm.slane %v1376, 0
        %v1380 = vadd.f32 %v1375, %v1378
        %v1381 = vld [vmem:[%s25] sm:$0x1]
        %v1382 = vld [vmem:[%s26] sm:$0x1]
        %v1383 = vsel %vm963, %v1380, 0.0
        %1384 = vadd.xlane.f32.xlu0 %v1383
        %v1385 = vpop.xlane.xlu0 %1384
        %v1386 = vrcp.pop 32.0
        %v1387 = vmul.f32 32.0, %v1386
        %v1388 = vsub.f32 1.0, %v1387
        %v1389 = vmul.f32 %v1386, %v1388
        %v1390 = vadd.f32 %v1386, %v1389
        %vm1391 = vweird.f32 %v1386
        %v1392 = vsel %vm1391, %v1386, %v1390
        %v1393 = vmul.f32 %v1385, %v1392
        %v1394 = vsub.f32 %v1380, %v1393
        %v1395 = vmul.f32 %v1394, %v1394
        %v1396 = vsel %vm963, %v1395, 0.0
        %1397 = vadd.xlane.f32.xlu0 %v1396
        %v1398 = vpop.xlane.xlu0 %1397
        %v1399 = vmul.f32 %v1398, %v1392
        %v1400 = vadd.f32 %v1399, 1e-05
        %v1401 = vrsqrt.pop %v1400
        %v1402 = vmul.f32 %v1401, %v1400
        %v1403 = vmul.f32 %v1402, %v1401
        %v1404 = vmul.f32 0.5, %v1403
        %v1405 = vsub.f32 1.5, %v1404
        %v1406 = vmul.f32 %v1401, %v1405
        %vm1407 = vweird.f32 %v1400
        %vm1408 = vweird.f32 %v1401
        %vm1409 = vmor %vm1407, %vm1408
        %v1410 = vsel %vm1409, %v1401, %v1406
        %v1411 = vmul.f32 %v1394, %v1410
        %v1413 = vperm.slane %v1381, 0
        %v1415 = vmul.f32 %v1411, %v1413
        %v1417 = vperm.slane %v1382, 0
        %v1419 = vadd.f32 %v1415, %v1417
        %v1420 = vpack.c.bf16 %v1419, %v1419
        %v1421 = vld [vmem:[%s15] sm:$0xf]
        %v1422 = vld [vmem:[%s15 + $0x4] sm:$0xf]
        %v1423 = vld [vmem:[%s15 + $0x8] sm:$0xf]
        %v1424 = vld [vmem:[%s15 + $0xc] sm:$0xf]
        %v1425 = vld [vmem:[%s16] sm:$0x1]
        %v1427 = vperm.slane %v1425, 0
        %v1433 = vunpack.c.l.b16 %v1421
        %v1434 = vunpack.c.l.b16 %v1422
        %v1435 = vunpack.c.l.b16 %v1423
        %v1436 = vunpack.c.l.b16 %v1424
        %v1437 = vpack.c.b16 %v1434, %v1433
        %v1438 = vpack.c.b16 %v1436, %v1435
        %v1442 = vsel %vm987, %v1420, 0
        %1444 = vmatpush.bf16.msra.mxu0 0
        %1445 = vmatpush.bf16.msra.mxu0 0
        %1446 = vmatpush.bf16.msra.mxu0 0
        %1447 = vmatpush.bf16.msra.mxu0 0
        %1448 = vmatpush.bf16.msra.mxu0 0
        %1449 = vmatpush.bf16.msra.mxu0 0
        %1450 = vmatpush.bf16.msra.mxu0 %v1438
        %1451 = vmatpush.bf16.msra.mxu0 %v1437
        %1452 = vmatmul.bf16.gmra.mxu0 %v1442
        %v1453 = vpop.f32.mrf.mxu0
        %v1454 = vadd.f32 %v1427, %v1453
        %v1455 = vpop.f32.mrf.mxu0
        %1456 = vdwg.mxu0
        %v1457 = vpack.c.bf16 %v1454, %v1454
        %v1458 = vld [vmem:[#allocation4] sm:$0xf]
        %v1459 = vld [vmem:[#allocation4 + $0x4] sm:$0xf]
        %v1460 = vld [vmem:[#allocation4 + $0x8] sm:$0xf]
        %v1461 = vld [vmem:[#allocation4 + $0xc] sm:$0xf]
        %v1462 = vld [vmem:[#allocation5] sm:$0xf]
        %v1463 = vld [vmem:[%s19] sm:$0xf]
        %v1464 = vld [vmem:[%s19 + $0x4] sm:$0xf]
        %v1465 = vld [vmem:[%s19 + $0x8] sm:$0xf]
        %v1466 = vld [vmem:[%s19 + $0xc] sm:$0xf]
        %v1469 = vunpack.c.l.b16 %v1458
        %v1470 = vunpack.c.l.b16 %v1459
        %v1471 = vpack.c.b16 %v1470, %v1469
        %v1474 = vsel %vm1226, %v1457, 0
        %1476 = vmatpush.bf16.msra.mxu0 0
        %1477 = vmatpush.bf16.msra.mxu0 0
        %1478 = vmatpush.bf16.msra.mxu0 0
        %1479 = vmatpush.bf16.msra.mxu0 0
        %1480 = vmatpush.bf16.msra.mxu0 0
        %1481 = vmatpush.bf16.msra.mxu0 0
        %1482 = vmatpush.bf16.msra.mxu0 0
        %1483 = vmatpush.bf16.msra.mxu0 %v1471
        %1484 = vmatmul.bf16.gmra.mxu0 %v1474
        %v1485 = vpop.f32.mrf.mxu0
        %v1486 = vadd.f32 0.0, %v1485
        %v1487 = vpop.f32.mrf.mxu0
        %1488 = vdwg.mxu0
        %v1489 = vmul.f32 %v1486, 0.25
        %v1490 = vadd.f32 %v1489, %v1135
        %v1491 = vsel %vm1040, %v1490, -inf
        %1492 = vmax.xlane.f32.xlu0 %v1491
        %v1493 = vpop.xlane.xlu0 %1492
        %v1494 = vsub.f32 %v1490, %v1493
        %v1495 = vmul.f32 %v1494, 1.442695
        %v1496 = vpow.pop %v1495
        %v1497 = vsel %vm1040, %v1496, 0.0
        %1498 = vadd.xlane.f32.xlu0 %v1497
        %v1499 = vpop.xlane.xlu0 %1498
        %v1500 = vrcp.pop %v1499
        %v1501 = vmul.f32 %v1496, %v1500
        %v1502 = vpack.c.bf16 %v1501, %v1501
        %vm1503 = vcmask 64512
        %v1505 = vsel %vm1503, %v1502, 0
        %vm1507 = vcmask 1043456
        %v1509 = vsel %vm1507, %v1462, 0
        %1511 = vmatpush.bf16.msra.mxu0 0
        %1512 = vmatpush.bf16.msra.mxu0 0
        %1513 = vmatpush.bf16.msra.mxu0 0
        %1514 = vmatpush.bf16.msra.mxu0 0
        %1515 = vmatpush.bf16.msra.mxu0 0
        %1516 = vmatpush.bf16.msra.mxu0 0
        %1517 = vmatpush.bf16.msra.mxu0 0
        %1518 = vmatpush.bf16.msra.mxu0 %v1509
        %1519 = vmatmul.bf16.gmra.mxu0 %v1505
        %v1520 = vpop.f32.mrf.mxu0
        %v1521 = vadd.f32 0.0, %v1520
        %v1522 = vpop.f32.mrf.mxu0
        %1523 = vdwg.mxu0
        %v1525 = vunpack.c.l.b16 %v1457
        %v1526 = vpack.c.b16 %v1525, %v1525
        %1527 = vrot.lane.b32.xlu0 %v1526, 112
        %v1528 = vpop.permute.xlu0 %1527
        %v1531 = vunpack.c.l.b16 %v1460
        %v1532 = vunpack.c.l.b16 %v1461
        %v1533 = vpack.c.b16 %v1532, %v1531
        %v1536 = vsel %vm1226, %v1528, 0
        %1538 = vmatpush.bf16.msra.mxu0 0
        %1539 = vmatpush.bf16.msra.mxu0 0
        %1540 = vmatpush.bf16.msra.mxu0 0
        %1541 = vmatpush.bf16.msra.mxu0 0
        %1542 = vmatpush.bf16.msra.mxu0 0
        %1543 = vmatpush.bf16.msra.mxu0 0
        %1544 = vmatpush.bf16.msra.mxu0 0
        %1545 = vmatpush.bf16.msra.mxu0 %v1533
        %1546 = vmatmul.bf16.gmra.mxu0 %v1536
        %v1547 = vpop.f32.mrf.mxu0
        %v1548 = vadd.f32 0.0, %v1547
        %v1549 = vpop.f32.mrf.mxu0
        %1550 = vdwg.mxu0
        %v1551 = vmul.f32 %v1548, 0.25
        %v1552 = vadd.f32 %v1551, %v1135
        %v1553 = vsel %vm1040, %v1552, -inf
        %1554 = vmax.xlane.f32.xlu0 %v1553
        %v1555 = vpop.xlane.xlu0 %1554
        %v1556 = vsub.f32 %v1552, %v1555
        %v1557 = vmul.f32 %v1556, 1.442695
        %v1558 = vpow.pop %v1557
        %v1559 = vsel %vm1040, %v1558, 0.0
        %1560 = vadd.xlane.f32.xlu0 %v1559
        %v1561 = vpop.xlane.xlu0 %1560
        %v1562 = vrcp.pop %v1561
        %v1563 = vmul.f32 %v1558, %v1562
        %v1564 = vpack.c.bf16 %v1563, %v1563
        %v1566 = vunpack.c.l.b16 %v1462
        %v1567 = vpack.c.b16 %v1566, %v1566
        %1568 = vrot.lane.b32.xlu0 %v1567, 112
        %v1569 = vpop.permute.xlu0 %1568
        %v1571 = vsel %vm1503, %v1564, 0
        %v1574 = vsel %vm1507, %v1569, 0
        %1576 = vmatpush.bf16.msra.mxu0 0
        %1577 = vmatpush.bf16.msra.mxu0 0
        %1578 = vmatpush.bf16.msra.mxu0 0
        %1579 = vmatpush.bf16.msra.mxu0 0
        %1580 = vmatpush.bf16.msra.mxu0 0
        %1581 = vmatpush.bf16.msra.mxu0 0
        %1582 = vmatpush.bf16.msra.mxu0 0
        %1583 = vmatpush.bf16.msra.mxu0 %v1574
        %1584 = vmatmul.bf16.gmra.mxu0 %v1571
        %v1585 = vpop.f32.mrf.mxu0
        %v1586 = vadd.f32 0.0, %v1585
        %v1587 = vpop.f32.mrf.mxu0
        %1588 = vdwg.mxu0
        %1590 = vrot.lane.b32.xlu0 %v1586, 16
        %v1591 = vpop.permute.xlu0 %1590
        %v1593 = vsel %vm1226, %v1521, %v1591
        %v1594 = vpack.c.bf16 %v1593, %v1593
        %v1599 = vunpack.c.l.b16 %v1463
        %v1600 = vunpack.c.l.b16 %v1464
        %v1601 = vunpack.c.l.b16 %v1465
        %v1602 = vunpack.c.l.b16 %v1466
        %v1603 = vpack.c.b16 %v1600, %v1599
        %v1604 = vpack.c.b16 %v1602, %v1601
        %v1608 = vsel %vm987, %v1594, 0
        %1610 = vmatpush.bf16.msra.mxu0 0
        %1611 = vmatpush.bf16.msra.mxu0 0
        %1612 = vmatpush.bf16.msra.mxu0 0
        %1613 = vmatpush.bf16.msra.mxu0 0
        %1614 = vmatpush.bf16.msra.mxu0 0
        %1615 = vmatpush.bf16.msra.mxu0 0
        %1616 = vmatpush.bf16.msra.mxu0 %v1604
        %1617 = vmatpush.bf16.msra.mxu0 %v1603
        %1618 = vmatmul.bf16.gmra.mxu0 %v1608
        %v1619 = vpop.f32.mrf.mxu0
        %v1620 = vadd.f32 0.0, %v1619
        %v1621 = vpop.f32.mrf.mxu0
        %1622 = vdwg.mxu0
        %v1623 = vadd.f32 %v1419, %v1620
        %v1624 = vld [vmem:[%s20] sm:$0x1]
        %v1626 = vperm.slane %v1624, 0
        %v1628 = vadd.f32 %v1623, %v1626
        %s1629 = scalar_lea.vmem %s25, 1
        %v1630 = vld [vmem:[%s1629] sm:$0x1]
        %s1631 = scalar_lea.vmem %s26, 1
        %v1632 = vld [vmem:[%s1631] sm:$0x1]
        %v1633 = vsel %vm963, %v1628, 0.0
        %1634 = vadd.xlane.f32.xlu0 %v1633
        %v1635 = vpop.xlane.xlu0 %1634
        %v1636 = vmul.f32 %v1635, %v1392
        %v1637 = vsub.f32 %v1628, %v1636
        %v1638 = vmul.f32 %v1637, %v1637
        %v1639 = vsel %vm963, %v1638, 0.0
        %1640 = vadd.xlane.f32.xlu0 %v1639
        %v1641 = vpop.xlane.xlu0 %1640
        %v1642 = vmul.f32 %v1641, %v1392
        %v1643 = vadd.f32 %v1642, 1e-05
        %v1644 = vrsqrt.pop %v1643
        %v1645 = vmul.f32 %v1644, %v1643
        %v1646 = vmul.f32 %v1645, %v1644
        %v1647 = vmul.f32 0.5, %v1646
        %v1648 = vsub.f32 1.5, %v1647
        %v1649 = vmul.f32 %v1644, %v1648
        %vm1650 = vweird.f32 %v1643
        %vm1651 = vweird.f32 %v1644
        %vm1652 = vmor %vm1650, %vm1651
        %v1653 = vsel %vm1652, %v1644, %v1649
        %v1654 = vmul.f32 %v1637, %v1653
        %v1656 = vperm.slane %v1630, 0
        %v1658 = vmul.f32 %v1654, %v1656
        %v1660 = vperm.slane %v1632, 0
        %v1662 = vadd.f32 %v1658, %v1660
        %v1663 = vpack.c.bf16 %v1662, %v1662
        %v1664 = vld [vmem:[%s21] sm:$0xf]
        %v1665 = vld [vmem:[%s21 + $0x4] sm:$0xf]
        %v1666 = vld [vmem:[%s21 + $0x8] sm:$0xf]
        %v1667 = vld [vmem:[%s21 + $0xc] sm:$0xf]
        %v1668 = vld [vmem:[%s22] sm:$0x1]
        %v1670 = vperm.slane %v1668, 0
        %v1676 = vunpack.c.l.b16 %v1664
        %v1677 = vunpack.c.l.b16 %v1665
        %v1678 = vunpack.c.l.b16 %v1666
        %v1679 = vunpack.c.l.b16 %v1667
        %v1680 = vpack.c.b16 %v1677, %v1676
        %v1681 = vpack.c.b16 %v1679, %v1678
        %v1685 = vsel %vm987, %v1663, 0
        %1687 = vmatpush.bf16.msra.mxu0 0
        %1688 = vmatpush.bf16.msra.mxu0 0
        %1689 = vmatpush.bf16.msra.mxu0 0
        %1690 = vmatpush.bf16.msra.mxu0 0
        %1691 = vmatpush.bf16.msra.mxu0 0
        %1692 = vmatpush.bf16.msra.mxu0 0
        %1693 = vmatpush.bf16.msra.mxu0 %v1681
        %1694 = vmatpush.bf16.msra.mxu0 %v1680
        %1695 = vmatmul.bf16.gmra.mxu0 %v1685
        %v1696 = vpop.f32.mrf.mxu0
        %v1697 = vadd.f32 %v1670, %v1696
        %v1698 = vpop.f32.mrf.mxu0
        %1699 = vdwg.mxu0
        %v1700 = vmax.f32 %v1697, 0.0
        %v1701 = vpack.c.bf16 %v1700, %v1700
        %v1702 = vld [vmem:[%s23] sm:$0xf]
        %v1703 = vld [vmem:[%s23 + $0x4] sm:$0xf]
        %v1704 = vld [vmem:[%s23 + $0x8] sm:$0xf]
        %v1705 = vld [vmem:[%s23 + $0xc] sm:$0xf]
        %v1706 = vld [vmem:[%s23 + $0x10] sm:$0xf]
        %v1707 = vld [vmem:[%s23 + $0x14] sm:$0xf]
        %v1708 = vld [vmem:[%s23 + $0x18] sm:$0xf]
        %v1709 = vld [vmem:[%s23 + $0x1c] sm:$0xf]
        %v1710 = vld [vmem:[%s24] sm:$0x1]
        %v1712 = vperm.slane %v1710, 0
        %v1722 = vunpack.c.l.b16 %v1702
        %v1723 = vunpack.c.l.b16 %v1703
        %v1724 = vunpack.c.l.b16 %v1704
        %v1725 = vunpack.c.l.b16 %v1705
        %v1726 = vunpack.c.l.b16 %v1706
        %v1727 = vunpack.c.l.b16 %v1707
        %v1728 = vunpack.c.l.b16 %v1708
        %v1729 = vunpack.c.l.b16 %v1709
        %v1730 = vpack.c.b16 %v1723, %v1722
        %v1731 = vpack.c.b16 %v1725, %v1724
        %v1732 = vpack.c.b16 %v1727, %v1726
        %v1733 = vpack.c.b16 %v1729, %v1728
        %vm1738 = vcmask 523264
        %v1740 = vsel %vm1738, %v1701, 0
        %1742 = vmatpush.bf16.msra.mxu0 0
        %1743 = vmatpush.bf16.msra.mxu0 0
        %1744 = vmatpush.bf16.msra.mxu0 0
        %1745 = vmatpush.bf16.msra.mxu0 0
        %1746 = vmatpush.bf16.msra.mxu0 %v1733
        %1747 = vmatpush.bf16.msra.mxu0 %v1732
        %1748 = vmatpush.bf16.msra.mxu0 %v1731
        %1749 = vmatpush.bf16.msra.mxu0 %v1730
        %1750 = vmatmul.bf16.gmra.mxu0 %v1740
        %v1751 = vpop.f32.mrf.mxu0
        %v1752 = vadd.f32 %v1712, %v1751
        %v1753 = vpop.f32.mrf.mxu0
        %1754 = vdwg.mxu0
        %v1755 = vadd.f32 %v1662, %v1752
        %s1756 = scalar_lea.vmem %s25, 2
        %v1757 = vld [vmem:[%s1756] sm:$0x1]
        %s1758 = scalar_lea.vmem %s26, 2
        %v1759 = vld [vmem:[%s1758] sm:$0x1]
        %v1760 = vsel %vm963, %v1755, 0.0
        %1761 = vadd.xlane.f32.xlu0 %v1760
        %v1762 = vpop.xlane.xlu0 %1761
        %v1763 = vmul.f32 %v1762, %v1392
        %v1764 = vsub.f32 %v1755, %v1763
        %v1765 = vmul.f32 %v1764, %v1764
        %v1766 = vsel %vm963, %v1765, 0.0
        %1767 = vadd.xlane.f32.xlu0 %v1766
        %v1768 = vpop.xlane.xlu0 %1767
        %v1769 = vmul.f32 %v1768, %v1392
        %v1770 = vadd.f32 %v1769, 1e-05
        %v1771 = vrsqrt.pop %v1770
        %v1772 = vmul.f32 %v1771, %v1770
        %v1773 = vmul.f32 %v1772, %v1771
        %v1774 = vmul.f32 0.5, %v1773
        %v1775 = vsub.f32 1.5, %v1774
        %v1776 = vmul.f32 %v1771, %v1775
        %vm1777 = vweird.f32 %v1770
        %vm1778 = vweird.f32 %v1771
        %vm1779 = vmor %vm1777, %vm1778
        %v1780 = vsel %vm1779, %v1771, %v1776
        %v1781 = vmul.f32 %v1764, %v1780
        %v1783 = vperm.slane %v1757, 0
        %v1785 = vmul.f32 %v1781, %v1783
        %v1787 = vperm.slane %v1759, 0
        %v1789 = vadd.f32 %v1785, %v1787
        %v1790 = vpack.c.bf16 %v1789, %v1789
        %s1791 = scalar_lea.vmem %s11, 16
        %v1792 = vld [vmem:[%s1791] sm:$0xf]
        %v1793 = vld [vmem:[%s1791 + $0x4] sm:$0xf]
        %v1794 = vld [vmem:[%s1791 + $0x8] sm:$0xf]
        %v1795 = vld [vmem:[%s1791 + $0xc] sm:$0xf]
        %s1796 = scalar_lea.vmem %s12, 1
        %v1797 = vld [vmem:[%s1796] sm:$0x1]
        %v1799 = vperm.slane %v1797, 0
        %v1805 = vunpack.c.l.b16 %v1792
        %v1806 = vunpack.c.l.b16 %v1793
        %v1807 = vunpack.c.l.b16 %v1794
        %v1808 = vunpack.c.l.b16 %v1795
        %v1809 = vpack.c.b16 %v1806, %v1805
        %v1810 = vpack.c.b16 %v1808, %v1807
        %v1814 = vsel %vm987, %v1790, 0
        %1816 = vmatpush.bf16.msra.mxu0 0
        %1817 = vmatpush.bf16.msra.mxu0 0
        %1818 = vmatpush.bf16.msra.mxu0 0
        %1819 = vmatpush.bf16.msra.mxu0 0
        %1820 = vmatpush.bf16.msra.mxu0 0
        %1821 = vmatpush.bf16.msra.mxu0 0
        %1822 = vmatpush.bf16.msra.mxu0 %v1810
        %1823 = vmatpush.bf16.msra.mxu0 %v1809
        %1824 = vmatmul.bf16.gmra.mxu0 %v1814
        %v1825 = vpop.f32.mrf.mxu0
        %v1826 = vadd.f32 %v1799, %v1825
        %v1827 = vpop.f32.mrf.mxu0
        %1828 = vdwg.mxu0
        %v1829 = vpack.c.bf16 %v1826, %v1826
        %s1830 = scalar_lea.vmem %s13, 16
        %v1831 = vld [vmem:[%s1830] sm:$0xf]
        %v1832 = vld [vmem:[%s1830 + $0x4] sm:$0xf]
        %v1833 = vld [vmem:[%s1830 + $0x8] sm:$0xf]
        %v1834 = vld [vmem:[%s1830 + $0xc] sm:$0xf]
        %v1836 = vunpack.c.l.b16 %v1829
        %v1837 = vpack.c.b16 %v1836, %v1836
        %1838 = vrot.lane.b32.xlu0 %v1837, 96
        %v1839 = vpop.permute.xlu0 %1838
        %v1841 = vsel %vm1226, %v1829, 0
        %v1844 = vsel %vm1226, %v1839, 0
        %1846 = vmatpush.bf16.xpose.msra.mxu0 0
        %1847 = vmatpush.bf16.xpose.msra.mxu0 0
        %1848 = vmatpush.bf16.xpose.msra.mxu0 0
        %1849 = vmatpush.bf16.xpose.msra.mxu0 0
        %1850 = vmatpush.bf16.xpose.msra.mxu0 0
        %1851 = vmatpush.bf16.xpose.msra.mxu0 0
        %1852 = vmatpush.bf16.xpose.msra.mxu0 0
        %1853 = vmatpush.bf16.xpose.msra.mxu0 %v1844
        %1854 = vmatmul.bf16.gmra.mxu0 %v1841
        %v1855 = vpop.f32.mrf.mxu0
        %v1856 = vadd.f32 0.0, %v1855
        %v1857 = vpop.f32.mrf.mxu0
        %1858 = vdwg.mxu0
        %v1859 = vmul.f32 %v1856, 0.25
        %v1860 = vadd.f32 %v1859, %v1134
        %v1861 = vsel %vm1248, %v1860, -inf
        %1862 = vmax.xlane.f32.xlu0 %v1861
        %v1863 = vpop.xlane.xlu0 %1862
        %v1864 = vsub.f32 %v1860, %v1863
        %v1865 = vmul.f32 %v1864, 1.442695
        %v1866 = vpow.pop %v1865
        %v1867 = vsel %vm1248, %v1866, 0.0
        %1868 = vadd.xlane.f32.xlu0 %v1867
        %v1869 = vpop.xlane.xlu0 %1868
        %v1870 = vrcp.pop %v1869
        %v1871 = vmul.f32 %v1866, %v1870
        %v1872 = vpack.c.bf16 %v1871, %v1871
        %1873 = vrot.lane.b32.xlu0 %v1837, 64
        %v1874 = vpop.permute.xlu0 %1873
        %v1876 = vsel %vm1263, %v1872, 0
        %v1879 = vsel %vm1149, %v1874, 0
        %1881 = vmatpush.bf16.msra.mxu0 0
        %1882 = vmatpush.bf16.msra.mxu0 0
        %1883 = vmatpush.bf16.msra.mxu0 0
        %1884 = vmatpush.bf16.msra.mxu0 0
        %1885 = vmatpush.bf16.msra.mxu0 0
        %1886 = vmatpush.bf16.msra.mxu0 0
        %1887 = vmatpush.bf16.msra.mxu0 0
        %1888 = vmatpush.bf16.msra.mxu0 %v1879
        %1889 = vmatmul.bf16.gmra.mxu0 %v1876
        %v1890 = vpop.f32.mrf.mxu0
        %v1891 = vadd.f32 0.0, %v1890
        %v1892 = vpop.f32.mrf.mxu0
        %1893 = vdwg.mxu0
        %1894 = vrot.lane.b32.xlu0 %v1837, 112
        %v1895 = vpop.permute.xlu0 %1894
        %1896 = vrot.lane.b32.xlu0 %v1837, 80
        %v1897 = vpop.permute.xlu0 %1896
        %v1899 = vsel %vm1226, %v1895, 0
        %v1902 = vsel %vm1226, %v1897, 0
        %1904 = vmatpush.bf16.xpose.msra.mxu0 0
        %1905 = vmatpush.bf16.xpose.msra.mxu0 0
        %1906 = vmatpush.bf16.xpose.msra.mxu0 0
        %1907 = vmatpush.bf16.xpose.msra.mxu0 0
        %1908 = vmatpush.bf16.xpose.msra.mxu0 0
        %1909 = vmatpush.bf16.xpose.msra.mxu0 0
        %1910 = vmatpush.bf16.xpose.msra.mxu0 0
        %1911 = vmatpush.bf16.xpose.msra.mxu0 %v1902
        %1912 = vmatmul.bf16.gmra.mxu0 %v1899
        %v1913 = vpop.f32.mrf.mxu0
        %v1914 = vadd.f32 0.0, %v1913
        %v1915 = vpop.f32.mrf.mxu0
        %1916 = vdwg.mxu0
        %v1917 = vmul.f32 %v1914, 0.25
        %v1918 = vadd.f32 %v1917, %v1134
        %v1919 = vsel %vm1248, %v1918, -inf
        %1920 = vmax.xlane.f32.xlu0 %v1919
        %v1921 = vpop.xlane.xlu0 %1920
        %v1922 = vsub.f32 %v1918, %v1921
        %v1923 = vmul.f32 %v1922, 1.442695
        %v1924 = vpow.pop %v1923
        %v1925 = vsel %vm1248, %v1924, 0.0
        %1926 = vadd.xlane.f32.xlu0 %v1925
        %v1927 = vpop.xlane.xlu0 %1926
        %v1928 = vrcp.pop %v1927
        %v1929 = vmul.f32 %v1924, %v1928
        %v1930 = vpack.c.bf16 %v1929, %v1929
        %1931 = vrot.lane.b32.xlu0 %v1837, 48
        %v1932 = vpop.permute.xlu0 %1931
        %v1934 = vsel %vm1263, %v1930, 0
        %v1937 = vsel %vm1149, %v1932, 0
        %1939 = vmatpush.bf16.msra.mxu0 0
        %1940 = vmatpush.bf16.msra.mxu0 0
        %1941 = vmatpush.bf16.msra.mxu0 0
        %1942 = vmatpush.bf16.msra.mxu0 0
        %1943 = vmatpush.bf16.msra.mxu0 0
        %1944 = vmatpush.bf16.msra.mxu0 0
        %1945 = vmatpush.bf16.msra.mxu0 0
        %1946 = vmatpush.bf16.msra.mxu0 %v1937
        %1947 = vmatmul.bf16.gmra.mxu0 %v1934
        %v1948 = vpop.f32.mrf.mxu0
        %v1949 = vadd.f32 0.0, %v1948
        %v1950 = vpop.f32.mrf.mxu0
        %1951 = vdwg.mxu0
        %1953 = vrot.lane.b32.xlu0 %v1949, 16
        %v1954 = vpop.permute.xlu0 %1953
        %v1956 = vsel %vm1226, %v1891, %v1954
        %v1957 = vpack.c.bf16 %v1956, %v1956
        %v1962 = vunpack.c.l.b16 %v1831
        %v1963 = vunpack.c.l.b16 %v1832
        %v1964 = vunpack.c.l.b16 %v1833
        %v1965 = vunpack.c.l.b16 %v1834
        %v1966 = vpack.c.b16 %v1963, %v1962
        %v1967 = vpack.c.b16 %v1965, %v1964
        %v1971 = vsel %vm987, %v1957, 0
        %1973 = vmatpush.bf16.msra.mxu0 0
        %1974 = vmatpush.bf16.msra.mxu0 0
        %1975 = vmatpush.bf16.msra.mxu0 0
        %1976 = vmatpush.bf16.msra.mxu0 0
        %1977 = vmatpush.bf16.msra.mxu0 0
        %1978 = vmatpush.bf16.msra.mxu0 0
        %1979 = vmatpush.bf16.msra.mxu0 %v1967
        %1980 = vmatpush.bf16.msra.mxu0 %v1966
        %1981 = vmatmul.bf16.gmra.mxu0 %v1971
        %v1982 = vpop.f32.mrf.mxu0
        %v1983 = vadd.f32 0.0, %v1982
        %v1984 = vpop.f32.mrf.mxu0
        %1985 = vdwg.mxu0
        %v1986 = vadd.f32 %v1789, %v1983
        %s1987 = scalar_lea.vmem %s14, 1
        %v1988 = vld [vmem:[%s1987] sm:$0x1]
        %v1990 = vperm.slane %v1988, 0
        %v1992 = vadd.f32 %v1986, %v1990
        %s1993 = scalar_lea.vmem %s25, 3
        %v1994 = vld [vmem:[%s1993] sm:$0x1]
        %s1995 = scalar_lea.vmem %s26, 3
        %v1996 = vld [vmem:[%s1995] sm:$0x1]
        %v1997 = vsel %vm963, %v1992, 0.0
        %1998 = vadd.xlane.f32.xlu0 %v1997
        %v1999 = vpop.xlane.xlu0 %1998
        %v2000 = vmul.f32 %v1999, %v1392
        %v2001 = vsub.f32 %v1992, %v2000
        %v2002 = vmul.f32 %v2001, %v2001
        %v2003 = vsel %vm963, %v2002, 0.0
        %2004 = vadd.xlane.f32.xlu0 %v2003
        %v2005 = vpop.xlane.xlu0 %2004
        %v2006 = vmul.f32 %v2005, %v1392
        %v2007 = vadd.f32 %v2006, 1e-05
        %v2008 = vrsqrt.pop %v2007
        %v2009 = vmul.f32 %v2008, %v2007
        %v2010 = vmul.f32 %v2009, %v2008
        %v2011 = vmul.f32 0.5, %v2010
        %v2012 = vsub.f32 1.5, %v2011
        %v2013 = vmul.f32 %v2008, %v2012
        %vm2014 = vweird.f32 %v2007
        %vm2015 = vweird.f32 %v2008
        %vm2016 = vmor %vm2014, %vm2015
        %v2017 = vsel %vm2016, %v2008, %v2013
        %v2018 = vmul.f32 %v2001, %v2017
        %v2020 = vperm.slane %v1994, 0
        %v2022 = vmul.f32 %v2018, %v2020
        %v2024 = vperm.slane %v1996, 0
        %v2026 = vadd.f32 %v2022, %v2024
        %v2027 = vpack.c.bf16 %v2026, %v2026
        %s2028 = scalar_lea.vmem %s15, 16
        %v2029 = vld [vmem:[%s2028] sm:$0xf]
        %v2030 = vld [vmem:[%s2028 + $0x4] sm:$0xf]
        %v2031 = vld [vmem:[%s2028 + $0x8] sm:$0xf]
        %v2032 = vld [vmem:[%s2028 + $0xc] sm:$0xf]
        %s2033 = scalar_lea.vmem %s16, 1
        %v2034 = vld [vmem:[%s2033] sm:$0x1]
        %v2036 = vperm.slane %v2034, 0
        %v2042 = vunpack.c.l.b16 %v2029
        %v2043 = vunpack.c.l.b16 %v2030
        %v2044 = vunpack.c.l.b16 %v2031
        %v2045 = vunpack.c.l.b16 %v2032
        %v2046 = vpack.c.b16 %v2043, %v2042
        %v2047 = vpack.c.b16 %v2045, %v2044
        %v2051 = vsel %vm987, %v2027, 0
        %2053 = vmatpush.bf16.msra.mxu0 0
        %2054 = vmatpush.bf16.msra.mxu0 0
        %2055 = vmatpush.bf16.msra.mxu0 0
        %2056 = vmatpush.bf16.msra.mxu0 0
        %2057 = vmatpush.bf16.msra.mxu0 0
        %2058 = vmatpush.bf16.msra.mxu0 0
        %2059 = vmatpush.bf16.msra.mxu0 %v2047
        %2060 = vmatpush.bf16.msra.mxu0 %v2046
        %2061 = vmatmul.bf16.gmra.mxu0 %v2051
        %v2062 = vpop.f32.mrf.mxu0
        %v2063 = vadd.f32 %v2036, %v2062
        %v2064 = vpop.f32.mrf.mxu0
        %2065 = vdwg.mxu0
        %v2066 = vpack.c.bf16 %v2063, %v2063
        %v2067 = vld [vmem:[%s1122] sm:$0xf]
        %v2068 = vld [vmem:[%s1122 + $0x4] sm:$0xf]
        %v2069 = vld [vmem:[%s1122 + $0x8] sm:$0xf]
        %v2070 = vld [vmem:[%s1122 + $0xc] sm:$0xf]
        %v2071 = vld [vmem:[%s1132] sm:$0xf]
        %s2072 = scalar_lea.vmem %s19, 16
        %v2073 = vld [vmem:[%s2072] sm:$0xf]
        %v2074 = vld [vmem:[%s2072 + $0x4] sm:$0xf]
        %v2075 = vld [vmem:[%s2072 + $0x8] sm:$0xf]
        %v2076 = vld [vmem:[%s2072 + $0xc] sm:$0xf]
        %v2079 = vunpack.c.l.b16 %v2067
        %v2080 = vunpack.c.l.b16 %v2068
        %v2081 = vpack.c.b16 %v2080, %v2079
        %v2084 = vsel %vm1226, %v2066, 0
        %2086 = vmatpush.bf16.msra.mxu0 0
        %2087 = vmatpush.bf16.msra.mxu0 0
        %2088 = vmatpush.bf16.msra.mxu0 0
        %2089 = vmatpush.bf16.msra.mxu0 0
        %2090 = vmatpush.bf16.msra.mxu0 0
        %2091 = vmatpush.bf16.msra.mxu0 0
        %2092 = vmatpush.bf16.msra.mxu0 0
        %2093 = vmatpush.bf16.msra.mxu0 %v2081
        %2094 = vmatmul.bf16.gmra.mxu0 %v2084
        %v2095 = vpop.f32.mrf.mxu0
        %v2096 = vadd.f32 0.0, %v2095
        %v2097 = vpop.f32.mrf.mxu0
        %2098 = vdwg.mxu0
        %v2099 = vmul.f32 %v2096, 0.25
        %v2100 = vadd.f32 %v2099, %v1135
        %v2101 = vsel %vm1040, %v2100, -inf
        %2102 = vmax.xlane.f32.xlu0 %v2101
        %v2103 = vpop.xlane.xlu0 %2102
        %v2104 = vsub.f32 %v2100, %v2103
        %v2105 = vmul.f32 %v2104, 1.442695
        %v2106 = vpow.pop %v2105
        %v2107 = vsel %vm1040, %v2106, 0.0
        %2108 = vadd.xlane.f32.xlu0 %v2107
        %v2109 = vpop.xlane.xlu0 %2108
        %v2110 = vrcp.pop %v2109
        %v2111 = vmul.f32 %v2109, %v2110
        %v2112 = vsub.f32 1.0, %v2111
        %v2113 = vmul.f32 %v2110, %v2112
        %v2114 = vadd.f32 %v2110, %v2113
        %vm2115 = vweird.f32 %v2109
        %vm2116 = vweird.f32 %v2110
        %vm2117 = vmor %vm2115, %vm2116
        %v2118 = vsel %vm2117, %v2110, %v2114
        %v2119 = vand.u32 2147483647, %v2109
        %vm2120 = vcmp.eq.f32.partialorder %v2119, 8.507059e+37
        %v2121 = vand.u32 %v2109, 2147483648
        %v2122 = vor.u32 1.1754944e-38, %v2121
        %v2123 = vsel %vm2120, %v2122, %v2118
        %v2124 = vmul.f32 %v2106, %v2123
        %v2125 = vpack.c.bf16 %v2124, %v2124
        %v2127 = vsel %vm1503, %v2125, 0
        %v2130 = vsel %vm1507, %v2071, 0
        %2132 = vmatpush.bf16.msra.mxu0 0
        %2133 = vmatpush.bf16.msra.mxu0 0
        %2134 = vmatpush.bf16.msra.mxu0 0
        %2135 = vmatpush.bf16.msra.mxu0 0
        %2136 = vmatpush.bf16.msra.mxu0 0
        %2137 = vmatpush.bf16.msra.mxu0 0
        %2138 = vmatpush.bf16.msra.mxu0 0
        %2139 = vmatpush.bf16.msra.mxu0 %v2130
        %2140 = vmatmul.bf16.gmra.mxu0 %v2127
        %v2141 = vpop.f32.mrf.mxu0
        %v2142 = vadd.f32 0.0, %v2141
        %v2143 = vpop.f32.mrf.mxu0
        %2144 = vdwg.mxu0
        %v2146 = vunpack.c.l.b16 %v2066
        %v2147 = vpack.c.b16 %v2146, %v2146
        %2148 = vrot.lane.b32.xlu0 %v2147, 112
        %v2149 = vpop.permute.xlu0 %2148
        %v2152 = vunpack.c.l.b16 %v2069
        %v2153 = vunpack.c.l.b16 %v2070
        %v2154 = vpack.c.b16 %v2153, %v2152
        %v2157 = vsel %vm1226, %v2149, 0
        %2159 = vmatpush.bf16.msra.mxu0 0
        %2160 = vmatpush.bf16.msra.mxu0 0
        %2161 = vmatpush.bf16.msra.mxu0 0
        %2162 = vmatpush.bf16.msra.mxu0 0
        %2163 = vmatpush.bf16.msra.mxu0 0
        %2164 = vmatpush.bf16.msra.mxu0 0
        %2165 = vmatpush.bf16.msra.mxu0 0
        %2166 = vmatpush.bf16.msra.mxu0 %v2154
        %2167 = vmatmul.bf16.gmra.mxu0 %v2157
        %v2168 = vpop.f32.mrf.mxu0
        %v2169 = vadd.f32 0.0, %v2168
        %v2170 = vpop.f32.mrf.mxu0
        %2171 = vdwg.mxu0
        %v2172 = vmul.f32 %v2169, 0.25
        %v2173 = vadd.f32 %v2172, %v1135
        %v2174 = vsel %vm1040, %v2173, -inf
        %2175 = vmax.xlane.f32.xlu0 %v2174
        %v2176 = vpop.xlane.xlu0 %2175
        %v2177 = vsub.f32 %v2173, %v2176
        %v2178 = vmul.f32 %v2177, 1.442695
        %v2179 = vpow.pop %v2178
        %v2180 = vsel %vm1040, %v2179, 0.0
        %2181 = vadd.xlane.f32.xlu0 %v2180
        %v2182 = vpop.xlane.xlu0 %2181
        %v2183 = vrcp.pop %v2182
        %v2184 = vmul.f32 %v2182, %v2183
        %v2185 = vsub.f32 1.0, %v2184
        %v2186 = vmul.f32 %v2183, %v2185
        %v2187 = vadd.f32 %v2183, %v2186
        %vm2188 = vweird.f32 %v2182
        %vm2189 = vweird.f32 %v2183
        %vm2190 = vmor %vm2188, %vm2189
        %v2191 = vsel %vm2190, %v2183, %v2187
        %v2192 = vand.u32 2147483647, %v2182
        %vm2193 = vcmp.eq.f32.partialorder %v2192, 8.507059e+37
        %v2194 = vand.u32 %v2182, 2147483648
        %v2195 = vor.u32 1.1754944e-38, %v2194
        %v2196 = vsel %vm2193, %v2195, %v2191
        %v2197 = vmul.f32 %v2179, %v2196
        %v2198 = vadd.f32 %v2124, %v2197
        %v2199 = vpack.c.bf16 %v2197, %v2197
        %v2201 = vunpack.c.l.b16 %v2071
        %v2202 = vpack.c.b16 %v2201, %v2201
        %2203 = vrot.lane.b32.xlu0 %v2202, 112
        %v2204 = vpop.permute.xlu0 %2203
        %v2206 = vsel %vm1503, %v2199, 0
        %v2209 = vsel %vm1507, %v2204, 0
        %2211 = vmatpush.bf16.msra.mxu0 0
        %2212 = vmatpush.bf16.msra.mxu0 0
        %2213 = vmatpush.bf16.msra.mxu0 0
        %2214 = vmatpush.bf16.msra.mxu0 0
        %2215 = vmatpush.bf16.msra.mxu0 0
        %2216 = vmatpush.bf16.msra.mxu0 0
        %2217 = vmatpush.bf16.msra.mxu0 0
        %2218 = vmatpush.bf16.msra.mxu0 %v2209
        %2219 = vmatmul.bf16.gmra.mxu0 %v2206
        %v2220 = vpop.f32.mrf.mxu0
        %v2221 = vadd.f32 0.0, %v2220
        %v2222 = vpop.f32.mrf.mxu0
        %2223 = vdwg.mxu0
        %2225 = vrot.lane.b32.xlu0 %v2221, 16
        %v2226 = vpop.permute.xlu0 %2225
        %v2228 = vsel %vm1226, %v2142, %v2226
        %v2229 = vpack.c.bf16 %v2228, %v2228
        %v2234 = vunpack.c.l.b16 %v2073
        %v2235 = vunpack.c.l.b16 %v2074
        %v2236 = vunpack.c.l.b16 %v2075
        %v2237 = vunpack.c.l.b16 %v2076
        %v2238 = vpack.c.b16 %v2235, %v2234
        %v2239 = vpack.c.b16 %v2237, %v2236
        %v2243 = vsel %vm987, %v2229, 0
        %2245 = vmatpush.bf16.msra.mxu0 0
        %2246 = vmatpush.bf16.msra.mxu0 0
        %2247 = vmatpush.bf16.msra.mxu0 0
        %2248 = vmatpush.bf16.msra.mxu0 0
        %2249 = vmatpush.bf16.msra.mxu0 0
        %2250 = vmatpush.bf16.msra.mxu0 0
        %2251 = vmatpush.bf16.msra.mxu0 %v2239
        %2252 = vmatpush.bf16.msra.mxu0 %v2238
        %2253 = vmatmul.bf16.gmra.mxu0 %v2243
        %v2254 = vpop.f32.mrf.mxu0
        %v2255 = vadd.f32 0.0, %v2254
        %v2256 = vpop.f32.mrf.mxu0
        %2257 = vdwg.mxu0
        %v2258 = vmul.f32 %v2198, 0.5
        %s2259 = smul.u32 %s1137, 4
        %s2260 = scalar_lea.vmem %s923, %s2259
        %2261 = vst.msk [vmem:[%s2260] sm:$0xf] %vm1040, %v2258
        %v2262 = vadd.f32 %v2026, %v2255
        %s2263 = scalar_lea.vmem %s20, 1
        %v2264 = vld [vmem:[%s2263] sm:$0x1]
        %v2266 = vperm.slane %v2264, 0
        %v2268 = vadd.f32 %v2262, %v2266
        %s2269 = scalar_lea.vmem %s25, 4
        %v2270 = vld [vmem:[%s2269] sm:$0x1]
        %s2271 = scalar_lea.vmem %s26, 4
        %v2272 = vld [vmem:[%s2271] sm:$0x1]
        %v2273 = vsel %vm963, %v2268, 0.0
        %2274 = vadd.xlane.f32.xlu0 %v2273
        %v2275 = vpop.xlane.xlu0 %2274
        %v2276 = vmul.f32 %v2275, %v1392
        %v2277 = vsub.f32 %v2268, %v2276
        %v2278 = vmul.f32 %v2277, %v2277
        %v2279 = vsel %vm963, %v2278, 0.0
        %2280 = vadd.xlane.f32.xlu0 %v2279
        %v2281 = vpop.xlane.xlu0 %2280
        %v2282 = vmul.f32 %v2281, %v1392
        %v2283 = vadd.f32 %v2282, 1e-05
        %v2284 = vrsqrt.pop %v2283
        %v2285 = vmul.f32 %v2284, %v2283
        %v2286 = vmul.f32 %v2285, %v2284
        %v2287 = vmul.f32 0.5, %v2286
        %v2288 = vsub.f32 1.5, %v2287
        %v2289 = vmul.f32 %v2284, %v2288
        %vm2290 = vweird.f32 %v2283
        %vm2291 = vweird.f32 %v2284
        %vm2292 = vmor %vm2290, %vm2291
        %v2293 = vsel %vm2292, %v2284, %v2289
        %v2294 = vmul.f32 %v2277, %v2293
        %v2296 = vperm.slane %v2270, 0
        %v2298 = vmul.f32 %v2294, %v2296
        %v2300 = vperm.slane %v2272, 0
        %v2302 = vadd.f32 %v2298, %v2300
        %v2303 = vpack.c.bf16 %v2302, %v2302
        %s2304 = scalar_lea.vmem %s21, 16
        %v2305 = vld [vmem:[%s2304] sm:$0xf]
        %v2306 = vld [vmem:[%s2304 + $0x4] sm:$0xf]
        %v2307 = vld [vmem:[%s2304 + $0x8] sm:$0xf]
        %v2308 = vld [vmem:[%s2304 + $0xc] sm:$0xf]
        %s2309 = scalar_lea.vmem %s22, 1
        %v2310 = vld [vmem:[%s2309] sm:$0x1]
        %v2312 = vperm.slane %v2310, 0
        %v2318 = vunpack.c.l.b16 %v2305
        %v2319 = vunpack.c.l.b16 %v2306
        %v2320 = vunpack.c.l.b16 %v2307
        %v2321 = vunpack.c.l.b16 %v2308
        %v2322 = vpack.c.b16 %v2319, %v2318
        %v2323 = vpack.c.b16 %v2321, %v2320
        %v2327 = vsel %vm987, %v2303, 0
        %2329 = vmatpush.bf16.msra.mxu0 0
        %2330 = vmatpush.bf16.msra.mxu0 0
        %2331 = vmatpush.bf16.msra.mxu0 0
        %2332 = vmatpush.bf16.msra.mxu0 0
        %2333 = vmatpush.bf16.msra.mxu0 0
        %2334 = vmatpush.bf16.msra.mxu0 0
        %2335 = vmatpush.bf16.msra.mxu0 %v2323
        %2336 = vmatpush.bf16.msra.mxu0 %v2322
        %2337 = vmatmul.bf16.gmra.mxu0 %v2327
        %v2338 = vpop.f32.mrf.mxu0
        %v2339 = vadd.f32 %v2312, %v2338
        %v2340 = vpop.f32.mrf.mxu0
        %2341 = vdwg.mxu0
        %v2342 = vmax.f32 %v2339, 0.0
        %v2343 = vpack.c.bf16 %v2342, %v2342
        %s2344 = scalar_lea.vmem %s23, 32
        %v2345 = vld [vmem:[%s2344] sm:$0xf]
        %v2346 = vld [vmem:[%s2344 + $0x4] sm:$0xf]
        %v2347 = vld [vmem:[%s2344 + $0x8] sm:$0xf]
        %v2348 = vld [vmem:[%s2344 + $0xc] sm:$0xf]
        %v2349 = vld [vmem:[%s2344 + $0x10] sm:$0xf]
        %v2350 = vld [vmem:[%s2344 + $0x14] sm:$0xf]
        %v2351 = vld [vmem:[%s2344 + $0x18] sm:$0xf]
        %v2352 = vld [vmem:[%s2344 + $0x1c] sm:$0xf]
        %s2353 = scalar_lea.vmem %s24, 1
        %v2354 = vld [vmem:[%s2353] sm:$0x1]
        %v2356 = vperm.slane %v2354, 0
        %v2366 = vunpack.c.l.b16 %v2345
        %v2367 = vunpack.c.l.b16 %v2346
        %v2368 = vunpack.c.l.b16 %v2347
        %v2369 = vunpack.c.l.b16 %v2348
        %v2370 = vunpack.c.l.b16 %v2349
        %v2371 = vunpack.c.l.b16 %v2350
        %v2372 = vunpack.c.l.b16 %v2351
        %v2373 = vunpack.c.l.b16 %v2352
        %v2374 = vpack.c.b16 %v2367, %v2366
        %v2375 = vpack.c.b16 %v2369, %v2368
        %v2376 = vpack.c.b16 %v2371, %v2370
        %v2377 = vpack.c.b16 %v2373, %v2372
        %v2383 = vsel %vm1738, %v2343, 0
        %2385 = vmatpush.bf16.msra.mxu0 0
        %2386 = vmatpush.bf16.msra.mxu0 0
        %2387 = vmatpush.bf16.msra.mxu0 0
        %2388 = vmatpush.bf16.msra.mxu0 0
        %2389 = vmatpush.bf16.msra.mxu0 %v2377
        %2390 = vmatpush.bf16.msra.mxu0 %v2376
        %2391 = vmatpush.bf16.msra.mxu0 %v2375
        %2392 = vmatpush.bf16.msra.mxu0 %v2374
        %2393 = vmatmul.bf16.gmra.mxu0 %v2383
        %v2394 = vpop.f32.mrf.mxu0
        %v2395 = vadd.f32 %v2356, %v2394
        %v2396 = vpop.f32.mrf.mxu0
        %2397 = vdwg.mxu0
        %v2398 = vadd.f32 %v2302, %v2395
        %s2399 = scalar_lea.vmem %s25, 5
        %v2400 = vld [vmem:[%s2399] sm:$0x1]
        %s2401 = scalar_lea.vmem %s26, 5
        %v2402 = vld [vmem:[%s2401] sm:$0x1]
        %v2403 = vsel %vm963, %v2398, 0.0
        %2404 = vadd.xlane.f32.xlu0 %v2403
        %v2405 = vpop.xlane.xlu0 %2404
        %v2406 = vmul.f32 %v2405, %v1392
        %v2407 = vsub.f32 %v2398, %v2406
        %v2408 = vmul.f32 %v2407, %v2407
        %v2409 = vsel %vm963, %v2408, 0.0
        %2410 = vadd.xlane.f32.xlu0 %v2409
        %v2411 = vpop.xlane.xlu0 %2410
        %v2412 = vmul.f32 %v2411, %v1392
        %v2413 = vadd.f32 %v2412, 1e-05
        %v2414 = vrsqrt.pop %v2413
        %v2415 = vmul.f32 %v2414, %v2413
        %v2416 = vmul.f32 %v2415, %v2414
        %v2417 = vmul.f32 0.5, %v2416
        %v2418 = vsub.f32 1.5, %v2417
        %v2419 = vmul.f32 %v2414, %v2418
        %vm2420 = vweird.f32 %v2413
        %vm2421 = vweird.f32 %v2414
        %vm2422 = vmor %vm2420, %vm2421
        %v2423 = vsel %vm2422, %v2414, %v2419
        %v2424 = vmul.f32 %v2407, %v2423
        %v2426 = vperm.slane %v2400, 0
        %v2428 = vmul.f32 %v2424, %v2426
        %v2430 = vperm.slane %v2402, 0
        %v2432 = vadd.f32 %v2428, %v2430
        %v2433 = vld [vmem:[%s9] sm:$0xff]
        %v2434 = vld [vmem:[%s9 + $0x8] sm:$0xff]
        %v2435 = vld [vmem:[%s9 + $0x10] sm:$0xff]
        %v2436 = vld [vmem:[%s9 + $0x18] sm:$0xff]
        %v2437 = vld [vmem:[%s10] sm:$0x1]
        %v2439 = vperm.slane %v2437, 0
        %v2442 = vsel %vm987, %v2432, 0
        %2444 = vmatpush.msra.mxu0 0.0
        %2445 = vmatpush.msra.mxu0 0.0
        %2446 = vmatpush.msra.mxu0 0.0
        %2447 = vmatpush.msra.mxu0 0.0
        %2448 = vmatpush.msra.mxu0 0.0
        %2449 = vmatpush.msra.mxu0 0.0
        %2450 = vmatpush.msra.mxu0 0.0
        %2451 = vmatpush.msra.mxu0 0.0
        %2452 = vmatpush.msra.mxu0 0.0
        %2453 = vmatpush.msra.mxu0 0.0
        %2454 = vmatpush.msra.mxu0 0.0
        %2455 = vmatpush.msra.mxu0 0.0
        %2456 = vmatpush.msra.mxu0 %v2436
        %2457 = vmatpush.msra.mxu0 %v2435
        %2458 = vmatpush.msra.mxu0 %v2434
        %2459 = vmatpush.msra.mxu0 %v2433
        %2460 = vmatmul.f32.gmra.mxu0 %v2442
        %v2461 = vpop.f32.mrf.mxu0
        %v2462 = vadd.f32 %v2439, %v2461
        %2463 = vdwg.mxu0
        %v2464 = vld [vmem:[%s897] sm:$0xf]
        %v2465 = vadd.f32 %v2462, %v2464
        %2466 = vst.msk [vmem:[#allocation2] sm:$0xf] %vm926, %v2465
        %s2467 = scalar_lea.vmem %s918, %s2259
        %2468 = vst.msk [vmem:[%s2467] sm:$0xf] %vm926, %v2465
      $region133: #{future_decoder_forward.1} parent=127 // loop_footer
        %s1141 = sadd.s32 1, %s1137
      $region134: #{future_decoder_forward.1} parent=127 // loop_footer_branch
        %1136 = sbr.rel target = $region130
      $region135: #{future_decoder_forward.1} parent=127 // loop_exit
        _
      %p2469 = scmp.lt.s32.totalorder %s40, 1
      %s2470 = scalar_select %p2469, %s40, 1
      %s2471 = smul.addr %s2470, 3
      %s2472 = smul.addr %s2471, 4
      %s2473 = scalar_lea.vmem %s27, %s2472
      %p2474 = scmp.lt.s32.totalorder %s40, 1
      %s2475 = scalar_select %p2474, %s40, 1
      %s2476 = smul.addr %s2475, 3
      %s2477 = smul.addr %s2476, 4
      %s2478 = scalar_lea.vmem %s28, %s2477
      // Predicated region
      $region136: #{future_decoder_forward.1} parent=127 // pred_check
        %p2479 = pneg %p650
      $region137: #{future_decoder_forward.1} parent=127 // pred_check_branch
        %2481 = sbr.rel (%p2479) target = $region139
      $region138: #{future_decoder_forward.1} parent=127 // pred_region
        _
      $region139: #{future_decoder_forward.1} parent=127 // pred_fallthru
        _
      // Predicated region
      $region140: #{future_decoder_forward.1} parent=127 // pred_check
        %p2482 = pneg %p676
      $region141: #{future_decoder_forward.1} parent=127 // pred_check_branch
        %2484 = sbr.rel (%p2482) target = $region143
      $region142: #{future_decoder_forward.1} parent=127 // pred_region
        _
      $region143: #{future_decoder_forward.1} parent=127 // pred_fallthru
        _
    $region128: #{future_decoder_forward.1} parent=5 // pred_fallthru
      _
    %p2485 = scmp.le.s32.totalorder 2, %s35
    // Predicated region
    $region144: #{future_decoder_forward.1} parent=5 // pred_check
      %p2486 = pneg %p2485
    $region145: #{future_decoder_forward.1} parent=5 // pred_check_branch
      %2488 = sbr.rel (%p2486) target = $region147
    $region146: #{future_decoder_forward.1} parent=5 // pred_region
      %s2489 = ssub.s32 %s35, 2
      // Predicated region
      $region148: #{future_decoder_forward.1} parent=146 // pred_check
        %p2490 = pneg %p656
      $region149: #{future_decoder_forward.1} parent=146 // pred_check_branch
        %2492 = sbr.rel (%p2490) target = $region151
      $region150: #{future_decoder_forward.1} parent=146 // pred_region
        %p2493 = scmp.lt.s32.totalorder %s41, 1
        %s2494 = scalar_select %p2493, %s41, 1
        %s2495 = smul.addr %s2494, 3
        %s2496 = smul.addr %s2495, 4
        %s2497 = scalar_lea.vmem %s27, %s2496
      $region151: #{future_decoder_forward.1} parent=146 // pred_fallthru
        _
      // Predicated region
      $region152: #{future_decoder_forward.1} parent=146 // pred_check
        %p2498 = pneg %p682
      $region153: #{future_decoder_forward.1} parent=146 // pred_check_branch
        %2500 = sbr.rel (%p2498) target = $region155
      $region154: #{future_decoder_forward.1} parent=146 // pred_region
        %p2501 = scmp.lt.s32.totalorder %s41, 1
        %s2502 = scalar_select %p2501, %s41, 1
        %s2503 = smul.addr %s2502, 3
        %s2504 = smul.addr %s2503, 4
        %s2505 = scalar_lea.vmem %s28, %s2504
      $region155: #{future_decoder_forward.1} parent=146 // pred_fallthru
        _
    $region147: #{future_decoder_forward.1} parent=5 // pred_fallthru
      _
  $region6: #{future_decoder_forward.1} parent=0 // loop_footer
    %s39 = sadd.s32 1, %s35
  $region7: #{future_decoder_forward.1} parent=0 // loop_footer_branch
    %34 = sbr.rel target = $region3
  $region8: #{future_decoder_forward.1} parent=0 // loop_exit
    _

</llo_original>
